<compile_context>
chip_gen: v7x
topology: tpu7x:2x2x1
jax: 0.10.0
libtpu: 0.0.40
codegen_flags: <defaults>
</compile_context>

<pallas_src>
import functools

import jax
import jax.numpy as jnp
from jax import lax
from jax.experimental import pallas as pl
from jax.experimental.pallas import tpu as pltpu


# ----------------------------- GRU step (recurrent part only) -----------------------------
def _gru_step(gi_t, h, whh_t, bhn, H):
    """One GRU step with precomputed input gates.

    gi_t : (Bp, 3H)  x @ W_ih^T with b_ih (+ b_hh for r,z) already folded in.
    h    : (Bp, H)
    whh_t: (H, 3H)
    bhn  : (1, H)    b_hn (hidden bias of n gate) -- only per-step bias left.
    """
    gh = jnp.dot(h, whh_t, preferred_element_type=jnp.float32)
    r = jax.nn.sigmoid(gi_t[:, 0:H] + gh[:, 0:H])
    z = jax.nn.sigmoid(gi_t[:, H:2 * H] + gh[:, H:2 * H])
    n = jnp.tanh(gi_t[:, 2 * H:3 * H] + r * (gh[:, 2 * H:3 * H] + bhn))
    return (1.0 - z) * n + z * h


# ----------------------------- fused NetG kernel -----------------------------
def netg_kernel(xp_ref, xf_ref, hn_ref,
                wih_e_ref, whh_e_ref, bgi_e_ref, bhn_e_ref,
                wih_d_ref, whh_d_ref, bgi_d_ref, bhn_d_ref,
                wfc_ref, bfc_ref,
                out_ref,
                gi_scr, ydec_scr,
                *, T, Bp, H):
    # ---- encoder: input-side matmul for all T timesteps at once (one MXU call)
    gi_scr[...] = (jnp.dot(xp_ref[...], wih_e_ref[...],
                           preferred_element_type=jnp.float32)
                   + bgi_e_ref[...])

    whh_e = whh_e_ref[...]
    bhn_e = bhn_e_ref[...]

    def enc_body(t, h):
        gi_t = gi_scr[pl.ds(t * Bp, Bp), :]
        return _gru_step(gi_t, h, whh_e, bhn_e, H)

    h_enc = lax.fori_loop(0, T, enc_body,
                          jnp.zeros((Bp, H), jnp.float32), unroll=True)

    # hidden = h_T + noise (kept in vregs / VMEM, never round-trips to HBM)
    h_dec = h_enc + hn_ref[...]

    # ---- decoder: reuse the gi scratch slab for the decoder input gates
    gi_scr[...] = (jnp.dot(xf_ref[...], wih_d_ref[...],
                           preferred_element_type=jnp.float32)
                   + bgi_d_ref[...])

    whh_d = whh_d_ref[...]
    bhn_d = bhn_d_ref[...]

    def dec_body(t, h):
        gi_t = gi_scr[pl.ds(t * Bp, Bp), :]
        h_new = _gru_step(gi_t, h, whh_d, bhn_d, H)
        ydec_scr[pl.ds(t * Bp, Bp), :] = h_new
        return h_new

    lax.fori_loop(0, T, dec_body, h_dec, unroll=True)

    # ---- fc_layer hoisted out of the recurrence: one (T*Bp, H)x(H, V) matmul,
    #      single lane-dense slab store (one HBM DMA at kernel end).
    out_ref[...] = (jnp.dot(ydec_scr[...], wfc_ref[...],
                            preferred_element_type=jnp.float32)
                    + bfc_ref[...])


def _netg_pallas(xp2d, xf2d, hn, enc, dec, fc, *, T, Bp, H, V):
    kern = functools.partial(netg_kernel, T=T, Bp=Bp, H=H)
    return pl.pallas_call(
        kern,
        out_shape=jax.ShapeDtypeStruct((T * Bp, V), jnp.float32),
        scratch_shapes=[
            pltpu.VMEM((T * Bp, 3 * H), jnp.float32),   # gi slab (enc then dec)
            pltpu.VMEM((T * Bp, H), jnp.float32),       # decoder hidden slab
        ],
    )(xp2d, xf2d, hn,
      enc["wih_t"], enc["whh_t"], enc["bgi"], enc["bhn"],
      dec["wih_t"], dec["whh_t"], dec["bgi"], dec["bhn"],
      fc["w_t"], fc["b"])


# ----------------------------- NetG forward -----------------------------
def _fold_bias(bih, bhh, H):
    """Fold b_hh's r,z parts into the input-gate bias; keep b_hn separate."""
    bgi = jnp.concatenate([bih[:, :2 * H] + bhh[:, :2 * H], bih[:, 2 * H:]],
                          axis=1)                       # (1, 3H)
    bhn = bhh[:, 2 * H:]                                # (1, H)
    return bgi, bhn


def netg_forward(params, X_p, X_f, noise):
    """X_p, X_f: (B, T, var_dim) batch-first; noise: (1, B, RNN_hid_dim).
    Returns (B, T, var_dim), matching PyTorch NetG.forward."""
    B, T, D = X_p.shape
    H = params["enc"]["whh_t"].shape[0]
    V = params["fc"]["w_t"].shape[-1]
    Bp = -(-B // 8) * 8                                 # pad batch to sublane multiple

    def to_slab(x_btd):
        x_tbd = jnp.transpose(x_btd, (1, 0, 2))         # (T, B, D) time-major
        x_tbd = jnp.pad(x_tbd, ((0, 0), (0, Bp - B), (0, 0)))
        return x_tbd.reshape(T * Bp, D)                 # row = t*Bp + b

    xp2d = to_slab(X_p)
    # shift X_f right by one time step, first step zero
    Xf_shft = jnp.concatenate(
        [jnp.zeros_like(X_f[:, :1, :]), X_f[:, :-1, :]], axis=1)
    xf2d = to_slab(Xf_shft)

    hn = jnp.pad(noise[0], ((0, Bp - B), (0, 0)))       # (Bp, H)

    bgi_e, bhn_e = _fold_bias(params["enc"]["bih"], params["enc"]["bhh"], H)
    bgi_d, bhn_d = _fold_bias(params["dec"]["bih"], params["dec"]["bhh"], H)

    enc = dict(wih_t=params["enc"]["wih_t"], whh_t=params["enc"]["whh_t"],
               bgi=bgi_e, bhn=bhn_e)
    dec = dict(wih_t=params["dec"]["wih_t"], whh_t=params["dec"]["whh_t"],
               bgi=bgi_d, bhn=bhn_d)
    fc = dict(w_t=params["fc"]["w_t"], b=params["fc"]["b"])

    out2d = _netg_pallas(xp2d, xf2d, hn, enc, dec, fc, T=T, Bp=Bp, H=H, V=V)
    out = out2d.reshape(T, Bp, V)[:, :B, :]             # drop batch padding
    return jnp.transpose(out, (1, 0, 2))                # (B, T, V)


# ----------------------------- pure-JAX reference -----------------------------
def _gru_ref(x_tbd, h0, wih_t, whh_t, bih, bhh):
    H = h0.shape[-1]

    def step(h, x):
        gi = x @ wih_t + bih
        gh = h @ whh_t + bhh
        r = jax.nn.sigmoid(gi[:, :H] + gh[:, :H])
        z = jax.nn.sigmoid(gi[:, H:2 * H] + gh[:, H:2 * H])
        n = jnp.tanh(gi[:, 2 * H:] + r * gh[:, 2 * H:])
        h = (1.0 - z) * n + z * h
        return h, h

    hT, ys = lax.scan(step, h0, x_tbd)
    return ys, hT


def netg_ref(params, X_p, X_f, noise):
    B, T, D = X_p.shape
    H = params["enc"]["whh_t"].shape[0]
    Xp_t = jnp.transpose(X_p, (1, 0, 2))
    _, h_t = _gru_ref(Xp_t, jnp.zeros((B, H), jnp.float32),
                      params["enc"]["wih_t"], params["enc"]["whh_t"],
                      params["enc"]["bih"], params["enc"]["bhh"])
    hidden = h_t + noise[0]
    Xf_shft = jnp.concatenate(
        [jnp.zeros_like(X_f[:, :1, :]), X_f[:, :-1, :]], axis=1)
    Xf_t = jnp.transpose(Xf_shft, (1, 0, 2))
    ys, _ = _gru_ref(Xf_t, hidden,
                     params["dec"]["wih_t"], params["dec"]["whh_t"],
                     params["dec"]["bih"], params["dec"]["bhh"])
    out = ys @ params["fc"]["w_t"] + params["fc"]["b"]
    return jnp.transpose(out, (1, 0, 2))


# ----------------------------- deterministic params -----------------------------
def init_params(key, var_dim, hid_dim):
    k = 1.0 / jnp.sqrt(hid_dim)

    def uni(key, shape):
        return jax.random.uniform(key, shape, jnp.float32, -k, k)

    keys = jax.random.split(key, 11)
    return {
        "enc": {
            "wih_t": uni(keys[0], (var_dim, 3 * hid_dim)),   # W_ih^T
            "whh_t": uni(keys[1], (hid_dim, 3 * hid_dim)),   # W_hh^T
            "bih": uni(keys[2], (1, 3 * hid_dim)),
            "bhh": uni(keys[3], (1, 3 * hid_dim)),
        },
        "dec": {
            "wih_t": uni(keys[4], (var_dim, 3 * hid_dim)),
            "whh_t": uni(keys[5], (hid_dim, 3 * hid_dim)),
            "bih": uni(keys[6], (1, 3 * hid_dim)),
            "bhh": uni(keys[7], (1, 3 * hid_dim)),
        },
        "fc": {
            "w_t": uni(keys[8], (hid_dim, var_dim)),          # W_fc^T
            "b": uni(keys[9], (1, var_dim)),
        },
    }


if __name__ == "__main__":
    B, T, VAR_DIM, HID = 2, 8, 4, 32

    key = jax.random.PRNGKey(0)
    k_p, k_f, k_n, k_w = jax.random.split(key, 4)
    X_p = jax.random.normal(k_p, (B, T, VAR_DIM), jnp.float32)
    X_f = jax.random.normal(k_f, (B, T, VAR_DIM), jnp.float32)
    noise = jax.random.normal(k_n, (1, B, HID), jnp.float32)

    params = init_params(k_w, VAR_DIM, HID)

    out = jax.jit(netg_forward)(params, X_p, X_f, noise)
    jax.block_until_ready(out)
    assert out.shape == (B, T, VAR_DIM), out.shape

    ref = netg_ref(params, X_p, X_f, noise)
    assert jnp.allclose(out, ref, atol=1e-4, rtol=1e-4), \
        float(jnp.max(jnp.abs(out - ref)))

    print("KERNEL_OK")
</pallas_src>

<mosaic_0001>
module attributes {stable_mosaic.version = 11 : i64} {
  func.func @netg_kernel(%arg0: memref<64x4xf32, #tpu.memory_space<vmem>>, %arg1: memref<64x4xf32, #tpu.memory_space<vmem>>, %arg2: memref<8x32xf32, #tpu.memory_space<vmem>>, %arg3: memref<4x96xf32, #tpu.memory_space<vmem>>, %arg4: memref<32x96xf32, #tpu.memory_space<vmem>>, %arg5: memref<1x96xf32, #tpu.memory_space<vmem>>, %arg6: memref<1x32xf32, #tpu.memory_space<vmem>>, %arg7: memref<4x96xf32, #tpu.memory_space<vmem>>, %arg8: memref<32x96xf32, #tpu.memory_space<vmem>>, %arg9: memref<1x96xf32, #tpu.memory_space<vmem>>, %arg10: memref<1x32xf32, #tpu.memory_space<vmem>>, %arg11: memref<32x4xf32, #tpu.memory_space<vmem>>, %arg12: memref<1x4xf32, #tpu.memory_space<vmem>>, %arg13: memref<64x4xf32, #tpu.memory_space<vmem>>, %arg14: memref<64x96xf32, #tpu.memory_space<vmem>>, %arg15: memref<64x32xf32, #tpu.memory_space<vmem>>) attributes {dimension_semantics = [], scalar_prefetch = 0 : i64, scratch_operands = 2 : i64, tpu.core_type = #tpu.core_type<tc>} {
    %c0 = arith.constant 0 : index
    %c0_0 = arith.constant 0 : index
    %0 = vector.load %arg0[%c0, %c0_0] : memref<64x4xf32, #tpu.memory_space<vmem>>, vector<64x4xf32>
    %c0_1 = arith.constant 0 : index
    %c0_2 = arith.constant 0 : index
    %1 = vector.load %arg3[%c0_1, %c0_2] : memref<4x96xf32, #tpu.memory_space<vmem>>, vector<4x96xf32>
    %cst = arith.constant dense<0.000000e+00> : vector<64x96xf32>
    %2 = tpu.matmul %0, %1, %cst {dimension_numbers = #tpu.dot_dimension_numbers<[1], [0], [0], [1], [0, 0, 1, 1], [], []>} : vector<64x4xf32>, vector<4x96xf32>, vector<64x96xf32> -> vector<64x96xf32>
    %c0_3 = arith.constant 0 : index
    %c0_4 = arith.constant 0 : index
    %3 = vector.load %arg5[%c0_3, %c0_4] : memref<1x96xf32, #tpu.memory_space<vmem>>, vector<1x96xf32>
    %4 = vector.broadcast %3 : vector<1x96xf32> to vector<64x96xf32>
    %5 = arith.addf %2, %4 : vector<64x96xf32>
    %c0_5 = arith.constant 0 : index
    %c0_6 = arith.constant 0 : index
    %6 = vector.load %arg14[%c0_5, %c0_6] : memref<64x96xf32, #tpu.memory_space<vmem>>, vector<64x96xf32>
    tpu.vector_store %arg14[%c0_5, %c0_6], %5 {strides = array<i32>} : memref<64x96xf32, #tpu.memory_space<vmem>>, vector<64x96xf32>,
    %c0_7 = arith.constant 0 : index
    %c0_8 = arith.constant 0 : index
    %7 = vector.load %arg4[%c0_7, %c0_8] : memref<32x96xf32, #tpu.memory_space<vmem>>, vector<32x96xf32>
    %c0_9 = arith.constant 0 : index
    %c0_10 = arith.constant 0 : index
    %8 = vector.load %arg6[%c0_9, %c0_10] : memref<1x32xf32, #tpu.memory_space<vmem>>, vector<1x32xf32>
    %cst_11 = arith.constant 0.000000e+00 : f32
    %9 = vector.broadcast %cst_11 : f32 to vector<8x32xf32>
    %c0_i32 = arith.constant 0 : i32
    %c8_i32 = arith.constant 8 : i32
    %10 = arith.muli %c0_i32, %c8_i32 : i32
    %11 = arith.index_cast %10 : i32 to index
    %c0_12 = arith.constant 0 : index
    %12 = vector.load %arg14[%11, %c0_12] : memref<64x96xf32, #tpu.memory_space<vmem>>, vector<8x96xf32>
    %cst_13 = arith.constant dense<0.000000e+00> : vector<8x96xf32>
    %13 = tpu.matmul %9, %7, %cst_13 {dimension_numbers = #tpu.dot_dimension_numbers<[1], [0], [0], [1], [0, 0, 1, 1], [], []>} : vector<8x32xf32>, vector<32x96xf32>, vector<8x96xf32> -> vector<8x96xf32>
    %14 = vector.extract_strided_slice %12 {offsets = [0, 0], sizes = [8, 32], strides = [1, 1]} : vector<8x96xf32> to vector<8x32xf32>
    %15 = vector.extract_strided_slice %13 {offsets = [0, 0], sizes = [8, 32], strides = [1, 1]} : vector<8x96xf32> to vector<8x32xf32>
    %16 = arith.addf %14, %15 : vector<8x32xf32>
    %17 = arith.negf %16 : vector<8x32xf32>
    %18 = math.exp %17 : vector<8x32xf32>
    %cst_14 = arith.constant 1.000000e+00 : f32
    %19 = vector.broadcast %cst_14 : f32 to vector<8x32xf32>
    %20 = arith.addf %19, %18 : vector<8x32xf32>
    %21 = arith.divf %19, %20 : vector<8x32xf32>
    %22 = vector.extract_strided_slice %12 {offsets = [0, 32], sizes = [8, 32], strides = [1, 1]} : vector<8x96xf32> to vector<8x32xf32>
    %23 = vector.extract_strided_slice %13 {offsets = [0, 32], sizes = [8, 32], strides = [1, 1]} : vector<8x96xf32> to vector<8x32xf32>
    %24 = arith.addf %22, %23 : vector<8x32xf32>
    %25 = arith.negf %24 : vector<8x32xf32>
    %26 = math.exp %25 : vector<8x32xf32>
    %cst_15 = arith.constant 1.000000e+00 : f32
    %27 = vector.broadcast %cst_15 : f32 to vector<8x32xf32>
    %28 = arith.addf %27, %26 : vector<8x32xf32>
    %29 = arith.divf %27, %28 : vector<8x32xf32>
    %30 = vector.extract_strided_slice %12 {offsets = [0, 64], sizes = [8, 32], strides = [1, 1]} : vector<8x96xf32> to vector<8x32xf32>
    %31 = vector.extract_strided_slice %13 {offsets = [0, 64], sizes = [8, 32], strides = [1, 1]} : vector<8x96xf32> to vector<8x32xf32>
    %32 = vector.broadcast %8 : vector<1x32xf32> to vector<8x32xf32>
    %33 = arith.addf %31, %32 : vector<8x32xf32>
    %34 = arith.mulf %21, %33 : vector<8x32xf32>
    %35 = arith.addf %30, %34 : vector<8x32xf32>
    %36 = math.tanh %35 : vector<8x32xf32>
    %cst_16 = arith.constant 1.000000e+00 : f32
    %37 = vector.broadcast %cst_16 : f32 to vector<8x32xf32>
    %38 = arith.subf %37, %29 : vector<8x32xf32>
    %39 = arith.mulf %38, %36 : vector<8x32xf32>
    %40 = arith.mulf %29, %9 : vector<8x32xf32>
    %41 = arith.addf %39, %40 : vector<8x32xf32>
    %c1_i32 = arith.constant 1 : i32
    %c8_i32_17 = arith.constant 8 : i32
    %42 = arith.muli %c1_i32, %c8_i32_17 : i32
    %43 = arith.index_cast %42 : i32 to index
    %c0_18 = arith.constant 0 : index
    %44 = vector.load %arg14[%43, %c0_18] : memref<64x96xf32, #tpu.memory_space<vmem>>, vector<8x96xf32>
    %cst_19 = arith.constant dense<0.000000e+00> : vector<8x96xf32>
    %45 = tpu.matmul %41, %7, %cst_19 {dimension_numbers = #tpu.dot_dimension_numbers<[1], [0], [0], [1], [0, 0, 1, 1], [], []>} : vector<8x32xf32>, vector<32x96xf32>, vector<8x96xf32> -> vector<8x96xf32>
    %46 = vector.extract_strided_slice %44 {offsets = [0, 0], sizes = [8, 32], strides = [1, 1]} : vector<8x96xf32> to vector<8x32xf32>
    %47 = vector.extract_strided_slice %45 {offsets = [0, 0], sizes = [8, 32], strides = [1, 1]} : vector<8x96xf32> to vector<8x32xf32>
    %48 = arith.addf %46, %47 : vector<8x32xf32>
    %49 = arith.negf %48 : vector<8x32xf32>
    %50 = math.exp %49 : vector<8x32xf32>
    %cst_20 = arith.constant 1.000000e+00 : f32
    %51 = vector.broadcast %cst_20 : f32 to vector<8x32xf32>
    %52 = arith.addf %51, %50 : vector<8x32xf32>
    %53 = arith.divf %51, %52 : vector<8x32xf32>
    %54 = vector.extract_strided_slice %44 {offsets = [0, 32], sizes = [8, 32], strides = [1, 1]} : vector<8x96xf32> to vector<8x32xf32>
    %55 = vector.extract_strided_slice %45 {offsets = [0, 32], sizes = [8, 32], strides = [1, 1]} : vector<8x96xf32> to vector<8x32xf32>
    %56 = arith.addf %54, %55 : vector<8x32xf32>
    %57 = arith.negf %56 : vector<8x32xf32>
    %58 = math.exp %57 : vector<8x32xf32>
    %cst_21 = arith.constant 1.000000e+00 : f32
    %59 = vector.broadcast %cst_21 : f32 to vector<8x32xf32>
    %60 = arith.addf %59, %58 : vector<8x32xf32>
    %61 = arith.divf %59, %60 : vector<8x32xf32>
    %62 = vector.extract_strided_slice %44 {offsets = [0, 64], sizes = [8, 32], strides = [1, 1]} : vector<8x96xf32> to vector<8x32xf32>
    %63 = vector.extract_strided_slice %45 {offsets = [0, 64], sizes = [8, 32], strides = [1, 1]} : vector<8x96xf32> to vector<8x32xf32>
    %64 = vector.broadcast %8 : vector<1x32xf32> to vector<8x32xf32>
    %65 = arith.addf %63, %64 : vector<8x32xf32>
    %66 = arith.mulf %53, %65 : vector<8x32xf32>
    %67 = arith.addf %62, %66 : vector<8x32xf32>
    %68 = math.tanh %67 : vector<8x32xf32>
    %cst_22 = arith.constant 1.000000e+00 : f32
    %69 = vector.broadcast %cst_22 : f32 to vector<8x32xf32>
    %70 = arith.subf %69, %61 : vector<8x32xf32>
    %71 = arith.mulf %70, %68 : vector<8x32xf32>
    %72 = arith.mulf %61, %41 : vector<8x32xf32>
    %73 = arith.addf %71, %72 : vector<8x32xf32>
    %c2_i32 = arith.constant 2 : i32
    %c8_i32_23 = arith.constant 8 : i32
    %74 = arith.muli %c2_i32, %c8_i32_23 : i32
    %75 = arith.index_cast %74 : i32 to index
    %c0_24 = arith.constant 0 : index
    %76 = vector.load %arg14[%75, %c0_24] : memref<64x96xf32, #tpu.memory_space<vmem>>, vector<8x96xf32>
    %cst_25 = arith.constant dense<0.000000e+00> : vector<8x96xf32>
    %77 = tpu.matmul %73, %7, %cst_25 {dimension_numbers = #tpu.dot_dimension_numbers<[1], [0], [0], [1], [0, 0, 1, 1], [], []>} : vector<8x32xf32>, vector<32x96xf32>, vector<8x96xf32> -> vector<8x96xf32>
    %78 = vector.extract_strided_slice %76 {offsets = [0, 0], sizes = [8, 32], strides = [1, 1]} : vector<8x96xf32> to vector<8x32xf32>
    %79 = vector.extract_strided_slice %77 {offsets = [0, 0], sizes = [8, 32], strides = [1, 1]} : vector<8x96xf32> to vector<8x32xf32>
    %80 = arith.addf %78, %79 : vector<8x32xf32>
    %81 = arith.negf %80 : vector<8x32xf32>
    %82 = math.exp %81 : vector<8x32xf32>
    %cst_26 = arith.constant 1.000000e+00 : f32
    %83 = vector.broadcast %cst_26 : f32 to vector<8x32xf32>
    %84 = arith.addf %83, %82 : vector<8x32xf32>
    %85 = arith.divf %83, %84 : vector<8x32xf32>
    %86 = vector.extract_strided_slice %76 {offsets = [0, 32], sizes = [8, 32], strides = [1, 1]} : vector<8x96xf32> to vector<8x32xf32>
    %87 = vector.extract_strided_slice %77 {offsets = [0, 32], sizes = [8, 32], strides = [1, 1]} : vector<8x96xf32> to vector<8x32xf32>
    %88 = arith.addf %86, %87 : vector<8x32xf32>
    %89 = arith.negf %88 : vector<8x32xf32>
    %90 = math.exp %89 : vector<8x32xf32>
    %cst_27 = arith.constant 1.000000e+00 : f32
    %91 = vector.broadcast %cst_27 : f32 to vector<8x32xf32>
    %92 = arith.addf %91, %90 : vector<8x32xf32>
    %93 = arith.divf %91, %92 : vector<8x32xf32>
    %94 = vector.extract_strided_slice %76 {offsets = [0, 64], sizes = [8, 32], strides = [1, 1]} : vector<8x96xf32> to vector<8x32xf32>
    %95 = vector.extract_strided_slice %77 {offsets = [0, 64], sizes = [8, 32], strides = [1, 1]} : vector<8x96xf32> to vector<8x32xf32>
    %96 = vector.broadcast %8 : vector<1x32xf32> to vector<8x32xf32>
    %97 = arith.addf %95, %96 : vector<8x32xf32>
    %98 = arith.mulf %85, %97 : vector<8x32xf32>
    %99 = arith.addf %94, %98 : vector<8x32xf32>
    %100 = math.tanh %99 : vector<8x32xf32>
    %cst_28 = arith.constant 1.000000e+00 : f32
    %101 = vector.broadcast %cst_28 : f32 to vector<8x32xf32>
    %102 = arith.subf %101, %93 : vector<8x32xf32>
    %103 = arith.mulf %102, %100 : vector<8x32xf32>
    %104 = arith.mulf %93, %73 : vector<8x32xf32>
    %105 = arith.addf %103, %104 : vector<8x32xf32>
    %c3_i32 = arith.constant 3 : i32
    %c8_i32_29 = arith.constant 8 : i32
    %106 = arith.muli %c3_i32, %c8_i32_29 : i32
    %107 = arith.index_cast %106 : i32 to index
    %c0_30 = arith.constant 0 : index
    %108 = vector.load %arg14[%107, %c0_30] : memref<64x96xf32, #tpu.memory_space<vmem>>, vector<8x96xf32>
    %cst_31 = arith.constant dense<0.000000e+00> : vector<8x96xf32>
    %109 = tpu.matmul %105, %7, %cst_31 {dimension_numbers = #tpu.dot_dimension_numbers<[1], [0], [0], [1], [0, 0, 1, 1], [], []>} : vector<8x32xf32>, vector<32x96xf32>, vector<8x96xf32> -> vector<8x96xf32>
    %110 = vector.extract_strided_slice %108 {offsets = [0, 0], sizes = [8, 32], strides = [1, 1]} : vector<8x96xf32> to vector<8x32xf32>
    %111 = vector.extract_strided_slice %109 {offsets = [0, 0], sizes = [8, 32], strides = [1, 1]} : vector<8x96xf32> to vector<8x32xf32>
    %112 = arith.addf %110, %111 : vector<8x32xf32>
    %113 = arith.negf %112 : vector<8x32xf32>
    %114 = math.exp %113 : vector<8x32xf32>
    %cst_32 = arith.constant 1.000000e+00 : f32
    %115 = vector.broadcast %cst_32 : f32 to vector<8x32xf32>
    %116 = arith.addf %115, %114 : vector<8x32xf32>
    %117 = arith.divf %115, %116 : vector<8x32xf32>
    %118 = vector.extract_strided_slice %108 {offsets = [0, 32], sizes = [8, 32], strides = [1, 1]} : vector<8x96xf32> to vector<8x32xf32>
    %119 = vector.extract_strided_slice %109 {offsets = [0, 32], sizes = [8, 32], strides = [1, 1]} : vector<8x96xf32> to vector<8x32xf32>
    %120 = arith.addf %118, %119 : vector<8x32xf32>
    %121 = arith.negf %120 : vector<8x32xf32>
    %122 = math.exp %121 : vector<8x32xf32>
    %cst_33 = arith.constant 1.000000e+00 : f32
    %123 = vector.broadcast %cst_33 : f32 to vector<8x32xf32>
    %124 = arith.addf %123, %122 : vector<8x32xf32>
    %125 = arith.divf %123, %124 : vector<8x32xf32>
    %126 = vector.extract_strided_slice %108 {offsets = [0, 64], sizes = [8, 32], strides = [1, 1]} : vector<8x96xf32> to vector<8x32xf32>
    %127 = vector.extract_strided_slice %109 {offsets = [0, 64], sizes = [8, 32], strides = [1, 1]} : vector<8x96xf32> to vector<8x32xf32>
    %128 = vector.broadcast %8 : vector<1x32xf32> to vector<8x32xf32>
    %129 = arith.addf %127, %128 : vector<8x32xf32>
    %130 = arith.mulf %117, %129 : vector<8x32xf32>
    %131 = arith.addf %126, %130 : vector<8x32xf32>
    %132 = math.tanh %131 : vector<8x32xf32>
    %cst_34 = arith.constant 1.000000e+00 : f32
    %133 = vector.broadcast %cst_34 : f32 to vector<8x32xf32>
    %134 = arith.subf %133, %125 : vector<8x32xf32>
    %135 = arith.mulf %134, %132 : vector<8x32xf32>
    %136 = arith.mulf %125, %105 : vector<8x32xf32>
    %137 = arith.addf %135, %136 : vector<8x32xf32>
    %c4_i32 = arith.constant 4 : i32
    %c8_i32_35 = arith.constant 8 : i32
    %138 = arith.muli %c4_i32, %c8_i32_35 : i32
    %139 = arith.index_cast %138 : i32 to index
    %c0_36 = arith.constant 0 : index
    %140 = vector.load %arg14[%139, %c0_36] : memref<64x96xf32, #tpu.memory_space<vmem>>, vector<8x96xf32>
    %cst_37 = arith.constant dense<0.000000e+00> : vector<8x96xf32>
    %141 = tpu.matmul %137, %7, %cst_37 {dimension_numbers = #tpu.dot_dimension_numbers<[1], [0], [0], [1], [0, 0, 1, 1], [], []>} : vector<8x32xf32>, vector<32x96xf32>, vector<8x96xf32> -> vector<8x96xf32>
    %142 = vector.extract_strided_slice %140 {offsets = [0, 0], sizes = [8, 32], strides = [1, 1]} : vector<8x96xf32> to vector<8x32xf32>
    %143 = vector.extract_strided_slice %141 {offsets = [0, 0], sizes = [8, 32], strides = [1, 1]} : vector<8x96xf32> to vector<8x32xf32>
    %144 = arith.addf %142, %143 : vector<8x32xf32>
    %145 = arith.negf %144 : vector<8x32xf32>
    %146 = math.exp %145 : vector<8x32xf32>
    %cst_38 = arith.constant 1.000000e+00 : f32
    %147 = vector.broadcast %cst_38 : f32 to vector<8x32xf32>
    %148 = arith.addf %147, %146 : vector<8x32xf32>
    %149 = arith.divf %147, %148 : vector<8x32xf32>
    %150 = vector.extract_strided_slice %140 {offsets = [0, 32], sizes = [8, 32], strides = [1, 1]} : vector<8x96xf32> to vector<8x32xf32>
    %151 = vector.extract_strided_slice %141 {offsets = [0, 32], sizes = [8, 32], strides = [1, 1]} : vector<8x96xf32> to vector<8x32xf32>
    %152 = arith.addf %150, %151 : vector<8x32xf32>
    %153 = arith.negf %152 : vector<8x32xf32>
    %154 = math.exp %153 : vector<8x32xf32>
    %cst_39 = arith.constant 1.000000e+00 : f32
    %155 = vector.broadcast %cst_39 : f32 to vector<8x32xf32>
    %156 = arith.addf %155, %154 : vector<8x32xf32>
    %157 = arith.divf %155, %156 : vector<8x32xf32>
    %158 = vector.extract_strided_slice %140 {offsets = [0, 64], sizes = [8, 32], strides = [1, 1]} : vector<8x96xf32> to vector<8x32xf32>
    %159 = vector.extract_strided_slice %141 {offsets = [0, 64], sizes = [8, 32], strides = [1, 1]} : vector<8x96xf32> to vector<8x32xf32>
    %160 = vector.broadcast %8 : vector<1x32xf32> to vector<8x32xf32>
    %161 = arith.addf %159, %160 : vector<8x32xf32>
    %162 = arith.mulf %149, %161 : vector<8x32xf32>
    %163 = arith.addf %158, %162 : vector<8x32xf32>
    %164 = math.tanh %163 : vector<8x32xf32>
    %cst_40 = arith.constant 1.000000e+00 : f32
    %165 = vector.broadcast %cst_40 : f32 to vector<8x32xf32>
    %166 = arith.subf %165, %157 : vector<8x32xf32>
    %167 = arith.mulf %166, %164 : vector<8x32xf32>
    %168 = arith.mulf %157, %137 : vector<8x32xf32>
    %169 = arith.addf %167, %168 : vector<8x32xf32>
    %c5_i32 = arith.constant 5 : i32
    %c8_i32_41 = arith.constant 8 : i32
    %170 = arith.muli %c5_i32, %c8_i32_41 : i32
    %171 = arith.index_cast %170 : i32 to index
    %c0_42 = arith.constant 0 : index
    %172 = vector.load %arg14[%171, %c0_42] : memref<64x96xf32, #tpu.memory_space<vmem>>, vector<8x96xf32>
    %cst_43 = arith.constant dense<0.000000e+00> : vector<8x96xf32>
    %173 = tpu.matmul %169, %7, %cst_43 {dimension_numbers = #tpu.dot_dimension_numbers<[1], [0], [0], [1], [0, 0, 1, 1], [], []>} : vector<8x32xf32>, vector<32x96xf32>, vector<8x96xf32> -> vector<8x96xf32>
    %174 = vector.extract_strided_slice %172 {offsets = [0, 0], sizes = [8, 32], strides = [1, 1]} : vector<8x96xf32> to vector<8x32xf32>
    %175 = vector.extract_strided_slice %173 {offsets = [0, 0], sizes = [8, 32], strides = [1, 1]} : vector<8x96xf32> to vector<8x32xf32>
    %176 = arith.addf %174, %175 : vector<8x32xf32>
    %177 = arith.negf %176 : vector<8x32xf32>
    %178 = math.exp %177 : vector<8x32xf32>
    %cst_44 = arith.constant 1.000000e+00 : f32
    %179 = vector.broadcast %cst_44 : f32 to vector<8x32xf32>
    %180 = arith.addf %179, %178 : vector<8x32xf32>
    %181 = arith.divf %179, %180 : vector<8x32xf32>
    %182 = vector.extract_strided_slice %172 {offsets = [0, 32], sizes = [8, 32], strides = [1, 1]} : vector<8x96xf32> to vector<8x32xf32>
    %183 = vector.extract_strided_slice %173 {offsets = [0, 32], sizes = [8, 32], strides = [1, 1]} : vector<8x96xf32> to vector<8x32xf32>
    %184 = arith.addf %182, %183 : vector<8x32xf32>
    %185 = arith.negf %184 : vector<8x32xf32>
    %186 = math.exp %185 : vector<8x32xf32>
    %cst_45 = arith.constant 1.000000e+00 : f32
    %187 = vector.broadcast %cst_45 : f32 to vector<8x32xf32>
    %188 = arith.addf %187, %186 : vector<8x32xf32>
    %189 = arith.divf %187, %188 : vector<8x32xf32>
    %190 = vector.extract_strided_slice %172 {offsets = [0, 64], sizes = [8, 32], strides = [1, 1]} : vector<8x96xf32> to vector<8x32xf32>
    %191 = vector.extract_strided_slice %173 {offsets = [0, 64], sizes = [8, 32], strides = [1, 1]} : vector<8x96xf32> to vector<8x32xf32>
    %192 = vector.broadcast %8 : vector<1x32xf32> to vector<8x32xf32>
    %193 = arith.addf %191, %192 : vector<8x32xf32>
    %194 = arith.mulf %181, %193 : vector<8x32xf32>
    %195 = arith.addf %190, %194 : vector<8x32xf32>
    %196 = math.tanh %195 : vector<8x32xf32>
    %cst_46 = arith.constant 1.000000e+00 : f32
    %197 = vector.broadcast %cst_46 : f32 to vector<8x32xf32>
    %198 = arith.subf %197, %189 : vector<8x32xf32>
    %199 = arith.mulf %198, %196 : vector<8x32xf32>
    %200 = arith.mulf %189, %169 : vector<8x32xf32>
    %201 = arith.addf %199, %200 : vector<8x32xf32>
    %c6_i32 = arith.constant 6 : i32
    %c8_i32_47 = arith.constant 8 : i32
    %202 = arith.muli %c6_i32, %c8_i32_47 : i32
    %203 = arith.index_cast %202 : i32 to index
    %c0_48 = arith.constant 0 : index
    %204 = vector.load %arg14[%203, %c0_48] : memref<64x96xf32, #tpu.memory_space<vmem>>, vector<8x96xf32>
    %cst_49 = arith.constant dense<0.000000e+00> : vector<8x96xf32>
    %205 = tpu.matmul %201, %7, %cst_49 {dimension_numbers = #tpu.dot_dimension_numbers<[1], [0], [0], [1], [0, 0, 1, 1], [], []>} : vector<8x32xf32>, vector<32x96xf32>, vector<8x96xf32> -> vector<8x96xf32>
    %206 = vector.extract_strided_slice %204 {offsets = [0, 0], sizes = [8, 32], strides = [1, 1]} : vector<8x96xf32> to vector<8x32xf32>
    %207 = vector.extract_strided_slice %205 {offsets = [0, 0], sizes = [8, 32], strides = [1, 1]} : vector<8x96xf32> to vector<8x32xf32>
    %208 = arith.addf %206, %207 : vector<8x32xf32>
    %209 = arith.negf %208 : vector<8x32xf32>
    %210 = math.exp %209 : vector<8x32xf32>
    %cst_50 = arith.constant 1.000000e+00 : f32
    %211 = vector.broadcast %cst_50 : f32 to vector<8x32xf32>
    %212 = arith.addf %211, %210 : vector<8x32xf32>
    %213 = arith.divf %211, %212 : vector<8x32xf32>
    %214 = vector.extract_strided_slice %204 {offsets = [0, 32], sizes = [8, 32], strides = [1, 1]} : vector<8x96xf32> to vector<8x32xf32>
    %215 = vector.extract_strided_slice %205 {offsets = [0, 32], sizes = [8, 32], strides = [1, 1]} : vector<8x96xf32> to vector<8x32xf32>
    %216 = arith.addf %214, %215 : vector<8x32xf32>
    %217 = arith.negf %216 : vector<8x32xf32>
    %218 = math.exp %217 : vector<8x32xf32>
    %cst_51 = arith.constant 1.000000e+00 : f32
    %219 = vector.broadcast %cst_51 : f32 to vector<8x32xf32>
    %220 = arith.addf %219, %218 : vector<8x32xf32>
    %221 = arith.divf %219, %220 : vector<8x32xf32>
    %222 = vector.extract_strided_slice %204 {offsets = [0, 64], sizes = [8, 32], strides = [1, 1]} : vector<8x96xf32> to vector<8x32xf32>
    %223 = vector.extract_strided_slice %205 {offsets = [0, 64], sizes = [8, 32], strides = [1, 1]} : vector<8x96xf32> to vector<8x32xf32>
    %224 = vector.broadcast %8 : vector<1x32xf32> to vector<8x32xf32>
    %225 = arith.addf %223, %224 : vector<8x32xf32>
    %226 = arith.mulf %213, %225 : vector<8x32xf32>
    %227 = arith.addf %222, %226 : vector<8x32xf32>
    %228 = math.tanh %227 : vector<8x32xf32>
    %cst_52 = arith.constant 1.000000e+00 : f32
    %229 = vector.broadcast %cst_52 : f32 to vector<8x32xf32>
    %230 = arith.subf %229, %221 : vector<8x32xf32>
    %231 = arith.mulf %230, %228 : vector<8x32xf32>
    %232 = arith.mulf %221, %201 : vector<8x32xf32>
    %233 = arith.addf %231, %232 : vector<8x32xf32>
    %c7_i32 = arith.constant 7 : i32
    %c8_i32_53 = arith.constant 8 : i32
    %234 = arith.muli %c7_i32, %c8_i32_53 : i32
    %235 = arith.index_cast %234 : i32 to index
    %c0_54 = arith.constant 0 : index
    %236 = vector.load %arg14[%235, %c0_54] : memref<64x96xf32, #tpu.memory_space<vmem>>, vector<8x96xf32>
    %cst_55 = arith.constant dense<0.000000e+00> : vector<8x96xf32>
    %237 = tpu.matmul %233, %7, %cst_55 {dimension_numbers = #tpu.dot_dimension_numbers<[1], [0], [0], [1], [0, 0, 1, 1], [], []>} : vector<8x32xf32>, vector<32x96xf32>, vector<8x96xf32> -> vector<8x96xf32>
    %238 = vector.extract_strided_slice %236 {offsets = [0, 0], sizes = [8, 32], strides = [1, 1]} : vector<8x96xf32> to vector<8x32xf32>
    %239 = vector.extract_strided_slice %237 {offsets = [0, 0], sizes = [8, 32], strides = [1, 1]} : vector<8x96xf32> to vector<8x32xf32>
    %240 = arith.addf %238, %239 : vector<8x32xf32>
    %241 = arith.negf %240 : vector<8x32xf32>
    %242 = math.exp %241 : vector<8x32xf32>
    %cst_56 = arith.constant 1.000000e+00 : f32
    %243 = vector.broadcast %cst_56 : f32 to vector<8x32xf32>
    %244 = arith.addf %243, %242 : vector<8x32xf32>
    %245 = arith.divf %243, %244 : vector<8x32xf32>
    %246 = vector.extract_strided_slice %236 {offsets = [0, 32], sizes = [8, 32], strides = [1, 1]} : vector<8x96xf32> to vector<8x32xf32>
    %247 = vector.extract_strided_slice %237 {offsets = [0, 32], sizes = [8, 32], strides = [1, 1]} : vector<8x96xf32> to vector<8x32xf32>
    %248 = arith.addf %246, %247 : vector<8x32xf32>
    %249 = arith.negf %248 : vector<8x32xf32>
    %250 = math.exp %249 : vector<8x32xf32>
    %cst_57 = arith.constant 1.000000e+00 : f32
    %251 = vector.broadcast %cst_57 : f32 to vector<8x32xf32>
    %252 = arith.addf %251, %250 : vector<8x32xf32>
    %253 = arith.divf %251, %252 : vector<8x32xf32>
    %254 = vector.extract_strided_slice %236 {offsets = [0, 64], sizes = [8, 32], strides = [1, 1]} : vector<8x96xf32> to vector<8x32xf32>
    %255 = vector.extract_strided_slice %237 {offsets = [0, 64], sizes = [8, 32], strides = [1, 1]} : vector<8x96xf32> to vector<8x32xf32>
    %256 = vector.broadcast %8 : vector<1x32xf32> to vector<8x32xf32>
    %257 = arith.addf %255, %256 : vector<8x32xf32>
    %258 = arith.mulf %245, %257 : vector<8x32xf32>
    %259 = arith.addf %254, %258 : vector<8x32xf32>
    %260 = math.tanh %259 : vector<8x32xf32>
    %cst_58 = arith.constant 1.000000e+00 : f32
    %261 = vector.broadcast %cst_58 : f32 to vector<8x32xf32>
    %262 = arith.subf %261, %253 : vector<8x32xf32>
    %263 = arith.mulf %262, %260 : vector<8x32xf32>
    %264 = arith.mulf %253, %233 : vector<8x32xf32>
    %265 = arith.addf %263, %264 : vector<8x32xf32>
    %c8_i32_59 = arith.constant 8 : i32
    %c0_60 = arith.constant 0 : index
    %c0_61 = arith.constant 0 : index
    %266 = vector.load %arg2[%c0_60, %c0_61] : memref<8x32xf32, #tpu.memory_space<vmem>>, vector<8x32xf32>
    %267 = arith.addf %265, %266 : vector<8x32xf32>
    %c0_62 = arith.constant 0 : index
    %c0_63 = arith.constant 0 : index
    %268 = vector.load %arg1[%c0_62, %c0_63] : memref<64x4xf32, #tpu.memory_space<vmem>>, vector<64x4xf32>
    %c0_64 = arith.constant 0 : index
    %c0_65 = arith.constant 0 : index
    %269 = vector.load %arg7[%c0_64, %c0_65] : memref<4x96xf32, #tpu.memory_space<vmem>>, vector<4x96xf32>
    %cst_66 = arith.constant dense<0.000000e+00> : vector<64x96xf32>
    %270 = tpu.matmul %268, %269, %cst_66 {dimension_numbers = #tpu.dot_dimension_numbers<[1], [0], [0], [1], [0, 0, 1, 1], [], []>} : vector<64x4xf32>, vector<4x96xf32>, vector<64x96xf32> -> vector<64x96xf32>
    %c0_67 = arith.constant 0 : index
    %c0_68 = arith.constant 0 : index
    %271 = vector.load %arg9[%c0_67, %c0_68] : memref<1x96xf32, #tpu.memory_space<vmem>>, vector<1x96xf32>
    %272 = vector.broadcast %271 : vector<1x96xf32> to vector<64x96xf32>
    %273 = arith.addf %270, %272 : vector<64x96xf32>
    %c0_69 = arith.constant 0 : index
    %c0_70 = arith.constant 0 : index
    %274 = vector.load %arg14[%c0_69, %c0_70] : memref<64x96xf32, #tpu.memory_space<vmem>>, vector<64x96xf32>
    tpu.vector_store %arg14[%c0_69, %c0_70], %273 {strides = array<i32>} : memref<64x96xf32, #tpu.memory_space<vmem>>, vector<64x96xf32>,
    %c0_71 = arith.constant 0 : index
    %c0_72 = arith.constant 0 : index
    %275 = vector.load %arg8[%c0_71, %c0_72] : memref<32x96xf32, #tpu.memory_space<vmem>>, vector<32x96xf32>
    %c0_73 = arith.constant 0 : index
    %c0_74 = arith.constant 0 : index
    %276 = vector.load %arg10[%c0_73, %c0_74] : memref<1x32xf32, #tpu.memory_space<vmem>>, vector<1x32xf32>
    %c0_i32_75 = arith.constant 0 : i32
    %c8_i32_76 = arith.constant 8 : i32
    %277 = arith.muli %c0_i32_75, %c8_i32_76 : i32
    %278 = arith.index_cast %277 : i32 to index
    %c0_77 = arith.constant 0 : index
    %279 = vector.load %arg14[%278, %c0_77] : memref<64x96xf32, #tpu.memory_space<vmem>>, vector<8x96xf32>
    %cst_78 = arith.constant dense<0.000000e+00> : vector<8x96xf32>
    %280 = tpu.matmul %267, %275, %cst_78 {dimension_numbers = #tpu.dot_dimension_numbers<[1], [0], [0], [1], [0, 0, 1, 1], [], []>} : vector<8x32xf32>, vector<32x96xf32>, vector<8x96xf32> -> vector<8x96xf32>
    %281 = vector.extract_strided_slice %279 {offsets = [0, 0], sizes = [8, 32], strides = [1, 1]} : vector<8x96xf32> to vector<8x32xf32>
    %282 = vector.extract_strided_slice %280 {offsets = [0, 0], sizes = [8, 32], strides = [1, 1]} : vector<8x96xf32> to vector<8x32xf32>
    %283 = arith.addf %281, %282 : vector<8x32xf32>
    %284 = arith.negf %283 : vector<8x32xf32>
    %285 = math.exp %284 : vector<8x32xf32>
    %cst_79 = arith.constant 1.000000e+00 : f32
    %286 = vector.broadcast %cst_79 : f32 to vector<8x32xf32>
    %287 = arith.addf %286, %285 : vector<8x32xf32>
    %288 = arith.divf %286, %287 : vector<8x32xf32>
    %289 = vector.extract_strided_slice %279 {offsets = [0, 32], sizes = [8, 32], strides = [1, 1]} : vector<8x96xf32> to vector<8x32xf32>
    %290 = vector.extract_strided_slice %280 {offsets = [0, 32], sizes = [8, 32], strides = [1, 1]} : vector<8x96xf32> to vector<8x32xf32>
    %291 = arith.addf %289, %290 : vector<8x32xf32>
    %292 = arith.negf %291 : vector<8x32xf32>
    %293 = math.exp %292 : vector<8x32xf32>
    %cst_80 = arith.constant 1.000000e+00 : f32
    %294 = vector.broadcast %cst_80 : f32 to vector<8x32xf32>
    %295 = arith.addf %294, %293 : vector<8x32xf32>
    %296 = arith.divf %294, %295 : vector<8x32xf32>
    %297 = vector.extract_strided_slice %279 {offsets = [0, 64], sizes = [8, 32], strides = [1, 1]} : vector<8x96xf32> to vector<8x32xf32>
    %298 = vector.extract_strided_slice %280 {offsets = [0, 64], sizes = [8, 32], strides = [1, 1]} : vector<8x96xf32> to vector<8x32xf32>
    %299 = vector.broadcast %276 : vector<1x32xf32> to vector<8x32xf32>
    %300 = arith.addf %298, %299 : vector<8x32xf32>
    %301 = arith.mulf %288, %300 : vector<8x32xf32>
    %302 = arith.addf %297, %301 : vector<8x32xf32>
    %303 = math.tanh %302 : vector<8x32xf32>
    %cst_81 = arith.constant 1.000000e+00 : f32
    %304 = vector.broadcast %cst_81 : f32 to vector<8x32xf32>
    %305 = arith.subf %304, %296 : vector<8x32xf32>
    %306 = arith.mulf %305, %303 : vector<8x32xf32>
    %307 = arith.mulf %296, %267 : vector<8x32xf32>
    %308 = arith.addf %306, %307 : vector<8x32xf32>
    %c8_i32_82 = arith.constant 8 : i32
    %309 = arith.muli %c0_i32_75, %c8_i32_82 : i32
    %310 = arith.index_cast %309 : i32 to index
    %c0_83 = arith.constant 0 : index
    %311 = vector.load %arg15[%310, %c0_83] : memref<64x32xf32, #tpu.memory_space<vmem>>, vector<8x32xf32>
    tpu.vector_store %arg15[%310, %c0_83], %308 {strides = array<i32>} : memref<64x32xf32, #tpu.memory_space<vmem>>, vector<8x32xf32>,
    %c1_i32_84 = arith.constant 1 : i32
    %c8_i32_85 = arith.constant 8 : i32
    %312 = arith.muli %c1_i32_84, %c8_i32_85 : i32
    %313 = arith.index_cast %312 : i32 to index
    %c0_86 = arith.constant 0 : index
    %314 = vector.load %arg14[%313, %c0_86] : memref<64x96xf32, #tpu.memory_space<vmem>>, vector<8x96xf32>
    %cst_87 = arith.constant dense<0.000000e+00> : vector<8x96xf32>
    %315 = tpu.matmul %308, %275, %cst_87 {dimension_numbers = #tpu.dot_dimension_numbers<[1], [0], [0], [1], [0, 0, 1, 1], [], []>} : vector<8x32xf32>, vector<32x96xf32>, vector<8x96xf32> -> vector<8x96xf32>
    %316 = vector.extract_strided_slice %314 {offsets = [0, 0], sizes = [8, 32], strides = [1, 1]} : vector<8x96xf32> to vector<8x32xf32>
    %317 = vector.extract_strided_slice %315 {offsets = [0, 0], sizes = [8, 32], strides = [1, 1]} : vector<8x96xf32> to vector<8x32xf32>
    %318 = arith.addf %316, %317 : vector<8x32xf32>
    %319 = arith.negf %318 : vector<8x32xf32>
    %320 = math.exp %319 : vector<8x32xf32>
    %cst_88 = arith.constant 1.000000e+00 : f32
    %321 = vector.broadcast %cst_88 : f32 to vector<8x32xf32>
    %322 = arith.addf %321, %320 : vector<8x32xf32>
    %323 = arith.divf %321, %322 : vector<8x32xf32>
    %324 = vector.extract_strided_slice %314 {offsets = [0, 32], sizes = [8, 32], strides = [1, 1]} : vector<8x96xf32> to vector<8x32xf32>
    %325 = vector.extract_strided_slice %315 {offsets = [0, 32], sizes = [8, 32], strides = [1, 1]} : vector<8x96xf32> to vector<8x32xf32>
    %326 = arith.addf %324, %325 : vector<8x32xf32>
    %327 = arith.negf %326 : vector<8x32xf32>
    %328 = math.exp %327 : vector<8x32xf32>
    %cst_89 = arith.constant 1.000000e+00 : f32
    %329 = vector.broadcast %cst_89 : f32 to vector<8x32xf32>
    %330 = arith.addf %329, %328 : vector<8x32xf32>
    %331 = arith.divf %329, %330 : vector<8x32xf32>
    %332 = vector.extract_strided_slice %314 {offsets = [0, 64], sizes = [8, 32], strides = [1, 1]} : vector<8x96xf32> to vector<8x32xf32>
    %333 = vector.extract_strided_slice %315 {offsets = [0, 64], sizes = [8, 32], strides = [1, 1]} : vector<8x96xf32> to vector<8x32xf32>
    %334 = vector.broadcast %276 : vector<1x32xf32> to vector<8x32xf32>
    %335 = arith.addf %333, %334 : vector<8x32xf32>
    %336 = arith.mulf %323, %335 : vector<8x32xf32>
    %337 = arith.addf %332, %336 : vector<8x32xf32>
    %338 = math.tanh %337 : vector<8x32xf32>
    %cst_90 = arith.constant 1.000000e+00 : f32
    %339 = vector.broadcast %cst_90 : f32 to vector<8x32xf32>
    %340 = arith.subf %339, %331 : vector<8x32xf32>
    %341 = arith.mulf %340, %338 : vector<8x32xf32>
    %342 = arith.mulf %331, %308 : vector<8x32xf32>
    %343 = arith.addf %341, %342 : vector<8x32xf32>
    %c8_i32_91 = arith.constant 8 : i32
    %344 = arith.muli %c1_i32_84, %c8_i32_91 : i32
    %345 = arith.index_cast %344 : i32 to index
    %c0_92 = arith.constant 0 : index
    %346 = vector.load %arg15[%345, %c0_92] : memref<64x32xf32, #tpu.memory_space<vmem>>, vector<8x32xf32>
    tpu.vector_store %arg15[%345, %c0_92], %343 {strides = array<i32>} : memref<64x32xf32, #tpu.memory_space<vmem>>, vector<8x32xf32>,
    %c2_i32_93 = arith.constant 2 : i32
    %c8_i32_94 = arith.constant 8 : i32
    %347 = arith.muli %c2_i32_93, %c8_i32_94 : i32
    %348 = arith.index_cast %347 : i32 to index
    %c0_95 = arith.constant 0 : index
    %349 = vector.load %arg14[%348, %c0_95] : memref<64x96xf32, #tpu.memory_space<vmem>>, vector<8x96xf32>
    %cst_96 = arith.constant dense<0.000000e+00> : vector<8x96xf32>
    %350 = tpu.matmul %343, %275, %cst_96 {dimension_numbers = #tpu.dot_dimension_numbers<[1], [0], [0], [1], [0, 0, 1, 1], [], []>} : vector<8x32xf32>, vector<32x96xf32>, vector<8x96xf32> -> vector<8x96xf32>
    %351 = vector.extract_strided_slice %349 {offsets = [0, 0], sizes = [8, 32], strides = [1, 1]} : vector<8x96xf32> to vector<8x32xf32>
    %352 = vector.extract_strided_slice %350 {offsets = [0, 0], sizes = [8, 32], strides = [1, 1]} : vector<8x96xf32> to vector<8x32xf32>
    %353 = arith.addf %351, %352 : vector<8x32xf32>
    %354 = arith.negf %353 : vector<8x32xf32>
    %355 = math.exp %354 : vector<8x32xf32>
    %cst_97 = arith.constant 1.000000e+00 : f32
    %356 = vector.broadcast %cst_97 : f32 to vector<8x32xf32>
    %357 = arith.addf %356, %355 : vector<8x32xf32>
    %358 = arith.divf %356, %357 : vector<8x32xf32>
    %359 = vector.extract_strided_slice %349 {offsets = [0, 32], sizes = [8, 32], strides = [1, 1]} : vector<8x96xf32> to vector<8x32xf32>
    %360 = vector.extract_strided_slice %350 {offsets = [0, 32], sizes = [8, 32], strides = [1, 1]} : vector<8x96xf32> to vector<8x32xf32>
    %361 = arith.addf %359, %360 : vector<8x32xf32>
    %362 = arith.negf %361 : vector<8x32xf32>
    %363 = math.exp %362 : vector<8x32xf32>
    %cst_98 = arith.constant 1.000000e+00 : f32
    %364 = vector.broadcast %cst_98 : f32 to vector<8x32xf32>
    %365 = arith.addf %364, %363 : vector<8x32xf32>
    %366 = arith.divf %364, %365 : vector<8x32xf32>
    %367 = vector.extract_strided_slice %349 {offsets = [0, 64], sizes = [8, 32], strides = [1, 1]} : vector<8x96xf32> to vector<8x32xf32>
    %368 = vector.extract_strided_slice %350 {offsets = [0, 64], sizes = [8, 32], strides = [1, 1]} : vector<8x96xf32> to vector<8x32xf32>
    %369 = vector.broadcast %276 : vector<1x32xf32> to vector<8x32xf32>
    %370 = arith.addf %368, %369 : vector<8x32xf32>
    %371 = arith.mulf %358, %370 : vector<8x32xf32>
    %372 = arith.addf %367, %371 : vector<8x32xf32>
    %373 = math.tanh %372 : vector<8x32xf32>
    %cst_99 = arith.constant 1.000000e+00 : f32
    %374 = vector.broadcast %cst_99 : f32 to vector<8x32xf32>
    %375 = arith.subf %374, %366 : vector<8x32xf32>
    %376 = arith.mulf %375, %373 : vector<8x32xf32>
    %377 = arith.mulf %366, %343 : vector<8x32xf32>
    %378 = arith.addf %376, %377 : vector<8x32xf32>
    %c8_i32_100 = arith.constant 8 : i32
    %379 = arith.muli %c2_i32_93, %c8_i32_100 : i32
    %380 = arith.index_cast %379 : i32 to index
    %c0_101 = arith.constant 0 : index
    %381 = vector.load %arg15[%380, %c0_101] : memref<64x32xf32, #tpu.memory_space<vmem>>, vector<8x32xf32>
    tpu.vector_store %arg15[%380, %c0_101], %378 {strides = array<i32>} : memref<64x32xf32, #tpu.memory_space<vmem>>, vector<8x32xf32>,
    %c3_i32_102 = arith.constant 3 : i32
    %c8_i32_103 = arith.constant 8 : i32
    %382 = arith.muli %c3_i32_102, %c8_i32_103 : i32
    %383 = arith.index_cast %382 : i32 to index
    %c0_104 = arith.constant 0 : index
    %384 = vector.load %arg14[%383, %c0_104] : memref<64x96xf32, #tpu.memory_space<vmem>>, vector<8x96xf32>
    %cst_105 = arith.constant dense<0.000000e+00> : vector<8x96xf32>
    %385 = tpu.matmul %378, %275, %cst_105 {dimension_numbers = #tpu.dot_dimension_numbers<[1], [0], [0], [1], [0, 0, 1, 1], [], []>} : vector<8x32xf32>, vector<32x96xf32>, vector<8x96xf32> -> vector<8x96xf32>
    %386 = vector.extract_strided_slice %384 {offsets = [0, 0], sizes = [8, 32], strides = [1, 1]} : vector<8x96xf32> to vector<8x32xf32>
    %387 = vector.extract_strided_slice %385 {offsets = [0, 0], sizes = [8, 32], strides = [1, 1]} : vector<8x96xf32> to vector<8x32xf32>
    %388 = arith.addf %386, %387 : vector<8x32xf32>
    %389 = arith.negf %388 : vector<8x32xf32>
    %390 = math.exp %389 : vector<8x32xf32>
    %cst_106 = arith.constant 1.000000e+00 : f32
    %391 = vector.broadcast %cst_106 : f32 to vector<8x32xf32>
    %392 = arith.addf %391, %390 : vector<8x32xf32>
    %393 = arith.divf %391, %392 : vector<8x32xf32>
    %394 = vector.extract_strided_slice %384 {offsets = [0, 32], sizes = [8, 32], strides = [1, 1]} : vector<8x96xf32> to vector<8x32xf32>
    %395 = vector.extract_strided_slice %385 {offsets = [0, 32], sizes = [8, 32], strides = [1, 1]} : vector<8x96xf32> to vector<8x32xf32>
    %396 = arith.addf %394, %395 : vector<8x32xf32>
    %397 = arith.negf %396 : vector<8x32xf32>
    %398 = math.exp %397 : vector<8x32xf32>
    %cst_107 = arith.constant 1.000000e+00 : f32
    %399 = vector.broadcast %cst_107 : f32 to vector<8x32xf32>
    %400 = arith.addf %399, %398 : vector<8x32xf32>
    %401 = arith.divf %399, %400 : vector<8x32xf32>
    %402 = vector.extract_strided_slice %384 {offsets = [0, 64], sizes = [8, 32], strides = [1, 1]} : vector<8x96xf32> to vector<8x32xf32>
    %403 = vector.extract_strided_slice %385 {offsets = [0, 64], sizes = [8, 32], strides = [1, 1]} : vector<8x96xf32> to vector<8x32xf32>
    %404 = vector.broadcast %276 : vector<1x32xf32> to vector<8x32xf32>
    %405 = arith.addf %403, %404 : vector<8x32xf32>
    %406 = arith.mulf %393, %405 : vector<8x32xf32>
    %407 = arith.addf %402, %406 : vector<8x32xf32>
    %408 = math.tanh %407 : vector<8x32xf32>
    %cst_108 = arith.constant 1.000000e+00 : f32
    %409 = vector.broadcast %cst_108 : f32 to vector<8x32xf32>
    %410 = arith.subf %409, %401 : vector<8x32xf32>
    %411 = arith.mulf %410, %408 : vector<8x32xf32>
    %412 = arith.mulf %401, %378 : vector<8x32xf32>
    %413 = arith.addf %411, %412 : vector<8x32xf32>
    %c8_i32_109 = arith.constant 8 : i32
    %414 = arith.muli %c3_i32_102, %c8_i32_109 : i32
    %415 = arith.index_cast %414 : i32 to index
    %c0_110 = arith.constant 0 : index
    %416 = vector.load %arg15[%415, %c0_110] : memref<64x32xf32, #tpu.memory_space<vmem>>, vector<8x32xf32>
    tpu.vector_store %arg15[%415, %c0_110], %413 {strides = array<i32>} : memref<64x32xf32, #tpu.memory_space<vmem>>, vector<8x32xf32>,
    %c4_i32_111 = arith.constant 4 : i32
    %c8_i32_112 = arith.constant 8 : i32
    %417 = arith.muli %c4_i32_111, %c8_i32_112 : i32
    %418 = arith.index_cast %417 : i32 to index
    %c0_113 = arith.constant 0 : index
    %419 = vector.load %arg14[%418, %c0_113] : memref<64x96xf32, #tpu.memory_space<vmem>>, vector<8x96xf32>
    %cst_114 = arith.constant dense<0.000000e+00> : vector<8x96xf32>
    %420 = tpu.matmul %413, %275, %cst_114 {dimension_numbers = #tpu.dot_dimension_numbers<[1], [0], [0], [1], [0, 0, 1, 1], [], []>} : vector<8x32xf32>, vector<32x96xf32>, vector<8x96xf32> -> vector<8x96xf32>
    %421 = vector.extract_strided_slice %419 {offsets = [0, 0], sizes = [8, 32], strides = [1, 1]} : vector<8x96xf32> to vector<8x32xf32>
    %422 = vector.extract_strided_slice %420 {offsets = [0, 0], sizes = [8, 32], strides = [1, 1]} : vector<8x96xf32> to vector<8x32xf32>
    %423 = arith.addf %421, %422 : vector<8x32xf32>
    %424 = arith.negf %423 : vector<8x32xf32>
    %425 = math.exp %424 : vector<8x32xf32>
    %cst_115 = arith.constant 1.000000e+00 : f32
    %426 = vector.broadcast %cst_115 : f32 to vector<8x32xf32>
    %427 = arith.addf %426, %425 : vector<8x32xf32>
    %428 = arith.divf %426, %427 : vector<8x32xf32>
    %429 = vector.extract_strided_slice %419 {offsets = [0, 32], sizes = [8, 32], strides = [1, 1]} : vector<8x96xf32> to vector<8x32xf32>
    %430 = vector.extract_strided_slice %420 {offsets = [0, 32], sizes = [8, 32], strides = [1, 1]} : vector<8x96xf32> to vector<8x32xf32>
    %431 = arith.addf %429, %430 : vector<8x32xf32>
    %432 = arith.negf %431 : vector<8x32xf32>
    %433 = math.exp %432 : vector<8x32xf32>
    %cst_116 = arith.constant 1.000000e+00 : f32
    %434 = vector.broadcast %cst_116 : f32 to vector<8x32xf32>
    %435 = arith.addf %434, %433 : vector<8x32xf32>
    %436 = arith.divf %434, %435 : vector<8x32xf32>
    %437 = vector.extract_strided_slice %419 {offsets = [0, 64], sizes = [8, 32], strides = [1, 1]} : vector<8x96xf32> to vector<8x32xf32>
    %438 = vector.extract_strided_slice %420 {offsets = [0, 64], sizes = [8, 32], strides = [1, 1]} : vector<8x96xf32> to vector<8x32xf32>
    %439 = vector.broadcast %276 : vector<1x32xf32> to vector<8x32xf32>
    %440 = arith.addf %438, %439 : vector<8x32xf32>
    %441 = arith.mulf %428, %440 : vector<8x32xf32>
    %442 = arith.addf %437, %441 : vector<8x32xf32>
    %443 = math.tanh %442 : vector<8x32xf32>
    %cst_117 = arith.constant 1.000000e+00 : f32
    %444 = vector.broadcast %cst_117 : f32 to vector<8x32xf32>
    %445 = arith.subf %444, %436 : vector<8x32xf32>
    %446 = arith.mulf %445, %443 : vector<8x32xf32>
    %447 = arith.mulf %436, %413 : vector<8x32xf32>
    %448 = arith.addf %446, %447 : vector<8x32xf32>
    %c8_i32_118 = arith.constant 8 : i32
    %449 = arith.muli %c4_i32_111, %c8_i32_118 : i32
    %450 = arith.index_cast %449 : i32 to index
    %c0_119 = arith.constant 0 : index
    %451 = vector.load %arg15[%450, %c0_119] : memref<64x32xf32, #tpu.memory_space<vmem>>, vector<8x32xf32>
    tpu.vector_store %arg15[%450, %c0_119], %448 {strides = array<i32>} : memref<64x32xf32, #tpu.memory_space<vmem>>, vector<8x32xf32>,
    %c5_i32_120 = arith.constant 5 : i32
    %c8_i32_121 = arith.constant 8 : i32
    %452 = arith.muli %c5_i32_120, %c8_i32_121 : i32
    %453 = arith.index_cast %452 : i32 to index
    %c0_122 = arith.constant 0 : index
    %454 = vector.load %arg14[%453, %c0_122] : memref<64x96xf32, #tpu.memory_space<vmem>>, vector<8x96xf32>
    %cst_123 = arith.constant dense<0.000000e+00> : vector<8x96xf32>
    %455 = tpu.matmul %448, %275, %cst_123 {dimension_numbers = #tpu.dot_dimension_numbers<[1], [0], [0], [1], [0, 0, 1, 1], [], []>} : vector<8x32xf32>, vector<32x96xf32>, vector<8x96xf32> -> vector<8x96xf32>
    %456 = vector.extract_strided_slice %454 {offsets = [0, 0], sizes = [8, 32], strides = [1, 1]} : vector<8x96xf32> to vector<8x32xf32>
    %457 = vector.extract_strided_slice %455 {offsets = [0, 0], sizes = [8, 32], strides = [1, 1]} : vector<8x96xf32> to vector<8x32xf32>
    %458 = arith.addf %456, %457 : vector<8x32xf32>
    %459 = arith.negf %458 : vector<8x32xf32>
    %460 = math.exp %459 : vector<8x32xf32>
    %cst_124 = arith.constant 1.000000e+00 : f32
    %461 = vector.broadcast %cst_124 : f32 to vector<8x32xf32>
    %462 = arith.addf %461, %460 : vector<8x32xf32>
    %463 = arith.divf %461, %462 : vector<8x32xf32>
    %464 = vector.extract_strided_slice %454 {offsets = [0, 32], sizes = [8, 32], strides = [1, 1]} : vector<8x96xf32> to vector<8x32xf32>
    %465 = vector.extract_strided_slice %455 {offsets = [0, 32], sizes = [8, 32], strides = [1, 1]} : vector<8x96xf32> to vector<8x32xf32>
    %466 = arith.addf %464, %465 : vector<8x32xf32>
    %467 = arith.negf %466 : vector<8x32xf32>
    %468 = math.exp %467 : vector<8x32xf32>
    %cst_125 = arith.constant 1.000000e+00 : f32
    %469 = vector.broadcast %cst_125 : f32 to vector<8x32xf32>
    %470 = arith.addf %469, %468 : vector<8x32xf32>
    %471 = arith.divf %469, %470 : vector<8x32xf32>
    %472 = vector.extract_strided_slice %454 {offsets = [0, 64], sizes = [8, 32], strides = [1, 1]} : vector<8x96xf32> to vector<8x32xf32>
    %473 = vector.extract_strided_slice %455 {offsets = [0, 64], sizes = [8, 32], strides = [1, 1]} : vector<8x96xf32> to vector<8x32xf32>
    %474 = vector.broadcast %276 : vector<1x32xf32> to vector<8x32xf32>
    %475 = arith.addf %473, %474 : vector<8x32xf32>
    %476 = arith.mulf %463, %475 : vector<8x32xf32>
    %477 = arith.addf %472, %476 : vector<8x32xf32>
    %478 = math.tanh %477 : vector<8x32xf32>
    %cst_126 = arith.constant 1.000000e+00 : f32
    %479 = vector.broadcast %cst_126 : f32 to vector<8x32xf32>
    %480 = arith.subf %479, %471 : vector<8x32xf32>
    %481 = arith.mulf %480, %478 : vector<8x32xf32>
    %482 = arith.mulf %471, %448 : vector<8x32xf32>
    %483 = arith.addf %481, %482 : vector<8x32xf32>
    %c8_i32_127 = arith.constant 8 : i32
    %484 = arith.muli %c5_i32_120, %c8_i32_127 : i32
    %485 = arith.index_cast %484 : i32 to index
    %c0_128 = arith.constant 0 : index
    %486 = vector.load %arg15[%485, %c0_128] : memref<64x32xf32, #tpu.memory_space<vmem>>, vector<8x32xf32>
    tpu.vector_store %arg15[%485, %c0_128], %483 {strides = array<i32>} : memref<64x32xf32, #tpu.memory_space<vmem>>, vector<8x32xf32>,
    %c6_i32_129 = arith.constant 6 : i32
    %c8_i32_130 = arith.constant 8 : i32
    %487 = arith.muli %c6_i32_129, %c8_i32_130 : i32
    %488 = arith.index_cast %487 : i32 to index
    %c0_131 = arith.constant 0 : index
    %489 = vector.load %arg14[%488, %c0_131] : memref<64x96xf32, #tpu.memory_space<vmem>>, vector<8x96xf32>
    %cst_132 = arith.constant dense<0.000000e+00> : vector<8x96xf32>
    %490 = tpu.matmul %483, %275, %cst_132 {dimension_numbers = #tpu.dot_dimension_numbers<[1], [0], [0], [1], [0, 0, 1, 1], [], []>} : vector<8x32xf32>, vector<32x96xf32>, vector<8x96xf32> -> vector<8x96xf32>
    %491 = vector.extract_strided_slice %489 {offsets = [0, 0], sizes = [8, 32], strides = [1, 1]} : vector<8x96xf32> to vector<8x32xf32>
    %492 = vector.extract_strided_slice %490 {offsets = [0, 0], sizes = [8, 32], strides = [1, 1]} : vector<8x96xf32> to vector<8x32xf32>
    %493 = arith.addf %491, %492 : vector<8x32xf32>
    %494 = arith.negf %493 : vector<8x32xf32>
    %495 = math.exp %494 : vector<8x32xf32>
    %cst_133 = arith.constant 1.000000e+00 : f32
    %496 = vector.broadcast %cst_133 : f32 to vector<8x32xf32>
    %497 = arith.addf %496, %495 : vector<8x32xf32>
    %498 = arith.divf %496, %497 : vector<8x32xf32>
    %499 = vector.extract_strided_slice %489 {offsets = [0, 32], sizes = [8, 32], strides = [1, 1]} : vector<8x96xf32> to vector<8x32xf32>
    %500 = vector.extract_strided_slice %490 {offsets = [0, 32], sizes = [8, 32], strides = [1, 1]} : vector<8x96xf32> to vector<8x32xf32>
    %501 = arith.addf %499, %500 : vector<8x32xf32>
    %502 = arith.negf %501 : vector<8x32xf32>
    %503 = math.exp %502 : vector<8x32xf32>
    %cst_134 = arith.constant 1.000000e+00 : f32
    %504 = vector.broadcast %cst_134 : f32 to vector<8x32xf32>
    %505 = arith.addf %504, %503 : vector<8x32xf32>
    %506 = arith.divf %504, %505 : vector<8x32xf32>
    %507 = vector.extract_strided_slice %489 {offsets = [0, 64], sizes = [8, 32], strides = [1, 1]} : vector<8x96xf32> to vector<8x32xf32>
    %508 = vector.extract_strided_slice %490 {offsets = [0, 64], sizes = [8, 32], strides = [1, 1]} : vector<8x96xf32> to vector<8x32xf32>
    %509 = vector.broadcast %276 : vector<1x32xf32> to vector<8x32xf32>
    %510 = arith.addf %508, %509 : vector<8x32xf32>
    %511 = arith.mulf %498, %510 : vector<8x32xf32>
    %512 = arith.addf %507, %511 : vector<8x32xf32>
    %513 = math.tanh %512 : vector<8x32xf32>
    %cst_135 = arith.constant 1.000000e+00 : f32
    %514 = vector.broadcast %cst_135 : f32 to vector<8x32xf32>
    %515 = arith.subf %514, %506 : vector<8x32xf32>
    %516 = arith.mulf %515, %513 : vector<8x32xf32>
    %517 = arith.mulf %506, %483 : vector<8x32xf32>
    %518 = arith.addf %516, %517 : vector<8x32xf32>
    %c8_i32_136 = arith.constant 8 : i32
    %519 = arith.muli %c6_i32_129, %c8_i32_136 : i32
    %520 = arith.index_cast %519 : i32 to index
    %c0_137 = arith.constant 0 : index
    %521 = vector.load %arg15[%520, %c0_137] : memref<64x32xf32, #tpu.memory_space<vmem>>, vector<8x32xf32>
    tpu.vector_store %arg15[%520, %c0_137], %518 {strides = array<i32>} : memref<64x32xf32, #tpu.memory_space<vmem>>, vector<8x32xf32>,
    %c7_i32_138 = arith.constant 7 : i32
    %c8_i32_139 = arith.constant 8 : i32
    %522 = arith.muli %c7_i32_138, %c8_i32_139 : i32
    %523 = arith.index_cast %522 : i32 to index
    %c0_140 = arith.constant 0 : index
    %524 = vector.load %arg14[%523, %c0_140] : memref<64x96xf32, #tpu.memory_space<vmem>>, vector<8x96xf32>
    %cst_141 = arith.constant dense<0.000000e+00> : vector<8x96xf32>
    %525 = tpu.matmul %518, %275, %cst_141 {dimension_numbers = #tpu.dot_dimension_numbers<[1], [0], [0], [1], [0, 0, 1, 1], [], []>} : vector<8x32xf32>, vector<32x96xf32>, vector<8x96xf32> -> vector<8x96xf32>
    %526 = vector.extract_strided_slice %524 {offsets = [0, 0], sizes = [8, 32], strides = [1, 1]} : vector<8x96xf32> to vector<8x32xf32>
    %527 = vector.extract_strided_slice %525 {offsets = [0, 0], sizes = [8, 32], strides = [1, 1]} : vector<8x96xf32> to vector<8x32xf32>
    %528 = arith.addf %526, %527 : vector<8x32xf32>
    %529 = arith.negf %528 : vector<8x32xf32>
    %530 = math.exp %529 : vector<8x32xf32>
    %cst_142 = arith.constant 1.000000e+00 : f32
    %531 = vector.broadcast %cst_142 : f32 to vector<8x32xf32>
    %532 = arith.addf %531, %530 : vector<8x32xf32>
    %533 = arith.divf %531, %532 : vector<8x32xf32>
    %534 = vector.extract_strided_slice %524 {offsets = [0, 32], sizes = [8, 32], strides = [1, 1]} : vector<8x96xf32> to vector<8x32xf32>
    %535 = vector.extract_strided_slice %525 {offsets = [0, 32], sizes = [8, 32], strides = [1, 1]} : vector<8x96xf32> to vector<8x32xf32>
    %536 = arith.addf %534, %535 : vector<8x32xf32>
    %537 = arith.negf %536 : vector<8x32xf32>
    %538 = math.exp %537 : vector<8x32xf32>
    %cst_143 = arith.constant 1.000000e+00 : f32
    %539 = vector.broadcast %cst_143 : f32 to vector<8x32xf32>
    %540 = arith.addf %539, %538 : vector<8x32xf32>
    %541 = arith.divf %539, %540 : vector<8x32xf32>
    %542 = vector.extract_strided_slice %524 {offsets = [0, 64], sizes = [8, 32], strides = [1, 1]} : vector<8x96xf32> to vector<8x32xf32>
    %543 = vector.extract_strided_slice %525 {offsets = [0, 64], sizes = [8, 32], strides = [1, 1]} : vector<8x96xf32> to vector<8x32xf32>
    %544 = vector.broadcast %276 : vector<1x32xf32> to vector<8x32xf32>
    %545 = arith.addf %543, %544 : vector<8x32xf32>
    %546 = arith.mulf %533, %545 : vector<8x32xf32>
    %547 = arith.addf %542, %546 : vector<8x32xf32>
    %548 = math.tanh %547 : vector<8x32xf32>
    %cst_144 = arith.constant 1.000000e+00 : f32
    %549 = vector.broadcast %cst_144 : f32 to vector<8x32xf32>
    %550 = arith.subf %549, %541 : vector<8x32xf32>
    %551 = arith.mulf %550, %548 : vector<8x32xf32>
    %552 = arith.mulf %541, %518 : vector<8x32xf32>
    %553 = arith.addf %551, %552 : vector<8x32xf32>
    %c8_i32_145 = arith.constant 8 : i32
    %554 = arith.muli %c7_i32_138, %c8_i32_145 : i32
    %555 = arith.index_cast %554 : i32 to index
    %c0_146 = arith.constant 0 : index
    %556 = vector.load %arg15[%555, %c0_146] : memref<64x32xf32, #tpu.memory_space<vmem>>, vector<8x32xf32>
    tpu.vector_store %arg15[%555, %c0_146], %553 {strides = array<i32>} : memref<64x32xf32, #tpu.memory_space<vmem>>, vector<8x32xf32>,
    %c8_i32_147 = arith.constant 8 : i32
    %c0_148 = arith.constant 0 : index
    %c0_149 = arith.constant 0 : index
    %557 = vector.load %arg15[%c0_148, %c0_149] : memref<64x32xf32, #tpu.memory_space<vmem>>, vector<64x32xf32>
    %c0_150 = arith.constant 0 : index
    %c0_151 = arith.constant 0 : index
    %558 = vector.load %arg11[%c0_150, %c0_151] : memref<32x4xf32, #tpu.memory_space<vmem>>, vector<32x4xf32>
    %cst_152 = arith.constant dense<0.000000e+00> : vector<64x4xf32>
    %559 = tpu.matmul %557, %558, %cst_152 {dimension_numbers = #tpu.dot_dimension_numbers<[1], [0], [0], [1], [0, 0, 1, 1], [], []>} : vector<64x32xf32>, vector<32x4xf32>, vector<64x4xf32> -> vector<64x4xf32>
    %c0_153 = arith.constant 0 : index
    %c0_154 = arith.constant 0 : index
    %560 = vector.load %arg12[%c0_153, %c0_154] : memref<1x4xf32, #tpu.memory_space<vmem>>, vector<1x4xf32>
    %561 = vector.broadcast %560 : vector<1x4xf32> to vector<64x4xf32>
    %562 = arith.addf %559, %561 : vector<64x4xf32>
    %c0_155 = arith.constant 0 : index
    %c0_156 = arith.constant 0 : index
    %563 = vector.load %arg13[%c0_155, %c0_156] : memref<64x4xf32, #tpu.memory_space<vmem>>, vector<64x4xf32>
    tpu.vector_store %arg13[%c0_155, %c0_156], %562 {strides = array<i32>} : memref<64x4xf32, #tpu.memory_space<vmem>>, vector<64x4xf32>,
    return
  }
}

</mosaic_0001>

<llo_original>
// kernel: netg_forward.1
$region0: #{netg_forward.1}
  #allocation0 [shape = 'u32[]', space=smem, size = 0x4, offset = 0x4, fixed_abs, tag = 'smem constant byte address 0x4 - core index']
  #allocation1 [shape = 'u32[144,128]{1,0:T(1,128)}', space=vmem, size = 0x12000, scoped, tag = 'internal scratch']
  #allocation2 [shape = 'f32[64,96]{1,0:T(8,128)}', space=vmem, size = 0x8000, scoped, tag = 'scratch operand']
  #allocation3 [shape = 'f32[64,32]{1,0:T(8,128)}', space=vmem, size = 0x8000, scoped, tag = 'scratch operand']
  %s0 = inlined_call_operand.vmem [shape: f32[64,4], index: 0, kind: input, shape index: {}]
  %s1 = inlined_call_operand.vmem [shape: f32[64,4], index: 1, kind: input, shape index: {}]
  %s2 = inlined_call_operand.vmem [shape: f32[8,32], index: 2, kind: input, shape index: {}]
  %s3 = inlined_call_operand.vmem [shape: f32[4,96], index: 3, kind: input, shape index: {}]
  %s4 = inlined_call_operand.vmem [shape: f32[32,96], index: 4, kind: input, shape index: {}]
  %s5 = inlined_call_operand.vmem [shape: f32[1,96], index: 5, kind: input, shape index: {}]
  %s6 = inlined_call_operand.vmem [shape: f32[1,32], index: 6, kind: input, shape index: {}]
  %s7 = inlined_call_operand.vmem [shape: f32[4,96], index: 7, kind: input, shape index: {}]
  %s8 = inlined_call_operand.vmem [shape: f32[32,96], index: 8, kind: input, shape index: {}]
  %s9 = inlined_call_operand.vmem [shape: f32[1,96], index: 9, kind: input, shape index: {}]
  %s10 = inlined_call_operand.vmem [shape: f32[1,32], index: 10, kind: input, shape index: {}]
  %s11 = inlined_call_operand.vmem [shape: f32[32,4], index: 11, kind: input, shape index: {}]
  %s12 = inlined_call_operand.vmem [shape: f32[1,4], index: 12, kind: input, shape index: {}]
  %s13 = inlined_call_operand.vmem [shape: f32[64,4], index: 13, kind: output, shape index: {}]
  %s14 = sld [smem:[#allocation0]]
  $region62: #{netg_forward.1} parent=0
    _
  %s16 = ssub.s32 1, %s14
  %s17 = scalar_select 0, %s16, %s14
  // Predicated region
  $region2: #{netg_forward.1} parent=0 // pred_check
    _
  $region3: #{netg_forward.1} parent=0 // pred_check_branch
    %19 = sbr.rel (0) target = $region5
  $region4: #{netg_forward.1} parent=0 // pred_region
    _
  $region5: #{netg_forward.1} parent=0 // pred_fallthru
    _
  // Predicated region
  $region6: #{netg_forward.1} parent=0 // pred_check
    _
  $region7: #{netg_forward.1} parent=0 // pred_check_branch
    %21 = sbr.rel (0) target = $region9
  $region8: #{netg_forward.1} parent=0 // pred_region
    _
  $region9: #{netg_forward.1} parent=0 // pred_fallthru
    _
  // Predicated region
  $region10: #{netg_forward.1} parent=0 // pred_check
    _
  $region11: #{netg_forward.1} parent=0 // pred_check_branch
    %23 = sbr.rel (0) target = $region13
  $region12: #{netg_forward.1} parent=0 // pred_region
    _
  $region13: #{netg_forward.1} parent=0 // pred_fallthru
    _
  // Predicated region
  $region14: #{netg_forward.1} parent=0 // pred_check
    _
  $region15: #{netg_forward.1} parent=0 // pred_check_branch
    %25 = sbr.rel (0) target = $region17
  $region16: #{netg_forward.1} parent=0 // pred_region
    _
  $region17: #{netg_forward.1} parent=0 // pred_fallthru
    _
  // Predicated region
  $region18: #{netg_forward.1} parent=0 // pred_check
    _
  $region19: #{netg_forward.1} parent=0 // pred_check_branch
    %27 = sbr.rel (0) target = $region21
  $region20: #{netg_forward.1} parent=0 // pred_region
    _
  $region21: #{netg_forward.1} parent=0 // pred_fallthru
    _
  // Predicated region
  $region22: #{netg_forward.1} parent=0 // pred_check
    _
  $region23: #{netg_forward.1} parent=0 // pred_check_branch
    %29 = sbr.rel (0) target = $region25
  $region24: #{netg_forward.1} parent=0 // pred_region
    _
  $region25: #{netg_forward.1} parent=0 // pred_fallthru
    _
  // Predicated region
  $region26: #{netg_forward.1} parent=0 // pred_check
    _
  $region27: #{netg_forward.1} parent=0 // pred_check_branch
    %31 = sbr.rel (0) target = $region29
  $region28: #{netg_forward.1} parent=0 // pred_region
    _
  $region29: #{netg_forward.1} parent=0 // pred_fallthru
    _
  // Predicated region
  $region30: #{netg_forward.1} parent=0 // pred_check
    _
  $region31: #{netg_forward.1} parent=0 // pred_check_branch
    %33 = sbr.rel (0) target = $region33
  $region32: #{netg_forward.1} parent=0 // pred_region
    _
  $region33: #{netg_forward.1} parent=0 // pred_fallthru
    _
  // Predicated region
  $region34: #{netg_forward.1} parent=0 // pred_check
    _
  $region35: #{netg_forward.1} parent=0 // pred_check_branch
    %35 = sbr.rel (0) target = $region37
  $region36: #{netg_forward.1} parent=0 // pred_region
    _
  $region37: #{netg_forward.1} parent=0 // pred_fallthru
    _
  // Predicated region
  $region38: #{netg_forward.1} parent=0 // pred_check
    _
  $region39: #{netg_forward.1} parent=0 // pred_check_branch
    %37 = sbr.rel (0) target = $region41
  $region40: #{netg_forward.1} parent=0 // pred_region
    _
  $region41: #{netg_forward.1} parent=0 // pred_fallthru
    _
  // Predicated region
  $region42: #{netg_forward.1} parent=0 // pred_check
    _
  $region43: #{netg_forward.1} parent=0 // pred_check_branch
    %39 = sbr.rel (0) target = $region45
  $region44: #{netg_forward.1} parent=0 // pred_region
    _
  $region45: #{netg_forward.1} parent=0 // pred_fallthru
    _
  // Predicated region
  $region46: #{netg_forward.1} parent=0 // pred_check
    _
  $region47: #{netg_forward.1} parent=0 // pred_check_branch
    %41 = sbr.rel (0) target = $region49
  $region48: #{netg_forward.1} parent=0 // pred_region
    _
  $region49: #{netg_forward.1} parent=0 // pred_fallthru
    _
  // Predicated region
  $region50: #{netg_forward.1} parent=0 // pred_check
    _
  $region51: #{netg_forward.1} parent=0 // pred_check_branch
    %43 = sbr.rel (0) target = $region53
  $region52: #{netg_forward.1} parent=0 // pred_region
    _
  $region53: #{netg_forward.1} parent=0 // pred_fallthru
    _
  %v44 = vld [vmem:[%s0] sm:$0xff]
  %v45 = vld [vmem:[%s0 + $0x8] sm:$0xff]
  %v46 = vld [vmem:[%s0 + $0x10] sm:$0xff]
  %v47 = vld [vmem:[%s0 + $0x18] sm:$0xff]
  %v48 = vld [vmem:[%s0 + $0x20] sm:$0xff]
  %v49 = vld [vmem:[%s0 + $0x28] sm:$0xff]
  %v50 = vld [vmem:[%s0 + $0x30] sm:$0xff]
  %v51 = vld [vmem:[%s0 + $0x38] sm:$0xff]
  %v52 = vld [vmem:[%s3] sm:$0xf]
  %v53 = vld [vmem:[%s5] sm:$0x1]
  %v55 = vlaneseq
  %v56 = vshrl.u32 %v55, 7
  %v57 = vsub.s32 0, %v56
  %v58 = vrot.slane %v53, %v57
  %vm60 = vcmask 31744
  %v62 = vsel %vm60, %v44, 0
  %v65 = vsel %vm60, %v45, 0
  %v68 = vsel %vm60, %v46, 0
  %v71 = vsel %vm60, %v47, 0
  %v74 = vsel %vm60, %v48, 0
  %v77 = vsel %vm60, %v49, 0
  %v80 = vsel %vm60, %v50, 0
  %v83 = vsel %vm60, %v51, 0
  %vm85 = vcmask 1043456
  %v87 = vsel %vm85, %v52, 0
  %89 = vmatprep.subr.mxu0 0.0
  %90 = vmatpush1.msra.mxu0 %v87
  %91 = vmatprep.subr.mxu0 0.0
  %92 = vmatpush1.msra.mxu0 0.0
  %93 = vmatprep.subr.mxu0 0.0
  %94 = vmatpush1.msra.mxu0 0.0
  %95 = vmatprep.subr.mxu0 0.0
  %96 = vmatpush1.msra.mxu0 0.0
  %97 = vmatprep.subr.mxu0 0.0
  %98 = vmatpush1.msra.mxu0 0.0
  %99 = vmatprep.subr.mxu0 0.0
  %100 = vmatpush1.msra.mxu0 0.0
  %101 = vmatprep.subr.mxu0 0.0
  %102 = vmatpush1.msra.mxu0 0.0
  %103 = vmatprep.subr.mxu0 0.0
  %104 = vmatpush1.msra.mxu0 0.0
  %105 = vmatprep.subr.mxu0 0.0
  %106 = vmatpush1.msra.mxu0 0.0
  %107 = vmatprep.subr.mxu0 0.0
  %108 = vmatpush1.msra.mxu0 0.0
  %109 = vmatprep.subr.mxu0 0.0
  %110 = vmatpush1.msra.mxu0 0.0
  %111 = vmatprep.subr.mxu0 0.0
  %112 = vmatpush1.msra.mxu0 0.0
  %113 = vmatprep.subr.mxu0 0.0
  %114 = vmatpush1.msra.mxu0 0.0
  %115 = vmatprep.subr.mxu0 0.0
  %116 = vmatpush1.msra.mxu0 0.0
  %117 = vmatprep.subr.mxu0 0.0
  %118 = vmatpush1.msra.mxu0 0.0
  %119 = vmatprep.subr.mxu0 0.0
  %120 = vmatpush1.msra.mxu0 0.0
  %121 = vmatprep.subr.mxu0 0.0
  %122 = vmatpush1.msra.mxu0 0.0
  %123 = vmatprep.subr.mxu0 0.0
  %124 = vmatpush1.msra.mxu0 0.0
  %125 = vmatprep.subr.mxu0 0.0
  %126 = vmatpush1.msra.mxu0 0.0
  %127 = vmatprep.subr.mxu0 0.0
  %128 = vmatpush1.msra.mxu0 0.0
  %129 = vmatprep.subr.mxu0 0.0
  %130 = vmatpush1.msra.mxu0 0.0
  %131 = vmatprep.subr.mxu0 0.0
  %132 = vmatpush1.msra.mxu0 0.0
  %133 = vmatprep.subr.mxu0 0.0
  %134 = vmatpush1.msra.mxu0 0.0
  %135 = vmatprep.subr.mxu0 0.0
  %136 = vmatpush1.msra.mxu0 0.0
  %137 = vmatprep.subr.mxu0 0.0
  %138 = vmatpush1.msra.mxu0 0.0
  %139 = vmatprep.subr.mxu0 0.0
  %140 = vmatpush1.msra.mxu0 0.0
  %141 = vmatprep.subr.mxu0 0.0
  %142 = vmatpush1.msra.mxu0 0.0
  %143 = vmatprep.subr.mxu0 0.0
  %144 = vmatpush1.msra.mxu0 0.0
  %145 = vmatprep.subr.mxu0 0.0
  %146 = vmatpush1.msra.mxu0 0.0
  %147 = vmatprep.subr.mxu0 0.0
  %148 = vmatpush1.msra.mxu0 0.0
  %149 = vmatprep.subr.mxu0 0.0
  %150 = vmatpush1.msra.mxu0 0.0
  %151 = vmatprep.subr.mxu0 0.0
  %152 = vmatpush1.msra.mxu0 0.0
  %153 = vmatprep.mubr.f32.mxu0 0.0
  %154 = vmatmul.mubr.f32.gmra.mrb[0].mxu0 %v62
  %v155 = vpop.f32.mrb[0].mxu0
  %v156 = vadd.f32 %v58, %v155
  %v157 = vpop.f32.mrb[0].mxu0
  %158 = vmatprep.mubr.f32.mxu0 0.0
  %159 = vmatmul.mubr.f32.gmra.mrb[0].mxu0 %v65
  %v160 = vpop.f32.mrb[0].mxu0
  %v161 = vadd.f32 %v58, %v160
  %v162 = vpop.f32.mrb[0].mxu0
  %163 = vmatprep.mubr.f32.mxu0 0.0
  %164 = vmatmul.mubr.f32.gmra.mrb[0].mxu0 %v68
  %v165 = vpop.f32.mrb[0].mxu0
  %v166 = vadd.f32 %v58, %v165
  %v167 = vpop.f32.mrb[0].mxu0
  %168 = vmatprep.mubr.f32.mxu0 0.0
  %169 = vmatmul.mubr.f32.gmra.mrb[0].mxu0 %v71
  %v170 = vpop.f32.mrb[0].mxu0
  %v171 = vadd.f32 %v58, %v170
  %v172 = vpop.f32.mrb[0].mxu0
  %173 = vmatprep.mubr.f32.mxu0 0.0
  %174 = vmatmul.mubr.f32.gmra.mrb[0].mxu0 %v74
  %v175 = vpop.f32.mrb[0].mxu0
  %v176 = vadd.f32 %v58, %v175
  %v177 = vpop.f32.mrb[0].mxu0
  %178 = vmatprep.mubr.f32.mxu0 0.0
  %179 = vmatmul.mubr.f32.gmra.mrb[0].mxu0 %v77
  %v180 = vpop.f32.mrb[0].mxu0
  %v181 = vadd.f32 %v58, %v180
  %v182 = vpop.f32.mrb[0].mxu0
  %183 = vmatprep.mubr.f32.mxu0 0.0
  %184 = vmatmul.mubr.f32.gmra.mrb[0].mxu0 %v80
  %v185 = vpop.f32.mrb[0].mxu0
  %v186 = vadd.f32 %v58, %v185
  %v187 = vpop.f32.mrb[0].mxu0
  %188 = vmatprep.mubr.f32.mxu0 0.0
  %189 = vmatmul.mubr.f32.gmra.mrb[0].mxu0 %v83
  %v190 = vpop.f32.mrb[0].mxu0
  %v191 = vadd.f32 %v58, %v190
  %v192 = vpop.f32.mrb[0].mxu0
  %193 = vdwg.mxu0
  %vm194 = vcmask 785408
  %195 = vst.msk [vmem:[#allocation2] sm:$0xff] %vm194, %v156
  %196 = vst.msk [vmem:[#allocation2 + $0x8] sm:$0xff] %vm194, %v161
  %197 = vst.msk [vmem:[#allocation2 + $0x10] sm:$0xff] %vm194, %v166
  %198 = vst.msk [vmem:[#allocation2 + $0x18] sm:$0xff] %vm194, %v171
  %199 = vst.msk [vmem:[#allocation2 + $0x20] sm:$0xff] %vm194, %v176
  %200 = vst.msk [vmem:[#allocation2 + $0x28] sm:$0xff] %vm194, %v181
  %201 = vst.msk [vmem:[#allocation2 + $0x30] sm:$0xff] %vm194, %v186
  %202 = vst.msk [vmem:[#allocation2 + $0x38] sm:$0xff] %vm194, %v191
  %v203 = vld [vmem:[%s4] sm:$0xff]
  %v204 = vld [vmem:[%s4 + $0x8] sm:$0xff]
  %v205 = vld [vmem:[%s4 + $0x10] sm:$0xff]
  %v206 = vld [vmem:[%s4 + $0x18] sm:$0xff]
  %v207 = vld [vmem:[%s6] sm:$0x1]
  %v208 = vld [vmem:[#allocation2] sm:$0xff]
  %vm209 = vcmask 261120
  %v211 = vsel %vm209, 0.0, 0
  %213 = vmatprep.subr.mxu0 0.0
  %214 = vmatpush1.msra.mxu0 %v203
  %215 = vmatprep.subr.mxu0 0.0
  %216 = vmatpush1.msra.mxu0 %v204
  %217 = vmatprep.subr.mxu0 0.0
  %218 = vmatpush1.msra.mxu0 %v205
  %219 = vmatprep.subr.mxu0 0.0
  %220 = vmatpush1.msra.mxu0 %v206
  %221 = vmatprep.subr.mxu0 0.0
  %222 = vmatpush1.msra.mxu0 0.0
  %223 = vmatprep.subr.mxu0 0.0
  %224 = vmatpush1.msra.mxu0 0.0
  %225 = vmatprep.subr.mxu0 0.0
  %226 = vmatpush1.msra.mxu0 0.0
  %227 = vmatprep.subr.mxu0 0.0
  %228 = vmatpush1.msra.mxu0 0.0
  %229 = vmatprep.subr.mxu0 0.0
  %230 = vmatpush1.msra.mxu0 0.0
  %231 = vmatprep.subr.mxu0 0.0
  %232 = vmatpush1.msra.mxu0 0.0
  %233 = vmatprep.subr.mxu0 0.0
  %234 = vmatpush1.msra.mxu0 0.0
  %235 = vmatprep.subr.mxu0 0.0
  %236 = vmatpush1.msra.mxu0 0.0
  %237 = vmatprep.subr.mxu0 0.0
  %238 = vmatpush1.msra.mxu0 0.0
  %239 = vmatprep.subr.mxu0 0.0
  %240 = vmatpush1.msra.mxu0 0.0
  %241 = vmatprep.subr.mxu0 0.0
  %242 = vmatpush1.msra.mxu0 0.0
  %243 = vmatprep.subr.mxu0 0.0
  %244 = vmatpush1.msra.mxu0 0.0
  %245 = vmatprep.subr.mxu0 0.0
  %246 = vmatpush1.msra.mxu0 0.0
  %247 = vmatprep.subr.mxu0 0.0
  %248 = vmatpush1.msra.mxu0 0.0
  %249 = vmatprep.subr.mxu0 0.0
  %250 = vmatpush1.msra.mxu0 0.0
  %251 = vmatprep.subr.mxu0 0.0
  %252 = vmatpush1.msra.mxu0 0.0
  %253 = vmatprep.subr.mxu0 0.0
  %254 = vmatpush1.msra.mxu0 0.0
  %255 = vmatprep.subr.mxu0 0.0
  %256 = vmatpush1.msra.mxu0 0.0
  %257 = vmatprep.subr.mxu0 0.0
  %258 = vmatpush1.msra.mxu0 0.0
  %259 = vmatprep.subr.mxu0 0.0
  %260 = vmatpush1.msra.mxu0 0.0
  %261 = vmatprep.subr.mxu0 0.0
  %262 = vmatpush1.msra.mxu0 0.0
  %263 = vmatprep.subr.mxu0 0.0
  %264 = vmatpush1.msra.mxu0 0.0
  %265 = vmatprep.subr.mxu0 0.0
  %266 = vmatpush1.msra.mxu0 0.0
  %267 = vmatprep.subr.mxu0 0.0
  %268 = vmatpush1.msra.mxu0 0.0
  %269 = vmatprep.subr.mxu0 0.0
  %270 = vmatpush1.msra.mxu0 0.0
  %271 = vmatprep.subr.mxu0 0.0
  %272 = vmatpush1.msra.mxu0 0.0
  %273 = vmatprep.subr.mxu0 0.0
  %274 = vmatpush1.msra.mxu0 0.0
  %275 = vmatprep.subr.mxu0 0.0
  %276 = vmatpush1.msra.mxu0 0.0
  %277 = vmatprep.mubr.f32.mxu0 0.0
  %278 = vmatmul.mubr.f32.gmra.mrb[0].mxu0 %v211
  %v279 = vpop.f32.mrb[0].mxu0
  %v280 = vadd.f32 0.0, %v279
  %v281 = vpop.f32.mrb[0].mxu0
  %282 = vdwg.mxu0
  %v283 = vadd.f32 %v208, %v280
  %v284 = vxor.u32 %v283, 2147483648
  %v285 = vmul.f32 %v284, 1.442695
  %v286 = vpow.pop %v285
  %v287 = vadd.f32 %v286, 1.0
  %v288 = vrcp.pop %v287
  %v289 = vmul.f32 1.0, %v288
  %v291 = vlaneseq
  %v292 = vshrl.u32 %v291, 7
  %v293 = vsub.s32 0, %v292
  %v294 = vrot.slane %v207, %v293
  %295 = vrot.lane.b32.xlu0 %v294, 64
  %v296 = vpop.permute.xlu0 %295
  %v298 = vadd.f32 %v280, %v296
  %300 = vrot.lane.b32.xlu0 %v298, 64
  %v301 = vpop.permute.xlu0 %300
  %v303 = vmul.f32 %v289, %v301
  %305 = vrot.lane.b32.xlu0 %v303, 64
  %v306 = vpop.permute.xlu0 %305
  %v308 = vadd.f32 %v208, %v306
  %v309 = vtanh.pop %v308
  %v310 = vsub.f32 1.0, %v289
  %312 = vrot.lane.b32.xlu0 %v309, 96
  %v313 = vpop.permute.xlu0 %312
  %v315 = vmul.f32 %v310, %v313
  %v316 = vmul.f32 %v289, 0.0
  %v317 = vadd.f32 %v315, %v316
  %v318 = vld [vmem:[#allocation2 + $0x8] sm:$0xff]
  %320 = vrot.lane.b32.xlu0 %v317, 96
  %v321 = vpop.permute.xlu0 %320
  %v322 = vsel %vm209, %v321, 0
  %324 = vmatprep.subr.mxu0 0.0
  %325 = vmatpush1.msra.mxu0 %v203
  %326 = vmatprep.subr.mxu0 0.0
  %327 = vmatpush1.msra.mxu0 %v204
  %328 = vmatprep.subr.mxu0 0.0
  %329 = vmatpush1.msra.mxu0 %v205
  %330 = vmatprep.subr.mxu0 0.0
  %331 = vmatpush1.msra.mxu0 %v206
  %332 = vmatprep.subr.mxu0 0.0
  %333 = vmatpush1.msra.mxu0 0.0
  %334 = vmatprep.subr.mxu0 0.0
  %335 = vmatpush1.msra.mxu0 0.0
  %336 = vmatprep.subr.mxu0 0.0
  %337 = vmatpush1.msra.mxu0 0.0
  %338 = vmatprep.subr.mxu0 0.0
  %339 = vmatpush1.msra.mxu0 0.0
  %340 = vmatprep.subr.mxu0 0.0
  %341 = vmatpush1.msra.mxu0 0.0
  %342 = vmatprep.subr.mxu0 0.0
  %343 = vmatpush1.msra.mxu0 0.0
  %344 = vmatprep.subr.mxu0 0.0
  %345 = vmatpush1.msra.mxu0 0.0
  %346 = vmatprep.subr.mxu0 0.0
  %347 = vmatpush1.msra.mxu0 0.0
  %348 = vmatprep.subr.mxu0 0.0
  %349 = vmatpush1.msra.mxu0 0.0
  %350 = vmatprep.subr.mxu0 0.0
  %351 = vmatpush1.msra.mxu0 0.0
  %352 = vmatprep.subr.mxu0 0.0
  %353 = vmatpush1.msra.mxu0 0.0
  %354 = vmatprep.subr.mxu0 0.0
  %355 = vmatpush1.msra.mxu0 0.0
  %356 = vmatprep.subr.mxu0 0.0
  %357 = vmatpush1.msra.mxu0 0.0
  %358 = vmatprep.subr.mxu0 0.0
  %359 = vmatpush1.msra.mxu0 0.0
  %360 = vmatprep.subr.mxu0 0.0
  %361 = vmatpush1.msra.mxu0 0.0
  %362 = vmatprep.subr.mxu0 0.0
  %363 = vmatpush1.msra.mxu0 0.0
  %364 = vmatprep.subr.mxu0 0.0
  %365 = vmatpush1.msra.mxu0 0.0
  %366 = vmatprep.subr.mxu0 0.0
  %367 = vmatpush1.msra.mxu0 0.0
  %368 = vmatprep.subr.mxu0 0.0
  %369 = vmatpush1.msra.mxu0 0.0
  %370 = vmatprep.subr.mxu0 0.0
  %371 = vmatpush1.msra.mxu0 0.0
  %372 = vmatprep.subr.mxu0 0.0
  %373 = vmatpush1.msra.mxu0 0.0
  %374 = vmatprep.subr.mxu0 0.0
  %375 = vmatpush1.msra.mxu0 0.0
  %376 = vmatprep.subr.mxu0 0.0
  %377 = vmatpush1.msra.mxu0 0.0
  %378 = vmatprep.subr.mxu0 0.0
  %379 = vmatpush1.msra.mxu0 0.0
  %380 = vmatprep.subr.mxu0 0.0
  %381 = vmatpush1.msra.mxu0 0.0
  %382 = vmatprep.subr.mxu0 0.0
  %383 = vmatpush1.msra.mxu0 0.0
  %384 = vmatprep.subr.mxu0 0.0
  %385 = vmatpush1.msra.mxu0 0.0
  %386 = vmatprep.subr.mxu0 0.0
  %387 = vmatpush1.msra.mxu0 0.0
  %388 = vmatprep.mubr.f32.mxu0 0.0
  %389 = vmatmul.mubr.f32.gmra.mrb[0].mxu0 %v322
  %v390 = vpop.f32.mrb[0].mxu0
  %v391 = vadd.f32 0.0, %v390
  %v392 = vpop.f32.mrb[0].mxu0
  %393 = vdwg.mxu0
  %v394 = vadd.f32 %v318, %v391
  %v395 = vxor.u32 %v394, 2147483648
  %v396 = vmul.f32 %v395, 1.442695
  %v397 = vpow.pop %v396
  %v398 = vadd.f32 %v397, 1.0
  %v399 = vrcp.pop %v398
  %v400 = vmul.f32 1.0, %v399
  %v401 = vadd.f32 %v391, %v296
  %403 = vrot.lane.b32.xlu0 %v401, 64
  %v404 = vpop.permute.xlu0 %403
  %v406 = vmul.f32 %v400, %v404
  %408 = vrot.lane.b32.xlu0 %v406, 64
  %v409 = vpop.permute.xlu0 %408
  %v411 = vadd.f32 %v318, %v409
  %v412 = vtanh.pop %v411
  %v413 = vsub.f32 1.0, %v400
  %415 = vrot.lane.b32.xlu0 %v412, 96
  %v416 = vpop.permute.xlu0 %415
  %v418 = vmul.f32 %v413, %v416
  %v419 = vmul.f32 %v400, %v317
  %v420 = vadd.f32 %v418, %v419
  %v421 = vld [vmem:[#allocation2 + $0x10] sm:$0xff]
  %423 = vrot.lane.b32.xlu0 %v420, 96
  %v424 = vpop.permute.xlu0 %423
  %v425 = vsel %vm209, %v424, 0
  %427 = vmatprep.subr.mxu0 0.0
  %428 = vmatpush1.msra.mxu0 %v203
  %429 = vmatprep.subr.mxu0 0.0
  %430 = vmatpush1.msra.mxu0 %v204
  %431 = vmatprep.subr.mxu0 0.0
  %432 = vmatpush1.msra.mxu0 %v205
  %433 = vmatprep.subr.mxu0 0.0
  %434 = vmatpush1.msra.mxu0 %v206
  %435 = vmatprep.subr.mxu0 0.0
  %436 = vmatpush1.msra.mxu0 0.0
  %437 = vmatprep.subr.mxu0 0.0
  %438 = vmatpush1.msra.mxu0 0.0
  %439 = vmatprep.subr.mxu0 0.0
  %440 = vmatpush1.msra.mxu0 0.0
  %441 = vmatprep.subr.mxu0 0.0
  %442 = vmatpush1.msra.mxu0 0.0
  %443 = vmatprep.subr.mxu0 0.0
  %444 = vmatpush1.msra.mxu0 0.0
  %445 = vmatprep.subr.mxu0 0.0
  %446 = vmatpush1.msra.mxu0 0.0
  %447 = vmatprep.subr.mxu0 0.0
  %448 = vmatpush1.msra.mxu0 0.0
  %449 = vmatprep.subr.mxu0 0.0
  %450 = vmatpush1.msra.mxu0 0.0
  %451 = vmatprep.subr.mxu0 0.0
  %452 = vmatpush1.msra.mxu0 0.0
  %453 = vmatprep.subr.mxu0 0.0
  %454 = vmatpush1.msra.mxu0 0.0
  %455 = vmatprep.subr.mxu0 0.0
  %456 = vmatpush1.msra.mxu0 0.0
  %457 = vmatprep.subr.mxu0 0.0
  %458 = vmatpush1.msra.mxu0 0.0
  %459 = vmatprep.subr.mxu0 0.0
  %460 = vmatpush1.msra.mxu0 0.0
  %461 = vmatprep.subr.mxu0 0.0
  %462 = vmatpush1.msra.mxu0 0.0
  %463 = vmatprep.subr.mxu0 0.0
  %464 = vmatpush1.msra.mxu0 0.0
  %465 = vmatprep.subr.mxu0 0.0
  %466 = vmatpush1.msra.mxu0 0.0
  %467 = vmatprep.subr.mxu0 0.0
  %468 = vmatpush1.msra.mxu0 0.0
  %469 = vmatprep.subr.mxu0 0.0
  %470 = vmatpush1.msra.mxu0 0.0
  %471 = vmatprep.subr.mxu0 0.0
  %472 = vmatpush1.msra.mxu0 0.0
  %473 = vmatprep.subr.mxu0 0.0
  %474 = vmatpush1.msra.mxu0 0.0
  %475 = vmatprep.subr.mxu0 0.0
  %476 = vmatpush1.msra.mxu0 0.0
  %477 = vmatprep.subr.mxu0 0.0
  %478 = vmatpush1.msra.mxu0 0.0
  %479 = vmatprep.subr.mxu0 0.0
  %480 = vmatpush1.msra.mxu0 0.0
  %481 = vmatprep.subr.mxu0 0.0
  %482 = vmatpush1.msra.mxu0 0.0
  %483 = vmatprep.subr.mxu0 0.0
  %484 = vmatpush1.msra.mxu0 0.0
  %485 = vmatprep.subr.mxu0 0.0
  %486 = vmatpush1.msra.mxu0 0.0
  %487 = vmatprep.subr.mxu0 0.0
  %488 = vmatpush1.msra.mxu0 0.0
  %489 = vmatprep.subr.mxu0 0.0
  %490 = vmatpush1.msra.mxu0 0.0
  %491 = vmatprep.mubr.f32.mxu0 0.0
  %492 = vmatmul.mubr.f32.gmra.mrb[0].mxu0 %v425
  %v493 = vpop.f32.mrb[0].mxu0
  %v494 = vadd.f32 0.0, %v493
  %v495 = vpop.f32.mrb[0].mxu0
  %496 = vdwg.mxu0
  %v497 = vadd.f32 %v421, %v494
  %v498 = vxor.u32 %v497, 2147483648
  %v499 = vmul.f32 %v498, 1.442695
  %v500 = vpow.pop %v499
  %v501 = vadd.f32 %v500, 1.0
  %v502 = vrcp.pop %v501
  %v503 = vmul.f32 1.0, %v502
  %v504 = vadd.f32 %v494, %v296
  %506 = vrot.lane.b32.xlu0 %v504, 64
  %v507 = vpop.permute.xlu0 %506
  %v509 = vmul.f32 %v503, %v507
  %511 = vrot.lane.b32.xlu0 %v509, 64
  %v512 = vpop.permute.xlu0 %511
  %v514 = vadd.f32 %v421, %v512
  %v515 = vtanh.pop %v514
  %v516 = vsub.f32 1.0, %v503
  %518 = vrot.lane.b32.xlu0 %v515, 96
  %v519 = vpop.permute.xlu0 %518
  %v521 = vmul.f32 %v516, %v519
  %v522 = vmul.f32 %v503, %v420
  %v523 = vadd.f32 %v521, %v522
  %v524 = vld [vmem:[#allocation2 + $0x18] sm:$0xff]
  %526 = vrot.lane.b32.xlu0 %v523, 96
  %v527 = vpop.permute.xlu0 %526
  %v528 = vsel %vm209, %v527, 0
  %530 = vmatprep.subr.mxu0 0.0
  %531 = vmatpush1.msra.mxu0 %v203
  %532 = vmatprep.subr.mxu0 0.0
  %533 = vmatpush1.msra.mxu0 %v204
  %534 = vmatprep.subr.mxu0 0.0
  %535 = vmatpush1.msra.mxu0 %v205
  %536 = vmatprep.subr.mxu0 0.0
  %537 = vmatpush1.msra.mxu0 %v206
  %538 = vmatprep.subr.mxu0 0.0
  %539 = vmatpush1.msra.mxu0 0.0
  %540 = vmatprep.subr.mxu0 0.0
  %541 = vmatpush1.msra.mxu0 0.0
  %542 = vmatprep.subr.mxu0 0.0
  %543 = vmatpush1.msra.mxu0 0.0
  %544 = vmatprep.subr.mxu0 0.0
  %545 = vmatpush1.msra.mxu0 0.0
  %546 = vmatprep.subr.mxu0 0.0
  %547 = vmatpush1.msra.mxu0 0.0
  %548 = vmatprep.subr.mxu0 0.0
  %549 = vmatpush1.msra.mxu0 0.0
  %550 = vmatprep.subr.mxu0 0.0
  %551 = vmatpush1.msra.mxu0 0.0
  %552 = vmatprep.subr.mxu0 0.0
  %553 = vmatpush1.msra.mxu0 0.0
  %554 = vmatprep.subr.mxu0 0.0
  %555 = vmatpush1.msra.mxu0 0.0
  %556 = vmatprep.subr.mxu0 0.0
  %557 = vmatpush1.msra.mxu0 0.0
  %558 = vmatprep.subr.mxu0 0.0
  %559 = vmatpush1.msra.mxu0 0.0
  %560 = vmatprep.subr.mxu0 0.0
  %561 = vmatpush1.msra.mxu0 0.0
  %562 = vmatprep.subr.mxu0 0.0
  %563 = vmatpush1.msra.mxu0 0.0
  %564 = vmatprep.subr.mxu0 0.0
  %565 = vmatpush1.msra.mxu0 0.0
  %566 = vmatprep.subr.mxu0 0.0
  %567 = vmatpush1.msra.mxu0 0.0
  %568 = vmatprep.subr.mxu0 0.0
  %569 = vmatpush1.msra.mxu0 0.0
  %570 = vmatprep.subr.mxu0 0.0
  %571 = vmatpush1.msra.mxu0 0.0
  %572 = vmatprep.subr.mxu0 0.0
  %573 = vmatpush1.msra.mxu0 0.0
  %574 = vmatprep.subr.mxu0 0.0
  %575 = vmatpush1.msra.mxu0 0.0
  %576 = vmatprep.subr.mxu0 0.0
  %577 = vmatpush1.msra.mxu0 0.0
  %578 = vmatprep.subr.mxu0 0.0
  %579 = vmatpush1.msra.mxu0 0.0
  %580 = vmatprep.subr.mxu0 0.0
  %581 = vmatpush1.msra.mxu0 0.0
  %582 = vmatprep.subr.mxu0 0.0
  %583 = vmatpush1.msra.mxu0 0.0
  %584 = vmatprep.subr.mxu0 0.0
  %585 = vmatpush1.msra.mxu0 0.0
  %586 = vmatprep.subr.mxu0 0.0
  %587 = vmatpush1.msra.mxu0 0.0
  %588 = vmatprep.subr.mxu0 0.0
  %589 = vmatpush1.msra.mxu0 0.0
  %590 = vmatprep.subr.mxu0 0.0
  %591 = vmatpush1.msra.mxu0 0.0
  %592 = vmatprep.subr.mxu0 0.0
  %593 = vmatpush1.msra.mxu0 0.0
  %594 = vmatprep.mubr.f32.mxu0 0.0
  %595 = vmatmul.mubr.f32.gmra.mrb[0].mxu0 %v528
  %v596 = vpop.f32.mrb[0].mxu0
  %v597 = vadd.f32 0.0, %v596
  %v598 = vpop.f32.mrb[0].mxu0
  %599 = vdwg.mxu0
  %v600 = vadd.f32 %v524, %v597
  %v601 = vxor.u32 %v600, 2147483648
  %v602 = vmul.f32 %v601, 1.442695
  %v603 = vpow.pop %v602
  %v604 = vadd.f32 %v603, 1.0
  %v605 = vrcp.pop %v604
  %v606 = vmul.f32 1.0, %v605
  %v607 = vadd.f32 %v597, %v296
  %609 = vrot.lane.b32.xlu0 %v607, 64
  %v610 = vpop.permute.xlu0 %609
  %v612 = vmul.f32 %v606, %v610
  %614 = vrot.lane.b32.xlu0 %v612, 64
  %v615 = vpop.permute.xlu0 %614
  %v617 = vadd.f32 %v524, %v615
  %v618 = vtanh.pop %v617
  %v619 = vsub.f32 1.0, %v606
  %621 = vrot.lane.b32.xlu0 %v618, 96
  %v622 = vpop.permute.xlu0 %621
  %v624 = vmul.f32 %v619, %v622
  %v625 = vmul.f32 %v606, %v523
  %v626 = vadd.f32 %v624, %v625
  %v627 = vld [vmem:[#allocation2 + $0x20] sm:$0xff]
  %629 = vrot.lane.b32.xlu0 %v626, 96
  %v630 = vpop.permute.xlu0 %629
  %v631 = vsel %vm209, %v630, 0
  %633 = vmatprep.subr.mxu0 0.0
  %634 = vmatpush1.msra.mxu0 %v203
  %635 = vmatprep.subr.mxu0 0.0
  %636 = vmatpush1.msra.mxu0 %v204
  %637 = vmatprep.subr.mxu0 0.0
  %638 = vmatpush1.msra.mxu0 %v205
  %639 = vmatprep.subr.mxu0 0.0
  %640 = vmatpush1.msra.mxu0 %v206
  %641 = vmatprep.subr.mxu0 0.0
  %642 = vmatpush1.msra.mxu0 0.0
  %643 = vmatprep.subr.mxu0 0.0
  %644 = vmatpush1.msra.mxu0 0.0
  %645 = vmatprep.subr.mxu0 0.0
  %646 = vmatpush1.msra.mxu0 0.0
  %647 = vmatprep.subr.mxu0 0.0
  %648 = vmatpush1.msra.mxu0 0.0
  %649 = vmatprep.subr.mxu0 0.0
  %650 = vmatpush1.msra.mxu0 0.0
  %651 = vmatprep.subr.mxu0 0.0
  %652 = vmatpush1.msra.mxu0 0.0
  %653 = vmatprep.subr.mxu0 0.0
  %654 = vmatpush1.msra.mxu0 0.0
  %655 = vmatprep.subr.mxu0 0.0
  %656 = vmatpush1.msra.mxu0 0.0
  %657 = vmatprep.subr.mxu0 0.0
  %658 = vmatpush1.msra.mxu0 0.0
  %659 = vmatprep.subr.mxu0 0.0
  %660 = vmatpush1.msra.mxu0 0.0
  %661 = vmatprep.subr.mxu0 0.0
  %662 = vmatpush1.msra.mxu0 0.0
  %663 = vmatprep.subr.mxu0 0.0
  %664 = vmatpush1.msra.mxu0 0.0
  %665 = vmatprep.subr.mxu0 0.0
  %666 = vmatpush1.msra.mxu0 0.0
  %667 = vmatprep.subr.mxu0 0.0
  %668 = vmatpush1.msra.mxu0 0.0
  %669 = vmatprep.subr.mxu0 0.0
  %670 = vmatpush1.msra.mxu0 0.0
  %671 = vmatprep.subr.mxu0 0.0
  %672 = vmatpush1.msra.mxu0 0.0
  %673 = vmatprep.subr.mxu0 0.0
  %674 = vmatpush1.msra.mxu0 0.0
  %675 = vmatprep.subr.mxu0 0.0
  %676 = vmatpush1.msra.mxu0 0.0
  %677 = vmatprep.subr.mxu0 0.0
  %678 = vmatpush1.msra.mxu0 0.0
  %679 = vmatprep.subr.mxu0 0.0
  %680 = vmatpush1.msra.mxu0 0.0
  %681 = vmatprep.subr.mxu0 0.0
  %682 = vmatpush1.msra.mxu0 0.0
  %683 = vmatprep.subr.mxu0 0.0
  %684 = vmatpush1.msra.mxu0 0.0
  %685 = vmatprep.subr.mxu0 0.0
  %686 = vmatpush1.msra.mxu0 0.0
  %687 = vmatprep.subr.mxu0 0.0
  %688 = vmatpush1.msra.mxu0 0.0
  %689 = vmatprep.subr.mxu0 0.0
  %690 = vmatpush1.msra.mxu0 0.0
  %691 = vmatprep.subr.mxu0 0.0
  %692 = vmatpush1.msra.mxu0 0.0
  %693 = vmatprep.subr.mxu0 0.0
  %694 = vmatpush1.msra.mxu0 0.0
  %695 = vmatprep.subr.mxu0 0.0
  %696 = vmatpush1.msra.mxu0 0.0
  %697 = vmatprep.mubr.f32.mxu0 0.0
  %698 = vmatmul.mubr.f32.gmra.mrb[0].mxu0 %v631
  %v699 = vpop.f32.mrb[0].mxu0
  %v700 = vadd.f32 0.0, %v699
  %v701 = vpop.f32.mrb[0].mxu0
  %702 = vdwg.mxu0
  %v703 = vadd.f32 %v627, %v700
  %v704 = vxor.u32 %v703, 2147483648
  %v705 = vmul.f32 %v704, 1.442695
  %v706 = vpow.pop %v705
  %v707 = vadd.f32 %v706, 1.0
  %v708 = vrcp.pop %v707
  %v709 = vmul.f32 1.0, %v708
  %v710 = vadd.f32 %v700, %v296
  %712 = vrot.lane.b32.xlu0 %v710, 64
  %v713 = vpop.permute.xlu0 %712
  %v715 = vmul.f32 %v709, %v713
  %717 = vrot.lane.b32.xlu0 %v715, 64
  %v718 = vpop.permute.xlu0 %717
  %v720 = vadd.f32 %v627, %v718
  %v721 = vtanh.pop %v720
  %v722 = vsub.f32 1.0, %v709
  %724 = vrot.lane.b32.xlu0 %v721, 96
  %v725 = vpop.permute.xlu0 %724
  %v727 = vmul.f32 %v722, %v725
  %v728 = vmul.f32 %v709, %v626
  %v729 = vadd.f32 %v727, %v728
  %v730 = vld [vmem:[#allocation2 + $0x28] sm:$0xff]
  %732 = vrot.lane.b32.xlu0 %v729, 96
  %v733 = vpop.permute.xlu0 %732
  %v734 = vsel %vm209, %v733, 0
  %736 = vmatprep.subr.mxu0 0.0
  %737 = vmatpush1.msra.mxu0 %v203
  %738 = vmatprep.subr.mxu0 0.0
  %739 = vmatpush1.msra.mxu0 %v204
  %740 = vmatprep.subr.mxu0 0.0
  %741 = vmatpush1.msra.mxu0 %v205
  %742 = vmatprep.subr.mxu0 0.0
  %743 = vmatpush1.msra.mxu0 %v206
  %744 = vmatprep.subr.mxu0 0.0
  %745 = vmatpush1.msra.mxu0 0.0
  %746 = vmatprep.subr.mxu0 0.0
  %747 = vmatpush1.msra.mxu0 0.0
  %748 = vmatprep.subr.mxu0 0.0
  %749 = vmatpush1.msra.mxu0 0.0
  %750 = vmatprep.subr.mxu0 0.0
  %751 = vmatpush1.msra.mxu0 0.0
  %752 = vmatprep.subr.mxu0 0.0
  %753 = vmatpush1.msra.mxu0 0.0
  %754 = vmatprep.subr.mxu0 0.0
  %755 = vmatpush1.msra.mxu0 0.0
  %756 = vmatprep.subr.mxu0 0.0
  %757 = vmatpush1.msra.mxu0 0.0
  %758 = vmatprep.subr.mxu0 0.0
  %759 = vmatpush1.msra.mxu0 0.0
  %760 = vmatprep.subr.mxu0 0.0
  %761 = vmatpush1.msra.mxu0 0.0
  %762 = vmatprep.subr.mxu0 0.0
  %763 = vmatpush1.msra.mxu0 0.0
  %764 = vmatprep.subr.mxu0 0.0
  %765 = vmatpush1.msra.mxu0 0.0
  %766 = vmatprep.subr.mxu0 0.0
  %767 = vmatpush1.msra.mxu0 0.0
  %768 = vmatprep.subr.mxu0 0.0
  %769 = vmatpush1.msra.mxu0 0.0
  %770 = vmatprep.subr.mxu0 0.0
  %771 = vmatpush1.msra.mxu0 0.0
  %772 = vmatprep.subr.mxu0 0.0
  %773 = vmatpush1.msra.mxu0 0.0
  %774 = vmatprep.subr.mxu0 0.0
  %775 = vmatpush1.msra.mxu0 0.0
  %776 = vmatprep.subr.mxu0 0.0
  %777 = vmatpush1.msra.mxu0 0.0
  %778 = vmatprep.subr.mxu0 0.0
  %779 = vmatpush1.msra.mxu0 0.0
  %780 = vmatprep.subr.mxu0 0.0
  %781 = vmatpush1.msra.mxu0 0.0
  %782 = vmatprep.subr.mxu0 0.0
  %783 = vmatpush1.msra.mxu0 0.0
  %784 = vmatprep.subr.mxu0 0.0
  %785 = vmatpush1.msra.mxu0 0.0
  %786 = vmatprep.subr.mxu0 0.0
  %787 = vmatpush1.msra.mxu0 0.0
  %788 = vmatprep.subr.mxu0 0.0
  %789 = vmatpush1.msra.mxu0 0.0
  %790 = vmatprep.subr.mxu0 0.0
  %791 = vmatpush1.msra.mxu0 0.0
  %792 = vmatprep.subr.mxu0 0.0
  %793 = vmatpush1.msra.mxu0 0.0
  %794 = vmatprep.subr.mxu0 0.0
  %795 = vmatpush1.msra.mxu0 0.0
  %796 = vmatprep.subr.mxu0 0.0
  %797 = vmatpush1.msra.mxu0 0.0
  %798 = vmatprep.subr.mxu0 0.0
  %799 = vmatpush1.msra.mxu0 0.0
  %800 = vmatprep.mubr.f32.mxu0 0.0
  %801 = vmatmul.mubr.f32.gmra.mrb[0].mxu0 %v734
  %v802 = vpop.f32.mrb[0].mxu0
  %v803 = vadd.f32 0.0, %v802
  %v804 = vpop.f32.mrb[0].mxu0
  %805 = vdwg.mxu0
  %v806 = vadd.f32 %v730, %v803
  %v807 = vxor.u32 %v806, 2147483648
  %v808 = vmul.f32 %v807, 1.442695
  %v809 = vpow.pop %v808
  %v810 = vadd.f32 %v809, 1.0
  %v811 = vrcp.pop %v810
  %v812 = vmul.f32 1.0, %v811
  %v813 = vadd.f32 %v803, %v296
  %815 = vrot.lane.b32.xlu0 %v813, 64
  %v816 = vpop.permute.xlu0 %815
  %v818 = vmul.f32 %v812, %v816
  %820 = vrot.lane.b32.xlu0 %v818, 64
  %v821 = vpop.permute.xlu0 %820
  %v823 = vadd.f32 %v730, %v821
  %v824 = vtanh.pop %v823
  %v825 = vsub.f32 1.0, %v812
  %827 = vrot.lane.b32.xlu0 %v824, 96
  %v828 = vpop.permute.xlu0 %827
  %v830 = vmul.f32 %v825, %v828
  %v831 = vmul.f32 %v812, %v729
  %v832 = vadd.f32 %v830, %v831
  %v833 = vld [vmem:[#allocation2 + $0x30] sm:$0xff]
  %835 = vrot.lane.b32.xlu0 %v832, 96
  %v836 = vpop.permute.xlu0 %835
  %v837 = vsel %vm209, %v836, 0
  %839 = vmatprep.subr.mxu0 0.0
  %840 = vmatpush1.msra.mxu0 %v203
  %841 = vmatprep.subr.mxu0 0.0
  %842 = vmatpush1.msra.mxu0 %v204
  %843 = vmatprep.subr.mxu0 0.0
  %844 = vmatpush1.msra.mxu0 %v205
  %845 = vmatprep.subr.mxu0 0.0
  %846 = vmatpush1.msra.mxu0 %v206
  %847 = vmatprep.subr.mxu0 0.0
  %848 = vmatpush1.msra.mxu0 0.0
  %849 = vmatprep.subr.mxu0 0.0
  %850 = vmatpush1.msra.mxu0 0.0
  %851 = vmatprep.subr.mxu0 0.0
  %852 = vmatpush1.msra.mxu0 0.0
  %853 = vmatprep.subr.mxu0 0.0
  %854 = vmatpush1.msra.mxu0 0.0
  %855 = vmatprep.subr.mxu0 0.0
  %856 = vmatpush1.msra.mxu0 0.0
  %857 = vmatprep.subr.mxu0 0.0
  %858 = vmatpush1.msra.mxu0 0.0
  %859 = vmatprep.subr.mxu0 0.0
  %860 = vmatpush1.msra.mxu0 0.0
  %861 = vmatprep.subr.mxu0 0.0
  %862 = vmatpush1.msra.mxu0 0.0
  %863 = vmatprep.subr.mxu0 0.0
  %864 = vmatpush1.msra.mxu0 0.0
  %865 = vmatprep.subr.mxu0 0.0
  %866 = vmatpush1.msra.mxu0 0.0
  %867 = vmatprep.subr.mxu0 0.0
  %868 = vmatpush1.msra.mxu0 0.0
  %869 = vmatprep.subr.mxu0 0.0
  %870 = vmatpush1.msra.mxu0 0.0
  %871 = vmatprep.subr.mxu0 0.0
  %872 = vmatpush1.msra.mxu0 0.0
  %873 = vmatprep.subr.mxu0 0.0
  %874 = vmatpush1.msra.mxu0 0.0
  %875 = vmatprep.subr.mxu0 0.0
  %876 = vmatpush1.msra.mxu0 0.0
  %877 = vmatprep.subr.mxu0 0.0
  %878 = vmatpush1.msra.mxu0 0.0
  %879 = vmatprep.subr.mxu0 0.0
  %880 = vmatpush1.msra.mxu0 0.0
  %881 = vmatprep.subr.mxu0 0.0
  %882 = vmatpush1.msra.mxu0 0.0
  %883 = vmatprep.subr.mxu0 0.0
  %884 = vmatpush1.msra.mxu0 0.0
  %885 = vmatprep.subr.mxu0 0.0
  %886 = vmatpush1.msra.mxu0 0.0
  %887 = vmatprep.subr.mxu0 0.0
  %888 = vmatpush1.msra.mxu0 0.0
  %889 = vmatprep.subr.mxu0 0.0
  %890 = vmatpush1.msra.mxu0 0.0
  %891 = vmatprep.subr.mxu0 0.0
  %892 = vmatpush1.msra.mxu0 0.0
  %893 = vmatprep.subr.mxu0 0.0
  %894 = vmatpush1.msra.mxu0 0.0
  %895 = vmatprep.subr.mxu0 0.0
  %896 = vmatpush1.msra.mxu0 0.0
  %897 = vmatprep.subr.mxu0 0.0
  %898 = vmatpush1.msra.mxu0 0.0
  %899 = vmatprep.subr.mxu0 0.0
  %900 = vmatpush1.msra.mxu0 0.0
  %901 = vmatprep.subr.mxu0 0.0
  %902 = vmatpush1.msra.mxu0 0.0
  %903 = vmatprep.mubr.f32.mxu0 0.0
  %904 = vmatmul.mubr.f32.gmra.mrb[0].mxu0 %v837
  %v905 = vpop.f32.mrb[0].mxu0
  %v906 = vadd.f32 0.0, %v905
  %v907 = vpop.f32.mrb[0].mxu0
  %908 = vdwg.mxu0
  %v909 = vadd.f32 %v833, %v906
  %v910 = vxor.u32 %v909, 2147483648
  %v911 = vmul.f32 %v910, 1.442695
  %v912 = vpow.pop %v911
  %v913 = vadd.f32 %v912, 1.0
  %v914 = vrcp.pop %v913
  %v915 = vmul.f32 1.0, %v914
  %v916 = vadd.f32 %v906, %v296
  %918 = vrot.lane.b32.xlu0 %v916, 64
  %v919 = vpop.permute.xlu0 %918
  %v921 = vmul.f32 %v915, %v919
  %923 = vrot.lane.b32.xlu0 %v921, 64
  %v924 = vpop.permute.xlu0 %923
  %v926 = vadd.f32 %v833, %v924
  %v927 = vtanh.pop %v926
  %v928 = vsub.f32 1.0, %v915
  %930 = vrot.lane.b32.xlu0 %v927, 96
  %v931 = vpop.permute.xlu0 %930
  %v933 = vmul.f32 %v928, %v931
  %v934 = vmul.f32 %v915, %v832
  %v935 = vadd.f32 %v933, %v934
  %v936 = vld [vmem:[#allocation2 + $0x38] sm:$0xff]
  %938 = vrot.lane.b32.xlu0 %v935, 96
  %v939 = vpop.permute.xlu0 %938
  %v940 = vsel %vm209, %v939, 0
  %942 = vmatprep.subr.mxu0 0.0
  %943 = vmatpush1.msra.mxu0 %v203
  %944 = vmatprep.subr.mxu0 0.0
  %945 = vmatpush1.msra.mxu0 %v204
  %946 = vmatprep.subr.mxu0 0.0
  %947 = vmatpush1.msra.mxu0 %v205
  %948 = vmatprep.subr.mxu0 0.0
  %949 = vmatpush1.msra.mxu0 %v206
  %950 = vmatprep.subr.mxu0 0.0
  %951 = vmatpush1.msra.mxu0 0.0
  %952 = vmatprep.subr.mxu0 0.0
  %953 = vmatpush1.msra.mxu0 0.0
  %954 = vmatprep.subr.mxu0 0.0
  %955 = vmatpush1.msra.mxu0 0.0
  %956 = vmatprep.subr.mxu0 0.0
  %957 = vmatpush1.msra.mxu0 0.0
  %958 = vmatprep.subr.mxu0 0.0
  %959 = vmatpush1.msra.mxu0 0.0
  %960 = vmatprep.subr.mxu0 0.0
  %961 = vmatpush1.msra.mxu0 0.0
  %962 = vmatprep.subr.mxu0 0.0
  %963 = vmatpush1.msra.mxu0 0.0
  %964 = vmatprep.subr.mxu0 0.0
  %965 = vmatpush1.msra.mxu0 0.0
  %966 = vmatprep.subr.mxu0 0.0
  %967 = vmatpush1.msra.mxu0 0.0
  %968 = vmatprep.subr.mxu0 0.0
  %969 = vmatpush1.msra.mxu0 0.0
  %970 = vmatprep.subr.mxu0 0.0
  %971 = vmatpush1.msra.mxu0 0.0
  %972 = vmatprep.subr.mxu0 0.0
  %973 = vmatpush1.msra.mxu0 0.0
  %974 = vmatprep.subr.mxu0 0.0
  %975 = vmatpush1.msra.mxu0 0.0
  %976 = vmatprep.subr.mxu0 0.0
  %977 = vmatpush1.msra.mxu0 0.0
  %978 = vmatprep.subr.mxu0 0.0
  %979 = vmatpush1.msra.mxu0 0.0
  %980 = vmatprep.subr.mxu0 0.0
  %981 = vmatpush1.msra.mxu0 0.0
  %982 = vmatprep.subr.mxu0 0.0
  %983 = vmatpush1.msra.mxu0 0.0
  %984 = vmatprep.subr.mxu0 0.0
  %985 = vmatpush1.msra.mxu0 0.0
  %986 = vmatprep.subr.mxu0 0.0
  %987 = vmatpush1.msra.mxu0 0.0
  %988 = vmatprep.subr.mxu0 0.0
  %989 = vmatpush1.msra.mxu0 0.0
  %990 = vmatprep.subr.mxu0 0.0
  %991 = vmatpush1.msra.mxu0 0.0
  %992 = vmatprep.subr.mxu0 0.0
  %993 = vmatpush1.msra.mxu0 0.0
  %994 = vmatprep.subr.mxu0 0.0
  %995 = vmatpush1.msra.mxu0 0.0
  %996 = vmatprep.subr.mxu0 0.0
  %997 = vmatpush1.msra.mxu0 0.0
  %998 = vmatprep.subr.mxu0 0.0
  %999 = vmatpush1.msra.mxu0 0.0
  %1000 = vmatprep.subr.mxu0 0.0
  %1001 = vmatpush1.msra.mxu0 0.0
  %1002 = vmatprep.subr.mxu0 0.0
  %1003 = vmatpush1.msra.mxu0 0.0
  %1004 = vmatprep.subr.mxu0 0.0
  %1005 = vmatpush1.msra.mxu0 0.0
  %1006 = vmatprep.mubr.f32.mxu0 0.0
  %1007 = vmatmul.mubr.f32.gmra.mrb[0].mxu0 %v940
  %v1008 = vpop.f32.mrb[0].mxu0
  %v1009 = vadd.f32 0.0, %v1008
  %v1010 = vpop.f32.mrb[0].mxu0
  %1011 = vdwg.mxu0
  %v1012 = vadd.f32 %v936, %v1009
  %v1013 = vxor.u32 %v1012, 2147483648
  %v1014 = vmul.f32 %v1013, 1.442695
  %v1015 = vpow.pop %v1014
  %v1016 = vadd.f32 %v1015, 1.0
  %v1017 = vrcp.pop %v1016
  %v1018 = vmul.f32 1.0, %v1017
  %v1019 = vadd.f32 %v1009, %v296
  %1021 = vrot.lane.b32.xlu0 %v1019, 64
  %v1022 = vpop.permute.xlu0 %1021
  %v1024 = vmul.f32 %v1018, %v1022
  %1026 = vrot.lane.b32.xlu0 %v1024, 64
  %v1027 = vpop.permute.xlu0 %1026
  %v1029 = vadd.f32 %v936, %v1027
  %v1030 = vtanh.pop %v1029
  %v1031 = vsub.f32 1.0, %v1018
  %1033 = vrot.lane.b32.xlu0 %v1030, 96
  %v1034 = vpop.permute.xlu0 %1033
  %v1036 = vmul.f32 %v1031, %v1034
  %v1037 = vmul.f32 %v1018, %v935
  %v1038 = vadd.f32 %v1036, %v1037
  %v1039 = vld [vmem:[%s2] sm:$0xff]
  %1041 = vrot.lane.b32.xlu0 %v1039, 32
  %v1042 = vpop.permute.xlu0 %1041
  %v1044 = vadd.f32 %v1038, %v1042
  %v1045 = vld [vmem:[%s1] sm:$0xff]
  %v1046 = vld [vmem:[%s1 + $0x8] sm:$0xff]
  %v1047 = vld [vmem:[%s1 + $0x10] sm:$0xff]
  %v1048 = vld [vmem:[%s1 + $0x18] sm:$0xff]
  %v1049 = vld [vmem:[%s1 + $0x20] sm:$0xff]
  %v1050 = vld [vmem:[%s1 + $0x28] sm:$0xff]
  %v1051 = vld [vmem:[%s1 + $0x30] sm:$0xff]
  %v1052 = vld [vmem:[%s1 + $0x38] sm:$0xff]
  %v1053 = vld [vmem:[%s7] sm:$0xf]
  %v1054 = vld [vmem:[%s9] sm:$0x1]
  %v1056 = vlaneseq
  %v1057 = vshrl.u32 %v1056, 7
  %v1058 = vsub.s32 0, %v1057
  %v1059 = vrot.slane %v1054, %v1058
  %v1062 = vsel %vm60, %v1045, 0
  %v1065 = vsel %vm60, %v1046, 0
  %v1068 = vsel %vm60, %v1047, 0
  %v1071 = vsel %vm60, %v1048, 0
  %v1074 = vsel %vm60, %v1049, 0
  %v1077 = vsel %vm60, %v1050, 0
  %v1080 = vsel %vm60, %v1051, 0
  %v1083 = vsel %vm60, %v1052, 0
  %v1086 = vsel %vm85, %v1053, 0
  %1088 = vmatprep.subr.mxu0 0.0
  %1089 = vmatpush1.msra.mxu0 %v1086
  %1090 = vmatprep.subr.mxu0 0.0
  %1091 = vmatpush1.msra.mxu0 0.0
  %1092 = vmatprep.subr.mxu0 0.0
  %1093 = vmatpush1.msra.mxu0 0.0
  %1094 = vmatprep.subr.mxu0 0.0
  %1095 = vmatpush1.msra.mxu0 0.0
  %1096 = vmatprep.subr.mxu0 0.0
  %1097 = vmatpush1.msra.mxu0 0.0
  %1098 = vmatprep.subr.mxu0 0.0
  %1099 = vmatpush1.msra.mxu0 0.0
  %1100 = vmatprep.subr.mxu0 0.0
  %1101 = vmatpush1.msra.mxu0 0.0
  %1102 = vmatprep.subr.mxu0 0.0
  %1103 = vmatpush1.msra.mxu0 0.0
  %1104 = vmatprep.subr.mxu0 0.0
  %1105 = vmatpush1.msra.mxu0 0.0
  %1106 = vmatprep.subr.mxu0 0.0
  %1107 = vmatpush1.msra.mxu0 0.0
  %1108 = vmatprep.subr.mxu0 0.0
  %1109 = vmatpush1.msra.mxu0 0.0
  %1110 = vmatprep.subr.mxu0 0.0
  %1111 = vmatpush1.msra.mxu0 0.0
  %1112 = vmatprep.subr.mxu0 0.0
  %1113 = vmatpush1.msra.mxu0 0.0
  %1114 = vmatprep.subr.mxu0 0.0
  %1115 = vmatpush1.msra.mxu0 0.0
  %1116 = vmatprep.subr.mxu0 0.0
  %1117 = vmatpush1.msra.mxu0 0.0
  %1118 = vmatprep.subr.mxu0 0.0
  %1119 = vmatpush1.msra.mxu0 0.0
  %1120 = vmatprep.subr.mxu0 0.0
  %1121 = vmatpush1.msra.mxu0 0.0
  %1122 = vmatprep.subr.mxu0 0.0
  %1123 = vmatpush1.msra.mxu0 0.0
  %1124 = vmatprep.subr.mxu0 0.0
  %1125 = vmatpush1.msra.mxu0 0.0
  %1126 = vmatprep.subr.mxu0 0.0
  %1127 = vmatpush1.msra.mxu0 0.0
  %1128 = vmatprep.subr.mxu0 0.0
  %1129 = vmatpush1.msra.mxu0 0.0
  %1130 = vmatprep.subr.mxu0 0.0
  %1131 = vmatpush1.msra.mxu0 0.0
  %1132 = vmatprep.subr.mxu0 0.0
  %1133 = vmatpush1.msra.mxu0 0.0
  %1134 = vmatprep.subr.mxu0 0.0
  %1135 = vmatpush1.msra.mxu0 0.0
  %1136 = vmatprep.subr.mxu0 0.0
  %1137 = vmatpush1.msra.mxu0 0.0
  %1138 = vmatprep.subr.mxu0 0.0
  %1139 = vmatpush1.msra.mxu0 0.0
  %1140 = vmatprep.subr.mxu0 0.0
  %1141 = vmatpush1.msra.mxu0 0.0
  %1142 = vmatprep.subr.mxu0 0.0
  %1143 = vmatpush1.msra.mxu0 0.0
  %1144 = vmatprep.subr.mxu0 0.0
  %1145 = vmatpush1.msra.mxu0 0.0
  %1146 = vmatprep.subr.mxu0 0.0
  %1147 = vmatpush1.msra.mxu0 0.0
  %1148 = vmatprep.subr.mxu0 0.0
  %1149 = vmatpush1.msra.mxu0 0.0
  %1150 = vmatprep.subr.mxu0 0.0
  %1151 = vmatpush1.msra.mxu0 0.0
  %1152 = vmatprep.mubr.f32.mxu0 0.0
  %1153 = vmatmul.mubr.f32.gmra.mrb[0].mxu0 %v1062
  %v1154 = vpop.f32.mrb[0].mxu0
  %v1155 = vadd.f32 %v1059, %v1154
  %v1156 = vpop.f32.mrb[0].mxu0
  %1157 = vmatprep.mubr.f32.mxu0 0.0
  %1158 = vmatmul.mubr.f32.gmra.mrb[0].mxu0 %v1065
  %v1159 = vpop.f32.mrb[0].mxu0
  %v1160 = vadd.f32 %v1059, %v1159
  %v1161 = vpop.f32.mrb[0].mxu0
  %1162 = vmatprep.mubr.f32.mxu0 0.0
  %1163 = vmatmul.mubr.f32.gmra.mrb[0].mxu0 %v1068
  %v1164 = vpop.f32.mrb[0].mxu0
  %v1165 = vadd.f32 %v1059, %v1164
  %v1166 = vpop.f32.mrb[0].mxu0
  %1167 = vmatprep.mubr.f32.mxu0 0.0
  %1168 = vmatmul.mubr.f32.gmra.mrb[0].mxu0 %v1071
  %v1169 = vpop.f32.mrb[0].mxu0
  %v1170 = vadd.f32 %v1059, %v1169
  %v1171 = vpop.f32.mrb[0].mxu0
  %1172 = vmatprep.mubr.f32.mxu0 0.0
  %1173 = vmatmul.mubr.f32.gmra.mrb[0].mxu0 %v1074
  %v1174 = vpop.f32.mrb[0].mxu0
  %v1175 = vadd.f32 %v1059, %v1174
  %v1176 = vpop.f32.mrb[0].mxu0
  %1177 = vmatprep.mubr.f32.mxu0 0.0
  %1178 = vmatmul.mubr.f32.gmra.mrb[0].mxu0 %v1077
  %v1179 = vpop.f32.mrb[0].mxu0
  %v1180 = vadd.f32 %v1059, %v1179
  %v1181 = vpop.f32.mrb[0].mxu0
  %1182 = vmatprep.mubr.f32.mxu0 0.0
  %1183 = vmatmul.mubr.f32.gmra.mrb[0].mxu0 %v1080
  %v1184 = vpop.f32.mrb[0].mxu0
  %v1185 = vadd.f32 %v1059, %v1184
  %v1186 = vpop.f32.mrb[0].mxu0
  %1187 = vmatprep.mubr.f32.mxu0 0.0
  %1188 = vmatmul.mubr.f32.gmra.mrb[0].mxu0 %v1083
  %v1189 = vpop.f32.mrb[0].mxu0
  %v1190 = vadd.f32 %v1059, %v1189
  %v1191 = vpop.f32.mrb[0].mxu0
  %1192 = vdwg.mxu0
  %1193 = vst.msk [vmem:[#allocation2] sm:$0xff] %vm194, %v1155
  %1194 = vst.msk [vmem:[#allocation2 + $0x8] sm:$0xff] %vm194, %v1160
  %1195 = vst.msk [vmem:[#allocation2 + $0x10] sm:$0xff] %vm194, %v1165
  %1196 = vst.msk [vmem:[#allocation2 + $0x18] sm:$0xff] %vm194, %v1170
  %1197 = vst.msk [vmem:[#allocation2 + $0x20] sm:$0xff] %vm194, %v1175
  %1198 = vst.msk [vmem:[#allocation2 + $0x28] sm:$0xff] %vm194, %v1180
  %1199 = vst.msk [vmem:[#allocation2 + $0x30] sm:$0xff] %vm194, %v1185
  %1200 = vst.msk [vmem:[#allocation2 + $0x38] sm:$0xff] %vm194, %v1190
  %v1201 = vld [vmem:[%s8] sm:$0xff]
  %v1202 = vld [vmem:[%s8 + $0x8] sm:$0xff]
  %v1203 = vld [vmem:[%s8 + $0x10] sm:$0xff]
  %v1204 = vld [vmem:[%s8 + $0x18] sm:$0xff]
  %v1205 = vld [vmem:[%s10] sm:$0x1]
  %v1206 = vld [vmem:[#allocation2] sm:$0xff]
  %1208 = vrot.lane.b32.xlu0 %v1044, 96
  %v1209 = vpop.permute.xlu0 %1208
  %v1210 = vsel %vm209, %v1209, 0
  %1212 = vmatprep.subr.mxu0 0.0
  %1213 = vmatpush1.msra.mxu0 %v1201
  %1214 = vmatprep.subr.mxu0 0.0
  %1215 = vmatpush1.msra.mxu0 %v1202
  %1216 = vmatprep.subr.mxu0 0.0
  %1217 = vmatpush1.msra.mxu0 %v1203
  %1218 = vmatprep.subr.mxu0 0.0
  %1219 = vmatpush1.msra.mxu0 %v1204
  %1220 = vmatprep.subr.mxu0 0.0
  %1221 = vmatpush1.msra.mxu0 0.0
  %1222 = vmatprep.subr.mxu0 0.0
  %1223 = vmatpush1.msra.mxu0 0.0
  %1224 = vmatprep.subr.mxu0 0.0
  %1225 = vmatpush1.msra.mxu0 0.0
  %1226 = vmatprep.subr.mxu0 0.0
  %1227 = vmatpush1.msra.mxu0 0.0
  %1228 = vmatprep.subr.mxu0 0.0
  %1229 = vmatpush1.msra.mxu0 0.0
  %1230 = vmatprep.subr.mxu0 0.0
  %1231 = vmatpush1.msra.mxu0 0.0
  %1232 = vmatprep.subr.mxu0 0.0
  %1233 = vmatpush1.msra.mxu0 0.0
  %1234 = vmatprep.subr.mxu0 0.0
  %1235 = vmatpush1.msra.mxu0 0.0
  %1236 = vmatprep.subr.mxu0 0.0
  %1237 = vmatpush1.msra.mxu0 0.0
  %1238 = vmatprep.subr.mxu0 0.0
  %1239 = vmatpush1.msra.mxu0 0.0
  %1240 = vmatprep.subr.mxu0 0.0
  %1241 = vmatpush1.msra.mxu0 0.0
  %1242 = vmatprep.subr.mxu0 0.0
  %1243 = vmatpush1.msra.mxu0 0.0
  %1244 = vmatprep.subr.mxu0 0.0
  %1245 = vmatpush1.msra.mxu0 0.0
  %1246 = vmatprep.subr.mxu0 0.0
  %1247 = vmatpush1.msra.mxu0 0.0
  %1248 = vmatprep.subr.mxu0 0.0
  %1249 = vmatpush1.msra.mxu0 0.0
  %1250 = vmatprep.subr.mxu0 0.0
  %1251 = vmatpush1.msra.mxu0 0.0
  %1252 = vmatprep.subr.mxu0 0.0
  %1253 = vmatpush1.msra.mxu0 0.0
  %1254 = vmatprep.subr.mxu0 0.0
  %1255 = vmatpush1.msra.mxu0 0.0
  %1256 = vmatprep.subr.mxu0 0.0
  %1257 = vmatpush1.msra.mxu0 0.0
  %1258 = vmatprep.subr.mxu0 0.0
  %1259 = vmatpush1.msra.mxu0 0.0
  %1260 = vmatprep.subr.mxu0 0.0
  %1261 = vmatpush1.msra.mxu0 0.0
  %1262 = vmatprep.subr.mxu0 0.0
  %1263 = vmatpush1.msra.mxu0 0.0
  %1264 = vmatprep.subr.mxu0 0.0
  %1265 = vmatpush1.msra.mxu0 0.0
  %1266 = vmatprep.subr.mxu0 0.0
  %1267 = vmatpush1.msra.mxu0 0.0
  %1268 = vmatprep.subr.mxu0 0.0
  %1269 = vmatpush1.msra.mxu0 0.0
  %1270 = vmatprep.subr.mxu0 0.0
  %1271 = vmatpush1.msra.mxu0 0.0
  %1272 = vmatprep.subr.mxu0 0.0
  %1273 = vmatpush1.msra.mxu0 0.0
  %1274 = vmatprep.subr.mxu0 0.0
  %1275 = vmatpush1.msra.mxu0 0.0
  %1276 = vmatprep.mubr.f32.mxu0 0.0
  %1277 = vmatmul.mubr.f32.gmra.mrb[0].mxu0 %v1210
  %v1278 = vpop.f32.mrb[0].mxu0
  %v1279 = vadd.f32 0.0, %v1278
  %v1280 = vpop.f32.mrb[0].mxu0
  %1281 = vdwg.mxu0
  %v1282 = vadd.f32 %v1206, %v1279
  %v1283 = vxor.u32 %v1282, 2147483648
  %v1284 = vmul.f32 %v1283, 1.442695
  %v1285 = vpow.pop %v1284
  %v1286 = vadd.f32 %v1285, 1.0
  %v1287 = vrcp.pop %v1286
  %v1288 = vmul.f32 1.0, %v1287
  %v1290 = vlaneseq
  %v1291 = vshrl.u32 %v1290, 7
  %v1292 = vsub.s32 0, %v1291
  %v1293 = vrot.slane %v1205, %v1292
  %1294 = vrot.lane.b32.xlu0 %v1293, 64
  %v1295 = vpop.permute.xlu0 %1294
  %v1297 = vadd.f32 %v1279, %v1295
  %1299 = vrot.lane.b32.xlu0 %v1297, 64
  %v1300 = vpop.permute.xlu0 %1299
  %v1302 = vmul.f32 %v1288, %v1300
  %1304 = vrot.lane.b32.xlu0 %v1302, 64
  %v1305 = vpop.permute.xlu0 %1304
  %v1307 = vadd.f32 %v1206, %v1305
  %v1308 = vtanh.pop %v1307
  %v1309 = vsub.f32 1.0, %v1288
  %1311 = vrot.lane.b32.xlu0 %v1308, 96
  %v1312 = vpop.permute.xlu0 %1311
  %v1314 = vmul.f32 %v1309, %v1312
  %v1315 = vmul.f32 %v1288, %v1044
  %v1316 = vadd.f32 %v1314, %v1315
  %1318 = vrot.lane.b32.xlu0 %v1316, 96
  %v1319 = vpop.permute.xlu0 %1318
  %1321 = vst.msk [vmem:[#allocation3] sm:$0xff] %vm209, %v1319
  %v1322 = vld [vmem:[#allocation2 + $0x8] sm:$0xff]
  %v1323 = vsel %vm209, %v1319, 0
  %1325 = vmatprep.subr.mxu0 0.0
  %1326 = vmatpush1.msra.mxu0 %v1201
  %1327 = vmatprep.subr.mxu0 0.0
  %1328 = vmatpush1.msra.mxu0 %v1202
  %1329 = vmatprep.subr.mxu0 0.0
  %1330 = vmatpush1.msra.mxu0 %v1203
  %1331 = vmatprep.subr.mxu0 0.0
  %1332 = vmatpush1.msra.mxu0 %v1204
  %1333 = vmatprep.subr.mxu0 0.0
  %1334 = vmatpush1.msra.mxu0 0.0
  %1335 = vmatprep.subr.mxu0 0.0
  %1336 = vmatpush1.msra.mxu0 0.0
  %1337 = vmatprep.subr.mxu0 0.0
  %1338 = vmatpush1.msra.mxu0 0.0
  %1339 = vmatprep.subr.mxu0 0.0
  %1340 = vmatpush1.msra.mxu0 0.0
  %1341 = vmatprep.subr.mxu0 0.0
  %1342 = vmatpush1.msra.mxu0 0.0
  %1343 = vmatprep.subr.mxu0 0.0
  %1344 = vmatpush1.msra.mxu0 0.0
  %1345 = vmatprep.subr.mxu0 0.0
  %1346 = vmatpush1.msra.mxu0 0.0
  %1347 = vmatprep.subr.mxu0 0.0
  %1348 = vmatpush1.msra.mxu0 0.0
  %1349 = vmatprep.subr.mxu0 0.0
  %1350 = vmatpush1.msra.mxu0 0.0
  %1351 = vmatprep.subr.mxu0 0.0
  %1352 = vmatpush1.msra.mxu0 0.0
  %1353 = vmatprep.subr.mxu0 0.0
  %1354 = vmatpush1.msra.mxu0 0.0
  %1355 = vmatprep.subr.mxu0 0.0
  %1356 = vmatpush1.msra.mxu0 0.0
  %1357 = vmatprep.subr.mxu0 0.0
  %1358 = vmatpush1.msra.mxu0 0.0
  %1359 = vmatprep.subr.mxu0 0.0
  %1360 = vmatpush1.msra.mxu0 0.0
  %1361 = vmatprep.subr.mxu0 0.0
  %1362 = vmatpush1.msra.mxu0 0.0
  %1363 = vmatprep.subr.mxu0 0.0
  %1364 = vmatpush1.msra.mxu0 0.0
  %1365 = vmatprep.subr.mxu0 0.0
  %1366 = vmatpush1.msra.mxu0 0.0
  %1367 = vmatprep.subr.mxu0 0.0
  %1368 = vmatpush1.msra.mxu0 0.0
  %1369 = vmatprep.subr.mxu0 0.0
  %1370 = vmatpush1.msra.mxu0 0.0
  %1371 = vmatprep.subr.mxu0 0.0
  %1372 = vmatpush1.msra.mxu0 0.0
  %1373 = vmatprep.subr.mxu0 0.0
  %1374 = vmatpush1.msra.mxu0 0.0
  %1375 = vmatprep.subr.mxu0 0.0
  %1376 = vmatpush1.msra.mxu0 0.0
  %1377 = vmatprep.subr.mxu0 0.0
  %1378 = vmatpush1.msra.mxu0 0.0
  %1379 = vmatprep.subr.mxu0 0.0
  %1380 = vmatpush1.msra.mxu0 0.0
  %1381 = vmatprep.subr.mxu0 0.0
  %1382 = vmatpush1.msra.mxu0 0.0
  %1383 = vmatprep.subr.mxu0 0.0
  %1384 = vmatpush1.msra.mxu0 0.0
  %1385 = vmatprep.subr.mxu0 0.0
  %1386 = vmatpush1.msra.mxu0 0.0
  %1387 = vmatprep.subr.mxu0 0.0
  %1388 = vmatpush1.msra.mxu0 0.0
  %1389 = vmatprep.mubr.f32.mxu0 0.0
  %1390 = vmatmul.mubr.f32.gmra.mrb[0].mxu0 %v1323
  %v1391 = vpop.f32.mrb[0].mxu0
  %v1392 = vadd.f32 0.0, %v1391
  %v1393 = vpop.f32.mrb[0].mxu0
  %1394 = vdwg.mxu0
  %v1395 = vadd.f32 %v1322, %v1392
  %v1396 = vxor.u32 %v1395, 2147483648
  %v1397 = vmul.f32 %v1396, 1.442695
  %v1398 = vpow.pop %v1397
  %v1399 = vadd.f32 %v1398, 1.0
  %v1400 = vrcp.pop %v1399
  %v1401 = vmul.f32 1.0, %v1400
  %v1402 = vadd.f32 %v1392, %v1295
  %1404 = vrot.lane.b32.xlu0 %v1402, 64
  %v1405 = vpop.permute.xlu0 %1404
  %v1407 = vmul.f32 %v1401, %v1405
  %1409 = vrot.lane.b32.xlu0 %v1407, 64
  %v1410 = vpop.permute.xlu0 %1409
  %v1412 = vadd.f32 %v1322, %v1410
  %v1413 = vtanh.pop %v1412
  %v1414 = vsub.f32 1.0, %v1401
  %1416 = vrot.lane.b32.xlu0 %v1413, 96
  %v1417 = vpop.permute.xlu0 %1416
  %v1419 = vmul.f32 %v1414, %v1417
  %v1420 = vmul.f32 %v1401, %v1316
  %v1421 = vadd.f32 %v1419, %v1420
  %1423 = vrot.lane.b32.xlu0 %v1421, 96
  %v1424 = vpop.permute.xlu0 %1423
  %1426 = vst.msk [vmem:[#allocation3 + $0x8] sm:$0xff] %vm209, %v1424
  %v1427 = vld [vmem:[#allocation2 + $0x10] sm:$0xff]
  %v1428 = vsel %vm209, %v1424, 0
  %1430 = vmatprep.subr.mxu0 0.0
  %1431 = vmatpush1.msra.mxu0 %v1201
  %1432 = vmatprep.subr.mxu0 0.0
  %1433 = vmatpush1.msra.mxu0 %v1202
  %1434 = vmatprep.subr.mxu0 0.0
  %1435 = vmatpush1.msra.mxu0 %v1203
  %1436 = vmatprep.subr.mxu0 0.0
  %1437 = vmatpush1.msra.mxu0 %v1204
  %1438 = vmatprep.subr.mxu0 0.0
  %1439 = vmatpush1.msra.mxu0 0.0
  %1440 = vmatprep.subr.mxu0 0.0
  %1441 = vmatpush1.msra.mxu0 0.0
  %1442 = vmatprep.subr.mxu0 0.0
  %1443 = vmatpush1.msra.mxu0 0.0
  %1444 = vmatprep.subr.mxu0 0.0
  %1445 = vmatpush1.msra.mxu0 0.0
  %1446 = vmatprep.subr.mxu0 0.0
  %1447 = vmatpush1.msra.mxu0 0.0
  %1448 = vmatprep.subr.mxu0 0.0
  %1449 = vmatpush1.msra.mxu0 0.0
  %1450 = vmatprep.subr.mxu0 0.0
  %1451 = vmatpush1.msra.mxu0 0.0
  %1452 = vmatprep.subr.mxu0 0.0
  %1453 = vmatpush1.msra.mxu0 0.0
  %1454 = vmatprep.subr.mxu0 0.0
  %1455 = vmatpush1.msra.mxu0 0.0
  %1456 = vmatprep.subr.mxu0 0.0
  %1457 = vmatpush1.msra.mxu0 0.0
  %1458 = vmatprep.subr.mxu0 0.0
  %1459 = vmatpush1.msra.mxu0 0.0
  %1460 = vmatprep.subr.mxu0 0.0
  %1461 = vmatpush1.msra.mxu0 0.0
  %1462 = vmatprep.subr.mxu0 0.0
  %1463 = vmatpush1.msra.mxu0 0.0
  %1464 = vmatprep.subr.mxu0 0.0
  %1465 = vmatpush1.msra.mxu0 0.0
  %1466 = vmatprep.subr.mxu0 0.0
  %1467 = vmatpush1.msra.mxu0 0.0
  %1468 = vmatprep.subr.mxu0 0.0
  %1469 = vmatpush1.msra.mxu0 0.0
  %1470 = vmatprep.subr.mxu0 0.0
  %1471 = vmatpush1.msra.mxu0 0.0
  %1472 = vmatprep.subr.mxu0 0.0
  %1473 = vmatpush1.msra.mxu0 0.0
  %1474 = vmatprep.subr.mxu0 0.0
  %1475 = vmatpush1.msra.mxu0 0.0
  %1476 = vmatprep.subr.mxu0 0.0
  %1477 = vmatpush1.msra.mxu0 0.0
  %1478 = vmatprep.subr.mxu0 0.0
  %1479 = vmatpush1.msra.mxu0 0.0
  %1480 = vmatprep.subr.mxu0 0.0
  %1481 = vmatpush1.msra.mxu0 0.0
  %1482 = vmatprep.subr.mxu0 0.0
  %1483 = vmatpush1.msra.mxu0 0.0
  %1484 = vmatprep.subr.mxu0 0.0
  %1485 = vmatpush1.msra.mxu0 0.0
  %1486 = vmatprep.subr.mxu0 0.0
  %1487 = vmatpush1.msra.mxu0 0.0
  %1488 = vmatprep.subr.mxu0 0.0
  %1489 = vmatpush1.msra.mxu0 0.0
  %1490 = vmatprep.subr.mxu0 0.0
  %1491 = vmatpush1.msra.mxu0 0.0
  %1492 = vmatprep.subr.mxu0 0.0
  %1493 = vmatpush1.msra.mxu0 0.0
  %1494 = vmatprep.mubr.f32.mxu0 0.0
  %1495 = vmatmul.mubr.f32.gmra.mrb[0].mxu0 %v1428
  %v1496 = vpop.f32.mrb[0].mxu0
  %v1497 = vadd.f32 0.0, %v1496
  %v1498 = vpop.f32.mrb[0].mxu0
  %1499 = vdwg.mxu0
  %v1500 = vadd.f32 %v1427, %v1497
  %v1501 = vxor.u32 %v1500, 2147483648
  %v1502 = vmul.f32 %v1501, 1.442695
  %v1503 = vpow.pop %v1502
  %v1504 = vadd.f32 %v1503, 1.0
  %v1505 = vrcp.pop %v1504
  %v1506 = vmul.f32 1.0, %v1505
  %v1507 = vadd.f32 %v1497, %v1295
  %1509 = vrot.lane.b32.xlu0 %v1507, 64
  %v1510 = vpop.permute.xlu0 %1509
  %v1512 = vmul.f32 %v1506, %v1510
  %1514 = vrot.lane.b32.xlu0 %v1512, 64
  %v1515 = vpop.permute.xlu0 %1514
  %v1517 = vadd.f32 %v1427, %v1515
  %v1518 = vtanh.pop %v1517
  %v1519 = vsub.f32 1.0, %v1506
  %1521 = vrot.lane.b32.xlu0 %v1518, 96
  %v1522 = vpop.permute.xlu0 %1521
  %v1524 = vmul.f32 %v1519, %v1522
  %v1525 = vmul.f32 %v1506, %v1421
  %v1526 = vadd.f32 %v1524, %v1525
  %1528 = vrot.lane.b32.xlu0 %v1526, 96
  %v1529 = vpop.permute.xlu0 %1528
  %1531 = vst.msk [vmem:[#allocation3 + $0x10] sm:$0xff] %vm209, %v1529
  %v1532 = vld [vmem:[#allocation2 + $0x18] sm:$0xff]
  %v1533 = vsel %vm209, %v1529, 0
  %1535 = vmatprep.subr.mxu0 0.0
  %1536 = vmatpush1.msra.mxu0 %v1201
  %1537 = vmatprep.subr.mxu0 0.0
  %1538 = vmatpush1.msra.mxu0 %v1202
  %1539 = vmatprep.subr.mxu0 0.0
  %1540 = vmatpush1.msra.mxu0 %v1203
  %1541 = vmatprep.subr.mxu0 0.0
  %1542 = vmatpush1.msra.mxu0 %v1204
  %1543 = vmatprep.subr.mxu0 0.0
  %1544 = vmatpush1.msra.mxu0 0.0
  %1545 = vmatprep.subr.mxu0 0.0
  %1546 = vmatpush1.msra.mxu0 0.0
  %1547 = vmatprep.subr.mxu0 0.0
  %1548 = vmatpush1.msra.mxu0 0.0
  %1549 = vmatprep.subr.mxu0 0.0
  %1550 = vmatpush1.msra.mxu0 0.0
  %1551 = vmatprep.subr.mxu0 0.0
  %1552 = vmatpush1.msra.mxu0 0.0
  %1553 = vmatprep.subr.mxu0 0.0
  %1554 = vmatpush1.msra.mxu0 0.0
  %1555 = vmatprep.subr.mxu0 0.0
  %1556 = vmatpush1.msra.mxu0 0.0
  %1557 = vmatprep.subr.mxu0 0.0
  %1558 = vmatpush1.msra.mxu0 0.0
  %1559 = vmatprep.subr.mxu0 0.0
  %1560 = vmatpush1.msra.mxu0 0.0
  %1561 = vmatprep.subr.mxu0 0.0
  %1562 = vmatpush1.msra.mxu0 0.0
  %1563 = vmatprep.subr.mxu0 0.0
  %1564 = vmatpush1.msra.mxu0 0.0
  %1565 = vmatprep.subr.mxu0 0.0
  %1566 = vmatpush1.msra.mxu0 0.0
  %1567 = vmatprep.subr.mxu0 0.0
  %1568 = vmatpush1.msra.mxu0 0.0
  %1569 = vmatprep.subr.mxu0 0.0
  %1570 = vmatpush1.msra.mxu0 0.0
  %1571 = vmatprep.subr.mxu0 0.0
  %1572 = vmatpush1.msra.mxu0 0.0
  %1573 = vmatprep.subr.mxu0 0.0
  %1574 = vmatpush1.msra.mxu0 0.0
  %1575 = vmatprep.subr.mxu0 0.0
  %1576 = vmatpush1.msra.mxu0 0.0
  %1577 = vmatprep.subr.mxu0 0.0
  %1578 = vmatpush1.msra.mxu0 0.0
  %1579 = vmatprep.subr.mxu0 0.0
  %1580 = vmatpush1.msra.mxu0 0.0
  %1581 = vmatprep.subr.mxu0 0.0
  %1582 = vmatpush1.msra.mxu0 0.0
  %1583 = vmatprep.subr.mxu0 0.0
  %1584 = vmatpush1.msra.mxu0 0.0
  %1585 = vmatprep.subr.mxu0 0.0
  %1586 = vmatpush1.msra.mxu0 0.0
  %1587 = vmatprep.subr.mxu0 0.0
  %1588 = vmatpush1.msra.mxu0 0.0
  %1589 = vmatprep.subr.mxu0 0.0
  %1590 = vmatpush1.msra.mxu0 0.0
  %1591 = vmatprep.subr.mxu0 0.0
  %1592 = vmatpush1.msra.mxu0 0.0
  %1593 = vmatprep.subr.mxu0 0.0
  %1594 = vmatpush1.msra.mxu0 0.0
  %1595 = vmatprep.subr.mxu0 0.0
  %1596 = vmatpush1.msra.mxu0 0.0
  %1597 = vmatprep.subr.mxu0 0.0
  %1598 = vmatpush1.msra.mxu0 0.0
  %1599 = vmatprep.mubr.f32.mxu0 0.0
  %1600 = vmatmul.mubr.f32.gmra.mrb[0].mxu0 %v1533
  %v1601 = vpop.f32.mrb[0].mxu0
  %v1602 = vadd.f32 0.0, %v1601
  %v1603 = vpop.f32.mrb[0].mxu0
  %1604 = vdwg.mxu0
  %v1605 = vadd.f32 %v1532, %v1602
  %v1606 = vxor.u32 %v1605, 2147483648
  %v1607 = vmul.f32 %v1606, 1.442695
  %v1608 = vpow.pop %v1607
  %v1609 = vadd.f32 %v1608, 1.0
  %v1610 = vrcp.pop %v1609
  %v1611 = vmul.f32 1.0, %v1610
  %v1612 = vadd.f32 %v1602, %v1295
  %1614 = vrot.lane.b32.xlu0 %v1612, 64
  %v1615 = vpop.permute.xlu0 %1614
  %v1617 = vmul.f32 %v1611, %v1615
  %1619 = vrot.lane.b32.xlu0 %v1617, 64
  %v1620 = vpop.permute.xlu0 %1619
  %v1622 = vadd.f32 %v1532, %v1620
  %v1623 = vtanh.pop %v1622
  %v1624 = vsub.f32 1.0, %v1611
  %1626 = vrot.lane.b32.xlu0 %v1623, 96
  %v1627 = vpop.permute.xlu0 %1626
  %v1629 = vmul.f32 %v1624, %v1627
  %v1630 = vmul.f32 %v1611, %v1526
  %v1631 = vadd.f32 %v1629, %v1630
  %1633 = vrot.lane.b32.xlu0 %v1631, 96
  %v1634 = vpop.permute.xlu0 %1633
  %1636 = vst.msk [vmem:[#allocation3 + $0x18] sm:$0xff] %vm209, %v1634
  %v1637 = vld [vmem:[#allocation2 + $0x20] sm:$0xff]
  %v1638 = vsel %vm209, %v1634, 0
  %1640 = vmatprep.subr.mxu0 0.0
  %1641 = vmatpush1.msra.mxu0 %v1201
  %1642 = vmatprep.subr.mxu0 0.0
  %1643 = vmatpush1.msra.mxu0 %v1202
  %1644 = vmatprep.subr.mxu0 0.0
  %1645 = vmatpush1.msra.mxu0 %v1203
  %1646 = vmatprep.subr.mxu0 0.0
  %1647 = vmatpush1.msra.mxu0 %v1204
  %1648 = vmatprep.subr.mxu0 0.0
  %1649 = vmatpush1.msra.mxu0 0.0
  %1650 = vmatprep.subr.mxu0 0.0
  %1651 = vmatpush1.msra.mxu0 0.0
  %1652 = vmatprep.subr.mxu0 0.0
  %1653 = vmatpush1.msra.mxu0 0.0
  %1654 = vmatprep.subr.mxu0 0.0
  %1655 = vmatpush1.msra.mxu0 0.0
  %1656 = vmatprep.subr.mxu0 0.0
  %1657 = vmatpush1.msra.mxu0 0.0
  %1658 = vmatprep.subr.mxu0 0.0
  %1659 = vmatpush1.msra.mxu0 0.0
  %1660 = vmatprep.subr.mxu0 0.0
  %1661 = vmatpush1.msra.mxu0 0.0
  %1662 = vmatprep.subr.mxu0 0.0
  %1663 = vmatpush1.msra.mxu0 0.0
  %1664 = vmatprep.subr.mxu0 0.0
  %1665 = vmatpush1.msra.mxu0 0.0
  %1666 = vmatprep.subr.mxu0 0.0
  %1667 = vmatpush1.msra.mxu0 0.0
  %1668 = vmatprep.subr.mxu0 0.0
  %1669 = vmatpush1.msra.mxu0 0.0
  %1670 = vmatprep.subr.mxu0 0.0
  %1671 = vmatpush1.msra.mxu0 0.0
  %1672 = vmatprep.subr.mxu0 0.0
  %1673 = vmatpush1.msra.mxu0 0.0
  %1674 = vmatprep.subr.mxu0 0.0
  %1675 = vmatpush1.msra.mxu0 0.0
  %1676 = vmatprep.subr.mxu0 0.0
  %1677 = vmatpush1.msra.mxu0 0.0
  %1678 = vmatprep.subr.mxu0 0.0
  %1679 = vmatpush1.msra.mxu0 0.0
  %1680 = vmatprep.subr.mxu0 0.0
  %1681 = vmatpush1.msra.mxu0 0.0
  %1682 = vmatprep.subr.mxu0 0.0
  %1683 = vmatpush1.msra.mxu0 0.0
  %1684 = vmatprep.subr.mxu0 0.0
  %1685 = vmatpush1.msra.mxu0 0.0
  %1686 = vmatprep.subr.mxu0 0.0
  %1687 = vmatpush1.msra.mxu0 0.0
  %1688 = vmatprep.subr.mxu0 0.0
  %1689 = vmatpush1.msra.mxu0 0.0
  %1690 = vmatprep.subr.mxu0 0.0
  %1691 = vmatpush1.msra.mxu0 0.0
  %1692 = vmatprep.subr.mxu0 0.0
  %1693 = vmatpush1.msra.mxu0 0.0
  %1694 = vmatprep.subr.mxu0 0.0
  %1695 = vmatpush1.msra.mxu0 0.0
  %1696 = vmatprep.subr.mxu0 0.0
  %1697 = vmatpush1.msra.mxu0 0.0
  %1698 = vmatprep.subr.mxu0 0.0
  %1699 = vmatpush1.msra.mxu0 0.0
  %1700 = vmatprep.subr.mxu0 0.0
  %1701 = vmatpush1.msra.mxu0 0.0
  %1702 = vmatprep.subr.mxu0 0.0
  %1703 = vmatpush1.msra.mxu0 0.0
  %1704 = vmatprep.mubr.f32.mxu0 0.0
  %1705 = vmatmul.mubr.f32.gmra.mrb[0].mxu0 %v1638
  %v1706 = vpop.f32.mrb[0].mxu0
  %v1707 = vadd.f32 0.0, %v1706
  %v1708 = vpop.f32.mrb[0].mxu0
  %1709 = vdwg.mxu0
  %v1710 = vadd.f32 %v1637, %v1707
  %v1711 = vxor.u32 %v1710, 2147483648
  %v1712 = vmul.f32 %v1711, 1.442695
  %v1713 = vpow.pop %v1712
  %v1714 = vadd.f32 %v1713, 1.0
  %v1715 = vrcp.pop %v1714
  %v1716 = vmul.f32 1.0, %v1715
  %v1717 = vadd.f32 %v1707, %v1295
  %1719 = vrot.lane.b32.xlu0 %v1717, 64
  %v1720 = vpop.permute.xlu0 %1719
  %v1722 = vmul.f32 %v1716, %v1720
  %1724 = vrot.lane.b32.xlu0 %v1722, 64
  %v1725 = vpop.permute.xlu0 %1724
  %v1727 = vadd.f32 %v1637, %v1725
  %v1728 = vtanh.pop %v1727
  %v1729 = vsub.f32 1.0, %v1716
  %1731 = vrot.lane.b32.xlu0 %v1728, 96
  %v1732 = vpop.permute.xlu0 %1731
  %v1734 = vmul.f32 %v1729, %v1732
  %v1735 = vmul.f32 %v1716, %v1631
  %v1736 = vadd.f32 %v1734, %v1735
  %1738 = vrot.lane.b32.xlu0 %v1736, 96
  %v1739 = vpop.permute.xlu0 %1738
  %1741 = vst.msk [vmem:[#allocation3 + $0x20] sm:$0xff] %vm209, %v1739
  %v1742 = vld [vmem:[#allocation2 + $0x28] sm:$0xff]
  %v1743 = vsel %vm209, %v1739, 0
  %1745 = vmatprep.subr.mxu0 0.0
  %1746 = vmatpush1.msra.mxu0 %v1201
  %1747 = vmatprep.subr.mxu0 0.0
  %1748 = vmatpush1.msra.mxu0 %v1202
  %1749 = vmatprep.subr.mxu0 0.0
  %1750 = vmatpush1.msra.mxu0 %v1203
  %1751 = vmatprep.subr.mxu0 0.0
  %1752 = vmatpush1.msra.mxu0 %v1204
  %1753 = vmatprep.subr.mxu0 0.0
  %1754 = vmatpush1.msra.mxu0 0.0
  %1755 = vmatprep.subr.mxu0 0.0
  %1756 = vmatpush1.msra.mxu0 0.0
  %1757 = vmatprep.subr.mxu0 0.0
  %1758 = vmatpush1.msra.mxu0 0.0
  %1759 = vmatprep.subr.mxu0 0.0
  %1760 = vmatpush1.msra.mxu0 0.0
  %1761 = vmatprep.subr.mxu0 0.0
  %1762 = vmatpush1.msra.mxu0 0.0
  %1763 = vmatprep.subr.mxu0 0.0
  %1764 = vmatpush1.msra.mxu0 0.0
  %1765 = vmatprep.subr.mxu0 0.0
  %1766 = vmatpush1.msra.mxu0 0.0
  %1767 = vmatprep.subr.mxu0 0.0
  %1768 = vmatpush1.msra.mxu0 0.0
  %1769 = vmatprep.subr.mxu0 0.0
  %1770 = vmatpush1.msra.mxu0 0.0
  %1771 = vmatprep.subr.mxu0 0.0
  %1772 = vmatpush1.msra.mxu0 0.0
  %1773 = vmatprep.subr.mxu0 0.0
  %1774 = vmatpush1.msra.mxu0 0.0
  %1775 = vmatprep.subr.mxu0 0.0
  %1776 = vmatpush1.msra.mxu0 0.0
  %1777 = vmatprep.subr.mxu0 0.0
  %1778 = vmatpush1.msra.mxu0 0.0
  %1779 = vmatprep.subr.mxu0 0.0
  %1780 = vmatpush1.msra.mxu0 0.0
  %1781 = vmatprep.subr.mxu0 0.0
  %1782 = vmatpush1.msra.mxu0 0.0
  %1783 = vmatprep.subr.mxu0 0.0
  %1784 = vmatpush1.msra.mxu0 0.0
  %1785 = vmatprep.subr.mxu0 0.0
  %1786 = vmatpush1.msra.mxu0 0.0
  %1787 = vmatprep.subr.mxu0 0.0
  %1788 = vmatpush1.msra.mxu0 0.0
  %1789 = vmatprep.subr.mxu0 0.0
  %1790 = vmatpush1.msra.mxu0 0.0
  %1791 = vmatprep.subr.mxu0 0.0
  %1792 = vmatpush1.msra.mxu0 0.0
  %1793 = vmatprep.subr.mxu0 0.0
  %1794 = vmatpush1.msra.mxu0 0.0
  %1795 = vmatprep.subr.mxu0 0.0
  %1796 = vmatpush1.msra.mxu0 0.0
  %1797 = vmatprep.subr.mxu0 0.0
  %1798 = vmatpush1.msra.mxu0 0.0
  %1799 = vmatprep.subr.mxu0 0.0
  %1800 = vmatpush1.msra.mxu0 0.0
  %1801 = vmatprep.subr.mxu0 0.0
  %1802 = vmatpush1.msra.mxu0 0.0
  %1803 = vmatprep.subr.mxu0 0.0
  %1804 = vmatpush1.msra.mxu0 0.0
  %1805 = vmatprep.subr.mxu0 0.0
  %1806 = vmatpush1.msra.mxu0 0.0
  %1807 = vmatprep.subr.mxu0 0.0
  %1808 = vmatpush1.msra.mxu0 0.0
  %1809 = vmatprep.mubr.f32.mxu0 0.0
  %1810 = vmatmul.mubr.f32.gmra.mrb[0].mxu0 %v1743
  %v1811 = vpop.f32.mrb[0].mxu0
  %v1812 = vadd.f32 0.0, %v1811
  %v1813 = vpop.f32.mrb[0].mxu0
  %1814 = vdwg.mxu0
  %v1815 = vadd.f32 %v1742, %v1812
  %v1816 = vxor.u32 %v1815, 2147483648
  %v1817 = vmul.f32 %v1816, 1.442695
  %v1818 = vpow.pop %v1817
  %v1819 = vadd.f32 %v1818, 1.0
  %v1820 = vrcp.pop %v1819
  %v1821 = vmul.f32 1.0, %v1820
  %v1822 = vadd.f32 %v1812, %v1295
  %1824 = vrot.lane.b32.xlu0 %v1822, 64
  %v1825 = vpop.permute.xlu0 %1824
  %v1827 = vmul.f32 %v1821, %v1825
  %1829 = vrot.lane.b32.xlu0 %v1827, 64
  %v1830 = vpop.permute.xlu0 %1829
  %v1832 = vadd.f32 %v1742, %v1830
  %v1833 = vtanh.pop %v1832
  %v1834 = vsub.f32 1.0, %v1821
  %1836 = vrot.lane.b32.xlu0 %v1833, 96
  %v1837 = vpop.permute.xlu0 %1836
  %v1839 = vmul.f32 %v1834, %v1837
  %v1840 = vmul.f32 %v1821, %v1736
  %v1841 = vadd.f32 %v1839, %v1840
  %1843 = vrot.lane.b32.xlu0 %v1841, 96
  %v1844 = vpop.permute.xlu0 %1843
  %1846 = vst.msk [vmem:[#allocation3 + $0x28] sm:$0xff] %vm209, %v1844
  %v1847 = vld [vmem:[#allocation2 + $0x30] sm:$0xff]
  %v1848 = vsel %vm209, %v1844, 0
  %1850 = vmatprep.subr.mxu0 0.0
  %1851 = vmatpush1.msra.mxu0 %v1201
  %1852 = vmatprep.subr.mxu0 0.0
  %1853 = vmatpush1.msra.mxu0 %v1202
  %1854 = vmatprep.subr.mxu0 0.0
  %1855 = vmatpush1.msra.mxu0 %v1203
  %1856 = vmatprep.subr.mxu0 0.0
  %1857 = vmatpush1.msra.mxu0 %v1204
  %1858 = vmatprep.subr.mxu0 0.0
  %1859 = vmatpush1.msra.mxu0 0.0
  %1860 = vmatprep.subr.mxu0 0.0
  %1861 = vmatpush1.msra.mxu0 0.0
  %1862 = vmatprep.subr.mxu0 0.0
  %1863 = vmatpush1.msra.mxu0 0.0
  %1864 = vmatprep.subr.mxu0 0.0
  %1865 = vmatpush1.msra.mxu0 0.0
  %1866 = vmatprep.subr.mxu0 0.0
  %1867 = vmatpush1.msra.mxu0 0.0
  %1868 = vmatprep.subr.mxu0 0.0
  %1869 = vmatpush1.msra.mxu0 0.0
  %1870 = vmatprep.subr.mxu0 0.0
  %1871 = vmatpush1.msra.mxu0 0.0
  %1872 = vmatprep.subr.mxu0 0.0
  %1873 = vmatpush1.msra.mxu0 0.0
  %1874 = vmatprep.subr.mxu0 0.0
  %1875 = vmatpush1.msra.mxu0 0.0
  %1876 = vmatprep.subr.mxu0 0.0
  %1877 = vmatpush1.msra.mxu0 0.0
  %1878 = vmatprep.subr.mxu0 0.0
  %1879 = vmatpush1.msra.mxu0 0.0
  %1880 = vmatprep.subr.mxu0 0.0
  %1881 = vmatpush1.msra.mxu0 0.0
  %1882 = vmatprep.subr.mxu0 0.0
  %1883 = vmatpush1.msra.mxu0 0.0
  %1884 = vmatprep.subr.mxu0 0.0
  %1885 = vmatpush1.msra.mxu0 0.0
  %1886 = vmatprep.subr.mxu0 0.0
  %1887 = vmatpush1.msra.mxu0 0.0
  %1888 = vmatprep.subr.mxu0 0.0
  %1889 = vmatpush1.msra.mxu0 0.0
  %1890 = vmatprep.subr.mxu0 0.0
  %1891 = vmatpush1.msra.mxu0 0.0
  %1892 = vmatprep.subr.mxu0 0.0
  %1893 = vmatpush1.msra.mxu0 0.0
  %1894 = vmatprep.subr.mxu0 0.0
  %1895 = vmatpush1.msra.mxu0 0.0
  %1896 = vmatprep.subr.mxu0 0.0
  %1897 = vmatpush1.msra.mxu0 0.0
  %1898 = vmatprep.subr.mxu0 0.0
  %1899 = vmatpush1.msra.mxu0 0.0
  %1900 = vmatprep.subr.mxu0 0.0
  %1901 = vmatpush1.msra.mxu0 0.0
  %1902 = vmatprep.subr.mxu0 0.0
  %1903 = vmatpush1.msra.mxu0 0.0
  %1904 = vmatprep.subr.mxu0 0.0
  %1905 = vmatpush1.msra.mxu0 0.0
  %1906 = vmatprep.subr.mxu0 0.0
  %1907 = vmatpush1.msra.mxu0 0.0
  %1908 = vmatprep.subr.mxu0 0.0
  %1909 = vmatpush1.msra.mxu0 0.0
  %1910 = vmatprep.subr.mxu0 0.0
  %1911 = vmatpush1.msra.mxu0 0.0
  %1912 = vmatprep.subr.mxu0 0.0
  %1913 = vmatpush1.msra.mxu0 0.0
  %1914 = vmatprep.mubr.f32.mxu0 0.0
  %1915 = vmatmul.mubr.f32.gmra.mrb[0].mxu0 %v1848
  %v1916 = vpop.f32.mrb[0].mxu0
  %v1917 = vadd.f32 0.0, %v1916
  %v1918 = vpop.f32.mrb[0].mxu0
  %1919 = vdwg.mxu0
  %v1920 = vadd.f32 %v1847, %v1917
  %v1921 = vxor.u32 %v1920, 2147483648
  %v1922 = vmul.f32 %v1921, 1.442695
  %v1923 = vpow.pop %v1922
  %v1924 = vadd.f32 %v1923, 1.0
  %v1925 = vrcp.pop %v1924
  %v1926 = vmul.f32 1.0, %v1925
  %v1927 = vadd.f32 %v1917, %v1295
  %1929 = vrot.lane.b32.xlu0 %v1927, 64
  %v1930 = vpop.permute.xlu0 %1929
  %v1932 = vmul.f32 %v1926, %v1930
  %1934 = vrot.lane.b32.xlu0 %v1932, 64
  %v1935 = vpop.permute.xlu0 %1934
  %v1937 = vadd.f32 %v1847, %v1935
  %v1938 = vtanh.pop %v1937
  %v1939 = vsub.f32 1.0, %v1926
  %1941 = vrot.lane.b32.xlu0 %v1938, 96
  %v1942 = vpop.permute.xlu0 %1941
  %v1944 = vmul.f32 %v1939, %v1942
  %v1945 = vmul.f32 %v1926, %v1841
  %v1946 = vadd.f32 %v1944, %v1945
  %1948 = vrot.lane.b32.xlu0 %v1946, 96
  %v1949 = vpop.permute.xlu0 %1948
  %1951 = vst.msk [vmem:[#allocation3 + $0x30] sm:$0xff] %vm209, %v1949
  %v1952 = vld [vmem:[#allocation2 + $0x38] sm:$0xff]
  %v1953 = vsel %vm209, %v1949, 0
  %1955 = vmatprep.subr.mxu0 0.0
  %1956 = vmatpush1.msra.mxu0 %v1201
  %1957 = vmatprep.subr.mxu0 0.0
  %1958 = vmatpush1.msra.mxu0 %v1202
  %1959 = vmatprep.subr.mxu0 0.0
  %1960 = vmatpush1.msra.mxu0 %v1203
  %1961 = vmatprep.subr.mxu0 0.0
  %1962 = vmatpush1.msra.mxu0 %v1204
  %1963 = vmatprep.subr.mxu0 0.0
  %1964 = vmatpush1.msra.mxu0 0.0
  %1965 = vmatprep.subr.mxu0 0.0
  %1966 = vmatpush1.msra.mxu0 0.0
  %1967 = vmatprep.subr.mxu0 0.0
  %1968 = vmatpush1.msra.mxu0 0.0
  %1969 = vmatprep.subr.mxu0 0.0
  %1970 = vmatpush1.msra.mxu0 0.0
  %1971 = vmatprep.subr.mxu0 0.0
  %1972 = vmatpush1.msra.mxu0 0.0
  %1973 = vmatprep.subr.mxu0 0.0
  %1974 = vmatpush1.msra.mxu0 0.0
  %1975 = vmatprep.subr.mxu0 0.0
  %1976 = vmatpush1.msra.mxu0 0.0
  %1977 = vmatprep.subr.mxu0 0.0
  %1978 = vmatpush1.msra.mxu0 0.0
  %1979 = vmatprep.subr.mxu0 0.0
  %1980 = vmatpush1.msra.mxu0 0.0
  %1981 = vmatprep.subr.mxu0 0.0
  %1982 = vmatpush1.msra.mxu0 0.0
  %1983 = vmatprep.subr.mxu0 0.0
  %1984 = vmatpush1.msra.mxu0 0.0
  %1985 = vmatprep.subr.mxu0 0.0
  %1986 = vmatpush1.msra.mxu0 0.0
  %1987 = vmatprep.subr.mxu0 0.0
  %1988 = vmatpush1.msra.mxu0 0.0
  %1989 = vmatprep.subr.mxu0 0.0
  %1990 = vmatpush1.msra.mxu0 0.0
  %1991 = vmatprep.subr.mxu0 0.0
  %1992 = vmatpush1.msra.mxu0 0.0
  %1993 = vmatprep.subr.mxu0 0.0
  %1994 = vmatpush1.msra.mxu0 0.0
  %1995 = vmatprep.subr.mxu0 0.0
  %1996 = vmatpush1.msra.mxu0 0.0
  %1997 = vmatprep.subr.mxu0 0.0
  %1998 = vmatpush1.msra.mxu0 0.0
  %1999 = vmatprep.subr.mxu0 0.0
  %2000 = vmatpush1.msra.mxu0 0.0
  %2001 = vmatprep.subr.mxu0 0.0
  %2002 = vmatpush1.msra.mxu0 0.0
  %2003 = vmatprep.subr.mxu0 0.0
  %2004 = vmatpush1.msra.mxu0 0.0
  %2005 = vmatprep.subr.mxu0 0.0
  %2006 = vmatpush1.msra.mxu0 0.0
  %2007 = vmatprep.subr.mxu0 0.0
  %2008 = vmatpush1.msra.mxu0 0.0
  %2009 = vmatprep.subr.mxu0 0.0
  %2010 = vmatpush1.msra.mxu0 0.0
  %2011 = vmatprep.subr.mxu0 0.0
  %2012 = vmatpush1.msra.mxu0 0.0
  %2013 = vmatprep.subr.mxu0 0.0
  %2014 = vmatpush1.msra.mxu0 0.0
  %2015 = vmatprep.subr.mxu0 0.0
  %2016 = vmatpush1.msra.mxu0 0.0
  %2017 = vmatprep.subr.mxu0 0.0
  %2018 = vmatpush1.msra.mxu0 0.0
  %2019 = vmatprep.mubr.f32.mxu0 0.0
  %2020 = vmatmul.mubr.f32.gmra.mrb[0].mxu0 %v1953
  %v2021 = vpop.f32.mrb[0].mxu0
  %v2022 = vadd.f32 0.0, %v2021
  %v2023 = vpop.f32.mrb[0].mxu0
  %2024 = vdwg.mxu0
  %v2025 = vadd.f32 %v1952, %v2022
  %v2026 = vxor.u32 %v2025, 2147483648
  %v2027 = vmul.f32 %v2026, 1.442695
  %v2028 = vpow.pop %v2027
  %v2029 = vadd.f32 %v2028, 1.0
  %v2030 = vrcp.pop %v2029
  %v2031 = vmul.f32 1.0, %v2030
  %v2032 = vadd.f32 %v2022, %v1295
  %2034 = vrot.lane.b32.xlu0 %v2032, 64
  %v2035 = vpop.permute.xlu0 %2034
  %v2037 = vmul.f32 %v2031, %v2035
  %2039 = vrot.lane.b32.xlu0 %v2037, 64
  %v2040 = vpop.permute.xlu0 %2039
  %v2042 = vadd.f32 %v1952, %v2040
  %v2043 = vtanh.pop %v2042
  %v2044 = vsub.f32 1.0, %v2031
  %2046 = vrot.lane.b32.xlu0 %v2043, 96
  %v2047 = vpop.permute.xlu0 %2046
  %v2049 = vmul.f32 %v2044, %v2047
  %v2050 = vmul.f32 %v2031, %v1946
  %v2051 = vadd.f32 %v2049, %v2050
  %2053 = vrot.lane.b32.xlu0 %v2051, 96
  %v2054 = vpop.permute.xlu0 %2053
  %2056 = vst.msk [vmem:[#allocation3 + $0x38] sm:$0xff] %vm209, %v2054
  %v2057 = vld [vmem:[#allocation3] sm:$0xff]
  %v2058 = vld [vmem:[#allocation3 + $0x8] sm:$0xff]
  %v2059 = vld [vmem:[#allocation3 + $0x10] sm:$0xff]
  %v2060 = vld [vmem:[#allocation3 + $0x18] sm:$0xff]
  %v2061 = vld [vmem:[#allocation3 + $0x20] sm:$0xff]
  %v2062 = vld [vmem:[#allocation3 + $0x28] sm:$0xff]
  %v2063 = vld [vmem:[#allocation3 + $0x30] sm:$0xff]
  %v2064 = vld [vmem:[#allocation3 + $0x38] sm:$0xff]
  %v2065 = vld [vmem:[%s11] sm:$0xff]
  %v2066 = vld [vmem:[%s11 + $0x8] sm:$0xff]
  %v2067 = vld [vmem:[%s11 + $0x10] sm:$0xff]
  %v2068 = vld [vmem:[%s11 + $0x18] sm:$0xff]
  %v2069 = vld [vmem:[%s12] sm:$0x1]
  %v2071 = vlaneseq
  %v2072 = vshrl.u32 %v2071, 7
  %v2073 = vsub.s32 0, %v2072
  %v2074 = vrot.slane %v2069, %v2073
  %v2077 = vsel %vm209, %v2057, 0
  %v2080 = vsel %vm209, %v2058, 0
  %v2083 = vsel %vm209, %v2059, 0
  %v2086 = vsel %vm209, %v2060, 0
  %v2089 = vsel %vm209, %v2061, 0
  %v2092 = vsel %vm209, %v2062, 0
  %v2095 = vsel %vm209, %v2063, 0
  %v2098 = vsel %vm209, %v2064, 0
  %2100 = vmatprep.subr.mxu0 0.0
  %2101 = vmatpush1.msra.mxu0 %v2065
  %2102 = vmatprep.subr.mxu0 0.0
  %2103 = vmatpush1.msra.mxu0 %v2066
  %2104 = vmatprep.subr.mxu0 0.0
  %2105 = vmatpush1.msra.mxu0 %v2067
  %2106 = vmatprep.subr.mxu0 0.0
  %2107 = vmatpush1.msra.mxu0 %v2068
  %2108 = vmatprep.subr.mxu0 0.0
  %2109 = vmatpush1.msra.mxu0 0.0
  %2110 = vmatprep.subr.mxu0 0.0
  %2111 = vmatpush1.msra.mxu0 0.0
  %2112 = vmatprep.subr.mxu0 0.0
  %2113 = vmatpush1.msra.mxu0 0.0
  %2114 = vmatprep.subr.mxu0 0.0
  %2115 = vmatpush1.msra.mxu0 0.0
  %2116 = vmatprep.subr.mxu0 0.0
  %2117 = vmatpush1.msra.mxu0 0.0
  %2118 = vmatprep.subr.mxu0 0.0
  %2119 = vmatpush1.msra.mxu0 0.0
  %2120 = vmatprep.subr.mxu0 0.0
  %2121 = vmatpush1.msra.mxu0 0.0
  %2122 = vmatprep.subr.mxu0 0.0
  %2123 = vmatpush1.msra.mxu0 0.0
  %2124 = vmatprep.subr.mxu0 0.0
  %2125 = vmatpush1.msra.mxu0 0.0
  %2126 = vmatprep.subr.mxu0 0.0
  %2127 = vmatpush1.msra.mxu0 0.0
  %2128 = vmatprep.subr.mxu0 0.0
  %2129 = vmatpush1.msra.mxu0 0.0
  %2130 = vmatprep.subr.mxu0 0.0
  %2131 = vmatpush1.msra.mxu0 0.0
  %2132 = vmatprep.subr.mxu0 0.0
  %2133 = vmatpush1.msra.mxu0 0.0
  %2134 = vmatprep.subr.mxu0 0.0
  %2135 = vmatpush1.msra.mxu0 0.0
  %2136 = vmatprep.subr.mxu0 0.0
  %2137 = vmatpush1.msra.mxu0 0.0
  %2138 = vmatprep.subr.mxu0 0.0
  %2139 = vmatpush1.msra.mxu0 0.0
  %2140 = vmatprep.subr.mxu0 0.0
  %2141 = vmatpush1.msra.mxu0 0.0
  %2142 = vmatprep.subr.mxu0 0.0
  %2143 = vmatpush1.msra.mxu0 0.0
  %2144 = vmatprep.subr.mxu0 0.0
  %2145 = vmatpush1.msra.mxu0 0.0
  %2146 = vmatprep.subr.mxu0 0.0
  %2147 = vmatpush1.msra.mxu0 0.0
  %2148 = vmatprep.subr.mxu0 0.0
  %2149 = vmatpush1.msra.mxu0 0.0
  %2150 = vmatprep.subr.mxu0 0.0
  %2151 = vmatpush1.msra.mxu0 0.0
  %2152 = vmatprep.subr.mxu0 0.0
  %2153 = vmatpush1.msra.mxu0 0.0
  %2154 = vmatprep.subr.mxu0 0.0
  %2155 = vmatpush1.msra.mxu0 0.0
  %2156 = vmatprep.subr.mxu0 0.0
  %2157 = vmatpush1.msra.mxu0 0.0
  %2158 = vmatprep.subr.mxu0 0.0
  %2159 = vmatpush1.msra.mxu0 0.0
  %2160 = vmatprep.subr.mxu0 0.0
  %2161 = vmatpush1.msra.mxu0 0.0
  %2162 = vmatprep.subr.mxu0 0.0
  %2163 = vmatpush1.msra.mxu0 0.0
  %2164 = vmatprep.mubr.f32.mxu0 0.0
  %2165 = vmatmul.mubr.f32.gmra.mrb[0].mxu0 %v2077
  %v2166 = vpop.f32.mrb[0].mxu0
  %v2167 = vadd.f32 %v2074, %v2166
  %v2168 = vpop.f32.mrb[0].mxu0
  %2169 = vmatprep.mubr.f32.mxu0 0.0
  %2170 = vmatmul.mubr.f32.gmra.mrb[0].mxu0 %v2080
  %v2171 = vpop.f32.mrb[0].mxu0
  %v2172 = vadd.f32 %v2074, %v2171
  %v2173 = vpop.f32.mrb[0].mxu0
  %2174 = vmatprep.mubr.f32.mxu0 0.0
  %2175 = vmatmul.mubr.f32.gmra.mrb[0].mxu0 %v2083
  %v2176 = vpop.f32.mrb[0].mxu0
  %v2177 = vadd.f32 %v2074, %v2176
  %v2178 = vpop.f32.mrb[0].mxu0
  %2179 = vmatprep.mubr.f32.mxu0 0.0
  %2180 = vmatmul.mubr.f32.gmra.mrb[0].mxu0 %v2086
  %v2181 = vpop.f32.mrb[0].mxu0
  %v2182 = vadd.f32 %v2074, %v2181
  %v2183 = vpop.f32.mrb[0].mxu0
  %2184 = vmatprep.mubr.f32.mxu0 0.0
  %2185 = vmatmul.mubr.f32.gmra.mrb[0].mxu0 %v2089
  %v2186 = vpop.f32.mrb[0].mxu0
  %v2187 = vadd.f32 %v2074, %v2186
  %v2188 = vpop.f32.mrb[0].mxu0
  %2189 = vmatprep.mubr.f32.mxu0 0.0
  %2190 = vmatmul.mubr.f32.gmra.mrb[0].mxu0 %v2092
  %v2191 = vpop.f32.mrb[0].mxu0
  %v2192 = vadd.f32 %v2074, %v2191
  %v2193 = vpop.f32.mrb[0].mxu0
  %2194 = vmatprep.mubr.f32.mxu0 0.0
  %2195 = vmatmul.mubr.f32.gmra.mrb[0].mxu0 %v2095
  %v2196 = vpop.f32.mrb[0].mxu0
  %v2197 = vadd.f32 %v2074, %v2196
  %v2198 = vpop.f32.mrb[0].mxu0
  %2199 = vmatprep.mubr.f32.mxu0 0.0
  %2200 = vmatmul.mubr.f32.gmra.mrb[0].mxu0 %v2098
  %v2201 = vpop.f32.mrb[0].mxu0
  %v2202 = vadd.f32 %v2074, %v2201
  %v2203 = vpop.f32.mrb[0].mxu0
  %2204 = vdwg.mxu0
  %2205 = vst.msk [vmem:[%s13] sm:$0xff] %vm60, %v2167
  %2206 = vst.msk [vmem:[%s13 + $0x8] sm:$0xff] %vm60, %v2172
  %2207 = vst.msk [vmem:[%s13 + $0x10] sm:$0xff] %vm60, %v2177
  %2208 = vst.msk [vmem:[%s13 + $0x18] sm:$0xff] %vm60, %v2182
  %2209 = vst.msk [vmem:[%s13 + $0x20] sm:$0xff] %vm60, %v2187
  %2210 = vst.msk [vmem:[%s13 + $0x28] sm:$0xff] %vm60, %v2192
  %2211 = vst.msk [vmem:[%s13 + $0x30] sm:$0xff] %vm60, %v2197
  %2212 = vst.msk [vmem:[%s13 + $0x38] sm:$0xff] %vm60, %v2202
  // Predicated region
  $region54: #{netg_forward.1} parent=0 // pred_check
    _
  $region55: #{netg_forward.1} parent=0 // pred_check_branch
    %2214 = sbr.rel (0) target = $region57
  $region56: #{netg_forward.1} parent=0 // pred_region
    _
  $region57: #{netg_forward.1} parent=0 // pred_fallthru
    _
  // Predicated region
  $region58: #{netg_forward.1} parent=0 // pred_check
    _
  $region59: #{netg_forward.1} parent=0 // pred_check_branch
    %2216 = sbr.rel (0) target = $region61
  $region60: #{netg_forward.1} parent=0 // pred_region
    _
  $region61: #{netg_forward.1} parent=0 // pred_fallthru
    _

</llo_original>
